<compile_context>
chip_gen: v5e
topology: v5e:2x2
jax: 0.10.0
libtpu: 0.0.40
codegen_flags: <defaults>
</compile_context>

<pallas_src>
import jax
import jax.numpy as jnp
from jax import lax
from jax.experimental import pallas as pl
from jax.experimental.pallas import tpu as pltpu


_LANE = 128      # lane width (last-dim alignment)
_SUBLANE = 8     # f32 sublane count (second-to-last-dim alignment)


def _round_up(x, m):
    return (x + m - 1) // m * m


def _pick_t_chunk(T, target):
    """Largest divisor of T that is <= target (so no remainder chunk)."""
    target = max(1, min(int(target), T))
    for c in range(target, 0, -1):
        if T % c == 0:
            return c
    return T


# ---------------------------------------------------------------------------
# Kernel factory: one fused bidirectional RNN layer (optionally + FC head)
# ---------------------------------------------------------------------------

def _make_layer_kernel(*, first, last, t_chunk, unroll):
    """Ref order:  inputs, outputs, scratch.

    inputs (first layer):   x_fwd_chunk, x_rev_chunk, wih_f, wih_b,
                            whh_f, whh_b, b_f, b_b [, fc_w, fc_b]
    inputs (later layers):  yf_fwd, yb_fwd, yf_rev, yb_rev,
                            wih_ff, wih_fb, wih_bf, wih_bb,
                            whh_f, whh_b, b_f, b_b, hsum_in [, fc_w, fc_b]
    outputs:  last layer -> (logits,)   else -> (y_f, y_b, hsum_out)
    scratch:  h_f, h_b, xf, xb
    """

    def kernel(*refs):
        it = iter(refs)
        if first:
            x_f_ref = next(it); x_r_ref = next(it)
            wih_f_ref = next(it); wih_b_ref = next(it)
        else:
            yf_f_ref = next(it); yb_f_ref = next(it)
            yf_r_ref = next(it); yb_r_ref = next(it)
            wih_ff_ref = next(it); wih_fb_ref = next(it)
            wih_bf_ref = next(it); wih_bb_ref = next(it)
        whh_f_ref = next(it); whh_b_ref = next(it)
        b_f_ref = next(it); b_b_ref = next(it)
        if not first:
            hsum_in_ref = next(it)
        if last:
            fc_w_ref = next(it); fc_b_ref = next(it)
            logits_ref = next(it)
        else:
            y_f_ref = next(it); y_b_ref = next(it); hsum_out_ref = next(it)
        h_f_ref = next(it); h_b_ref = next(it)
        xf_ref = next(it); xb_ref = next(it)

        c = pl.program_id(0)
        Tc = t_chunk
        B, H = h_f_ref.shape

        @pl.when(c == 0)
        def _init():
            h_f_ref[...] = jnp.zeros_like(h_f_ref)
            h_b_ref[...] = jnp.zeros_like(h_b_ref)

        # --- Hoisted, bias-folded input projections for this time chunk -----
        # bf16 MXU operands, f32 accumulation. The flatten is a free retile
        # because B is padded to a sublane multiple.
        def proj(x3_ref, w_ref):
            x2 = x3_ref[...].reshape(Tc * B, x3_ref.shape[-1])
            return jnp.dot(x2, w_ref[...], preferred_element_type=jnp.float32)

        if first:
            xf_ref[...] = (proj(x_f_ref, wih_f_ref) + b_f_ref[...]).reshape(Tc, B, H)
            xb_ref[...] = (proj(x_r_ref, wih_b_ref) + b_b_ref[...]).reshape(Tc, B, H)
        else:
            xf_ref[...] = (proj(yf_f_ref, wih_ff_ref) + proj(yb_f_ref, wih_fb_ref)
                           + b_f_ref[...]).reshape(Tc, B, H)
            xb_ref[...] = (proj(yf_r_ref, wih_bf_ref) + proj(yb_r_ref, wih_bb_ref)
                           + b_b_ref[...]).reshape(Tc, B, H)

        whh_f = whh_f_ref[...]
        whh_b = whh_b_ref[...]

        # --- Fused bidirectional Elman recurrence over this chunk -----------
        def step(t, carry):
            h_f, h_b = carry
            tb = Tc - 1 - t
            h_f_new = jnp.tanh(
                xf_ref[t] + jnp.dot(h_f.astype(jnp.bfloat16), whh_f,
                                    preferred_element_type=jnp.float32))
            h_b_new = jnp.tanh(
                xb_ref[tb] + jnp.dot(h_b.astype(jnp.bfloat16), whh_b,
                                     preferred_element_type=jnp.float32))
            if not last:
                # Stage per-step outputs back into the (consumed) f32 scratch;
                # flushed as one full-block bf16 store after the loop.
                xf_ref[t] = h_f_new
                xb_ref[tb] = h_b_new
            return (h_f_new, h_b_new)

        h_f, h_b = lax.fori_loop(0, Tc, step, (h_f_ref[...], h_b_ref[...]),
                                 unroll=unroll)
        h_f_ref[...] = h_f
        h_b_ref[...] = h_b

        if not last:
            y_f_ref[...] = xf_ref[...].astype(y_f_ref.dtype)
            y_b_ref[...] = xb_ref[...].astype(y_b_ref.dtype)

        @pl.when(c == pl.num_programs(0) - 1)
        def _finalize():
            h_sum = h_f + h_b
            if not first:
                h_sum = h_sum + hsum_in_ref[...]
            if last:
                logits_ref[...] = (
                    jnp.dot(h_sum, fc_w_ref[...],
                            preferred_element_type=jnp.float32)
                    + fc_b_ref[...]).astype(logits_ref.dtype)
            else:
                hsum_out_ref[...] = h_sum

    return kernel


# ---------------------------------------------------------------------------
# pallas_call wrapper for one layer
# ---------------------------------------------------------------------------

def _layer_call(x_inputs, layer, hsum, *, first, last, t_chunk,
                fc_w=None, fc_b=None):
    T, B = x_inputs[0].shape[0], x_inputs[0].shape[1]
    Hp = layer["whh_f"].shape[0]
    n_chunks = T // t_chunk
    assert n_chunks * t_chunk == T

    chunk_fwd = lambda c: (c, 0, 0)                    # noqa: E731
    chunk_rev = lambda c: (n_chunks - 1 - c, 0, 0)     # noqa: E731

    def whole(a):
        return pl.BlockSpec(a.shape, lambda c: (0,) * a.ndim)

    args, in_specs = [], []
    if first:
        (x,) = x_inputs
        Din = x.shape[2]
        args += [x, x]
        in_specs += [pl.BlockSpec((t_chunk, B, Din), chunk_fwd),
                     pl.BlockSpec((t_chunk, B, Din), chunk_rev)]
        w_in = [layer["wih_f"], layer["wih_b"]]
    else:
        y_f, y_b = x_inputs
        Din = Hp
        args += [y_f, y_b, y_f, y_b]
        in_specs += [pl.BlockSpec((t_chunk, B, Hp), chunk_fwd),
                     pl.BlockSpec((t_chunk, B, Hp), chunk_fwd),
                     pl.BlockSpec((t_chunk, B, Hp), chunk_rev),
                     pl.BlockSpec((t_chunk, B, Hp), chunk_rev)]
        w_in = [layer["wih_ff"], layer["wih_fb"], layer["wih_bf"], layer["wih_bb"]]

    consts = w_in + [layer["whh_f"], layer["whh_b"], layer["b_f"], layer["b_b"]]
    if not first:
        consts.append(hsum)
    if last:
        consts += [fc_w, fc_b]
    args += consts
    in_specs += [whole(a) for a in consts]

    io_aliases = {}
    Cp = fc_w.shape[1] if last else 0
    if last:
        out_shape = jax.ShapeDtypeStruct((B, Cp), jnp.float32)
        out_specs = pl.BlockSpec((B, Cp), lambda c: (0, 0))
    else:
        out_shape = (jax.ShapeDtypeStruct((T, B, Hp), jnp.bfloat16),
                     jax.ShapeDtypeStruct((T, B, Hp), jnp.bfloat16),
                     jax.ShapeDtypeStruct((B, Hp), jnp.float32))
        out_specs = (pl.BlockSpec((t_chunk, B, Hp), chunk_fwd),
                     pl.BlockSpec((t_chunk, B, Hp), chunk_rev),
                     pl.BlockSpec((B, Hp), lambda c: (0, 0)))
        if not first:
            io_aliases = {len(args) - 1: 2}   # hsum_in -> hsum_out (same HBM buffer)

    scratch_shapes = [
        pltpu.VMEM((B, Hp), jnp.float32),              # h_f carry
        pltpu.VMEM((B, Hp), jnp.float32),              # h_b carry
        pltpu.VMEM((t_chunk, B, Hp), jnp.float32),     # xf proj + fwd y staging
        pltpu.VMEM((t_chunk, B, Hp), jnp.float32),     # xb proj + bwd y staging
    ]

    # Rough VMEM budget (double-buffered chunked I/O + resident weights +
    # scratch) with 2x headroom, clamped to sane bounds.
    n_x = 2 if first else 4
    est = (n_x * 2 * t_chunk * B * Din * 2            # chunked x inputs (bf16, 2-buf)
           + n_x * Din * Hp * 2 + 2 * Hp * Hp * 2     # wih + whh (bf16)
           + 4 * Hp * 4                               # biases (f32)
           + 2 * B * Hp * 4                           # hsum in/out (f32)
           + 2 * t_chunk * B * Hp * 4                 # xf / xb scratch (f32)
           + 2 * B * Hp * 4)                          # h carries (f32)
    if last:
        est += Hp * Cp * 4 + Cp * 4 + B * Cp * 4
    else:
        est += 2 * 2 * t_chunk * B * Hp * 2           # y_f / y_b outputs (bf16, 2-buf)
    vmem_limit = int(min(max(2 * est + (2 << 20), 16 << 20), 100 << 20))

    flops = (n_x * 2 * T * B * Din * Hp               # hoisted input projections
             + 4 * T * B * Hp * Hp)                   # h @ Whh, both directions
    bytes_accessed = (n_x * T * B * Din * 2 + n_x * Din * Hp * 2
                      + 2 * Hp * Hp * 2 + 2 * B * Hp * 4)
    if last:
        flops += 2 * B * Hp * Cp
        bytes_accessed += Hp * Cp * 4 + B * Cp * 4
    else:
        bytes_accessed += 2 * T * B * Hp * 2
    cost = pl.CostEstimate(flops=int(flops), transcendentals=int(2 * T * B * Hp),
                           bytes_accessed=int(bytes_accessed))

    kernel = _make_layer_kernel(first=first, last=last, t_chunk=t_chunk,
                                unroll=min(t_chunk, 16))

    return pl.pallas_call(
        kernel,
        grid=(n_chunks,),
        out_shape=out_shape,
        in_specs=in_specs,
        out_specs=out_specs,
        scratch_shapes=scratch_shapes,
        input_output_aliases=io_aliases,
        compiler_params=pltpu.CompilerParams(
            dimension_semantics=("arbitrary",),
            vmem_limit_bytes=vmem_limit),
        cost_estimate=cost,
    )(*args)


# ---------------------------------------------------------------------------
# Forward pass
# ---------------------------------------------------------------------------

def rnn_forward(tokens, kparams, *, t_chunk_target=128):
    """Forward pass matching the PyTorch module (eval mode).

    tokens: (B, T) int32 token indices.
    returns: (B, n_class) float32 logits.
    """
    B, T = tokens.shape
    Bp = _round_up(max(B, 1), _SUBLANE)
    t_chunk = _pick_t_chunk(T, t_chunk_target)

    # Pad batch to a sublane multiple (token 0 is valid for pad rows; padded
    # rows are independent and sliced off at the end).
    tok_p = jnp.zeros((Bp, T), dtype=tokens.dtype).at[:B, :].set(tokens)

    # Time-major bf16 embedding gather: (T, Bp, Ep) directly, no activation
    # transpose pass.
    # TODO(synk): fuse the gather into layer 0 via PrefetchScalarGridSpec +
    #             pl.Element row gather on the token ids.
    x = jnp.take(kparams["embedding"], tok_p.T, axis=0)

    layers = kparams["layers"]
    n_layers = len(layers)
    inputs = (x,)
    hsum = None
    logits_p = None
    for li, layer in enumerate(layers):
        first = (li == 0)
        last = (li == n_layers - 1)
        res = _layer_call(inputs, layer, hsum, first=first, last=last,
                          t_chunk=t_chunk,
                          fc_w=kparams["fc_w_t"] if last else None,
                          fc_b=kparams["fc_b"] if last else None)
        if last:
            logits_p = res
        else:
            y_f, y_b, hsum = res
            inputs = (y_f, y_b)
    return logits_p[:B, :kparams["n_class"]]


# ---------------------------------------------------------------------------
# Parameter init (PyTorch layout) + padded / transposed / bf16 kernel params
# ---------------------------------------------------------------------------

def init_params(key, vocab_size, embedding_dim, hidden_dim, num_layers, n_class):
    """Synthetic parameters in PyTorch layout (deterministic)."""
    bound = 1.0 / float(hidden_dim) ** 0.5

    def uniform(k, shape):
        return jax.random.uniform(k, shape, jnp.float32, -bound, bound)

    n_keys = 1 + num_layers * 2 * 4 + 2
    keys = iter(jax.random.split(key, n_keys))

    embedding = jax.random.normal(next(keys), (vocab_size, embedding_dim),
                                  jnp.float32)

    layers = []
    for layer in range(num_layers):
        d_in = embedding_dim if layer == 0 else 2 * hidden_dim
        dirs = []
        for _direction in range(2):  # 0 = forward, 1 = reverse
            dirs.append(dict(
                w_ih=uniform(next(keys), (hidden_dim, d_in)),        # (H, D_in)
                w_hh=uniform(next(keys), (hidden_dim, hidden_dim)),  # (H, H)
                b_ih=uniform(next(keys), (hidden_dim,)),
                b_hh=uniform(next(keys), (hidden_dim,)),
            ))
        layers.append(tuple(dirs))

    fc_w = uniform(next(keys), (n_class, hidden_dim))   # PyTorch Linear: (C, H)
    fc_b = uniform(next(keys), (n_class,))

    return dict(embedding=embedding, layers=layers, fc_w=fc_w, fc_b=fc_b,
                hidden_dim=hidden_dim, embedding_dim=embedding_dim,
                n_class=n_class, num_layers=num_layers)


def prepare_kernel_params(params):
    """Transpose + zero-pad parameters to lane/sublane shapes; bf16 MXU operands."""
    H = params["hidden_dim"]
    E = params["embedding_dim"]
    C = params["n_class"]
    Hp = _round_up(H, _LANE)
    Ep = _round_up(E, _LANE)
    Cp = _round_up(C, _LANE)

    emb = params["embedding"]
    emb_p = jnp.zeros((emb.shape[0], Ep), jnp.float32).at[:, :E].set(emb)
    emb_p = emb_p.astype(jnp.bfloat16)

    def pad2(w, R, Cc):
        r, c = w.shape
        return jnp.zeros((R, Cc), jnp.float32).at[:r, :c].set(w)

    def pad_whh(w_hh):
        return pad2(w_hh.T, Hp, Hp).astype(jnp.bfloat16)

    def pad_bias(b_ih, b_hh):
        return jnp.zeros((1, Hp), jnp.float32).at[0, :H].set(b_ih + b_hh)

    klayers = []
    for li, (fwd, bwd) in enumerate(params["layers"]):
        entry = dict(
            whh_f=pad_whh(fwd["w_hh"]), whh_b=pad_whh(bwd["w_hh"]),
            b_f=pad_bias(fwd["b_ih"], fwd["b_hh"]),
            b_b=pad_bias(bwd["b_ih"], bwd["b_hh"]),
        )
        if li == 0:
            entry["wih_f"] = pad2(fwd["w_ih"].T, Ep, Hp).astype(jnp.bfloat16)
            entry["wih_b"] = pad2(bwd["w_ih"].T, Ep, Hp).astype(jnp.bfloat16)
        else:
            wf = fwd["w_ih"].T   # (2H, H): rows 0:H act on fwd y, H:2H on bwd y
            wb = bwd["w_ih"].T
            entry["wih_ff"] = pad2(wf[:H], Hp, Hp).astype(jnp.bfloat16)
            entry["wih_fb"] = pad2(wf[H:], Hp, Hp).astype(jnp.bfloat16)
            entry["wih_bf"] = pad2(wb[:H], Hp, Hp).astype(jnp.bfloat16)
            entry["wih_bb"] = pad2(wb[H:], Hp, Hp).astype(jnp.bfloat16)
        klayers.append(entry)

    fc_w_t = jnp.zeros((Hp, Cp), jnp.float32).at[:H, :C].set(params["fc_w"].T)
    fc_b = jnp.zeros((1, Cp), jnp.float32).at[0, :C].set(params["fc_b"])

    return dict(embedding=emb_p, layers=klayers, fc_w_t=fc_w_t, fc_b=fc_b,
                Hp=Hp, n_class=C)


# ---------------------------------------------------------------------------
# Pure-JAX reference (unpadded, f32, PyTorch semantics) for correctness check
# ---------------------------------------------------------------------------

def rnn_forward_ref(tokens, params):
    emb = jnp.take(params["embedding"], tokens, axis=0)       # (B, T, E)
    x = jnp.transpose(emb, (1, 0, 2)).astype(jnp.float32)     # (T, B, E)
    B = tokens.shape[0]
    H = params["hidden_dim"]
    h_sum = jnp.zeros((B, H), jnp.float32)

    def run_dir(seq, p):
        w_ih_t, w_hh_t = p["w_ih"].T, p["w_hh"].T
        b = p["b_ih"] + p["b_hh"]

        def step(h, x_t):
            h_new = jnp.tanh(x_t @ w_ih_t + h @ w_hh_t + b)
            return h_new, h_new

        h_last, ys = lax.scan(step, jnp.zeros((B, H), jnp.float32), seq)
        return ys, h_last

    for fwd, bwd in params["layers"]:
        y_f, h_f = run_dir(x, fwd)
        y_b_rev, h_b = run_dir(x[::-1], bwd)
        x = jnp.concatenate([y_f, y_b_rev[::-1]], axis=-1)
        h_sum = h_sum + h_f + h_b

    return h_sum @ params["fc_w"].T + params["fc_b"]


# ---------------------------------------------------------------------------

if __name__ == "__main__":
    vocab_size = 50
    embedding_dim = 16
    hidden_dim = 32
    num_layers = 3          # exercises first / middle(aliased hsum) / last+FC kernels
    n_class = 5
    batch = 2
    seq_len = 8

    root = jax.random.PRNGKey(0)
    k_params, k_tokens = jax.random.split(root)

    params = init_params(k_params, vocab_size, embedding_dim, hidden_dim,
                         num_layers, n_class)
    kparams = prepare_kernel_params(params)
    tokens = jax.random.randint(k_tokens, (batch, seq_len), 0, vocab_size,
                                jnp.int32)

    # t_chunk_target=4 -> 2 time chunks, exercising the cross-chunk h carry path.
    fwd = jax.jit(lambda toks: rnn_forward(toks, kparams, t_chunk_target=4))
    logits = jax.block_until_ready(fwd(tokens))
    ref = jax.block_until_ready(rnn_forward_ref(tokens, params))

    assert logits.shape == (batch, n_class)
    # bf16 MXU operands + bf16 inter-layer activations -> looser tolerance than
    # the previous all-f32 version (logits are O(1); observed error ~1e-2).
    assert jnp.allclose(logits, ref, rtol=5e-2, atol=5e-2), "mismatch vs reference"

    print("KERNEL_OK")
</pallas_src>

<mosaic_0001>
module attributes {stable_mosaic.version = 11 : i64} {
  func.func @kernel(%arg0: i32, %arg1: memref<4x8x128xbf16, #tpu.memory_space<vmem>>, %arg2: memref<4x8x128xbf16, #tpu.memory_space<vmem>>, %arg3: memref<128x128xbf16, #tpu.memory_space<vmem>>, %arg4: memref<128x128xbf16, #tpu.memory_space<vmem>>, %arg5: memref<128x128xbf16, #tpu.memory_space<vmem>>, %arg6: memref<128x128xbf16, #tpu.memory_space<vmem>>, %arg7: memref<1x128xf32, #tpu.memory_space<vmem>>, %arg8: memref<1x128xf32, #tpu.memory_space<vmem>>, %arg9: memref<4x8x128xbf16, #tpu.memory_space<vmem>>, %arg10: memref<4x8x128xbf16, #tpu.memory_space<vmem>>, %arg11: memref<8x128xf32, #tpu.memory_space<vmem>>, %arg12: memref<8x128xf32, #tpu.memory_space<vmem>>, %arg13: memref<8x128xf32, #tpu.memory_space<vmem>>, %arg14: memref<4x8x128xf32, #tpu.memory_space<vmem>>, %arg15: memref<4x8x128xf32, #tpu.memory_space<vmem>>) attributes {dimension_semantics = [#tpu.dimension_semantics<arbitrary>], iteration_bounds = array<i64: 2>, scalar_prefetch = 0 : i64, scratch_operands = 4 : i64, tpu.core_type = #tpu.core_type<tc>, window_params = [{transform_indices = @transform_0, window_bounds = array<i64: 4, 8, 128>}, {transform_indices = @transform_1, window_bounds = array<i64: 4, 8, 128>}, {pipeline_mode = #tpu.pipeline_mode<synchronous>, transform_indices = @transform_2, window_bounds = array<i64: 128, 128>}, {pipeline_mode = #tpu.pipeline_mode<synchronous>, transform_indices = @transform_3, window_bounds = array<i64: 128, 128>}, {pipeline_mode = #tpu.pipeline_mode<synchronous>, transform_indices = @transform_4, window_bounds = array<i64: 128, 128>}, {pipeline_mode = #tpu.pipeline_mode<synchronous>, transform_indices = @transform_5, window_bounds = array<i64: 128, 128>}, {pipeline_mode = #tpu.pipeline_mode<synchronous>, transform_indices = @transform_6, window_bounds = array<i64: 1, 128>}, {pipeline_mode = #tpu.pipeline_mode<synchronous>, transform_indices = @transform_7, window_bounds = array<i64: 1, 128>}, {transform_indices = @transform_8, window_bounds = array<i64: 4, 8, 128>}, {transform_indices = @transform_9, window_bounds = array<i64: 4, 8, 128>}, {pipeline_mode = #tpu.pipeline_mode<synchronous>, transform_indices = @transform_10, window_bounds = array<i64: 8, 128>}]} {
    %c0_i32 = arith.constant 0 : i32
    %0 = arith.cmpi eq, %arg0, %c0_i32 : i32
    %1 = arith.extui %0 : i1 to i32
    %c0_i32_0 = arith.constant 0 : i32
    %2 = arith.cmpi ne, %1, %c0_i32_0 : i32
    scf.if %2 {
      %cst_92 = arith.constant 0.000000e+00 : f32
      %128 = vector.broadcast %cst_92 : f32 to vector<8x128xf32>
      %c0_93 = arith.constant 0 : index
      %c0_94 = arith.constant 0 : index
      %129 = vector.load %arg12[%c0_93, %c0_94] : memref<8x128xf32, #tpu.memory_space<vmem>>, vector<8x128xf32>
      tpu.vector_store %arg12[%c0_93, %c0_94], %128 {strides = array<i32>} : memref<8x128xf32, #tpu.memory_space<vmem>>, vector<8x128xf32>,
      %cst_95 = arith.constant 0.000000e+00 : f32
      %130 = vector.broadcast %cst_95 : f32 to vector<8x128xf32>
      %c0_96 = arith.constant 0 : index
      %c0_97 = arith.constant 0 : index
      %131 = vector.load %arg13[%c0_96, %c0_97] : memref<8x128xf32, #tpu.memory_space<vmem>>, vector<8x128xf32>
      tpu.vector_store %arg13[%c0_96, %c0_97], %130 {strides = array<i32>} : memref<8x128xf32, #tpu.memory_space<vmem>>, vector<8x128xf32>,
    } else {
    }
    %c0 = arith.constant 0 : index
    %c0_1 = arith.constant 0 : index
    %c0_2 = arith.constant 0 : index
    %3 = vector.load %arg1[%c0, %c0_1, %c0_2] : memref<4x8x128xbf16, #tpu.memory_space<vmem>>, vector<4x8x128xbf16>
    %4 = vector.shape_cast %3 : vector<4x8x128xbf16> to vector<32x128xbf16>
    %c0_3 = arith.constant 0 : index
    %c0_4 = arith.constant 0 : index
    %5 = vector.load %arg3[%c0_3, %c0_4] : memref<128x128xbf16, #tpu.memory_space<vmem>>, vector<128x128xbf16>
    %cst = arith.constant dense<0.000000e+00> : vector<32x128xf32>
    %6 = tpu.matmul %4, %5, %cst {dimension_numbers = #tpu.dot_dimension_numbers<[1], [0], [0], [1], [0, 0, 1, 1], [], []>} : vector<32x128xbf16>, vector<128x128xbf16>, vector<32x128xf32> -> vector<32x128xf32>
    %c0_5 = arith.constant 0 : index
    %c0_6 = arith.constant 0 : index
    %7 = vector.load %arg7[%c0_5, %c0_6] : memref<1x128xf32, #tpu.memory_space<vmem>>, vector<1x128xf32>
    %8 = vector.broadcast %7 : vector<1x128xf32> to vector<32x128xf32>
    %9 = arith.addf %6, %8 : vector<32x128xf32>
    %10 = vector.shape_cast %9 : vector<32x128xf32> to vector<4x8x128xf32>
    %c0_7 = arith.constant 0 : index
    %c0_8 = arith.constant 0 : index
    %c0_9 = arith.constant 0 : index
    %11 = vector.load %arg14[%c0_7, %c0_8, %c0_9] : memref<4x8x128xf32, #tpu.memory_space<vmem>>, vector<4x8x128xf32>
    tpu.vector_store %arg14[%c0_7, %c0_8, %c0_9], %10 {strides = array<i32>} : memref<4x8x128xf32, #tpu.memory_space<vmem>>, vector<4x8x128xf32>,
    %c0_10 = arith.constant 0 : index
    %c0_11 = arith.constant 0 : index
    %c0_12 = arith.constant 0 : index
    %12 = vector.load %arg2[%c0_10, %c0_11, %c0_12] : memref<4x8x128xbf16, #tpu.memory_space<vmem>>, vector<4x8x128xbf16>
    %13 = vector.shape_cast %12 : vector<4x8x128xbf16> to vector<32x128xbf16>
    %c0_13 = arith.constant 0 : index
    %c0_14 = arith.constant 0 : index
    %14 = vector.load %arg4[%c0_13, %c0_14] : memref<128x128xbf16, #tpu.memory_space<vmem>>, vector<128x128xbf16>
    %cst_15 = arith.constant dense<0.000000e+00> : vector<32x128xf32>
    %15 = tpu.matmul %13, %14, %cst_15 {dimension_numbers = #tpu.dot_dimension_numbers<[1], [0], [0], [1], [0, 0, 1, 1], [], []>} : vector<32x128xbf16>, vector<128x128xbf16>, vector<32x128xf32> -> vector<32x128xf32>
    %c0_16 = arith.constant 0 : index
    %c0_17 = arith.constant 0 : index
    %16 = vector.load %arg8[%c0_16, %c0_17] : memref<1x128xf32, #tpu.memory_space<vmem>>, vector<1x128xf32>
    %17 = vector.broadcast %16 : vector<1x128xf32> to vector<32x128xf32>
    %18 = arith.addf %15, %17 : vector<32x128xf32>
    %19 = vector.shape_cast %18 : vector<32x128xf32> to vector<4x8x128xf32>
    %c0_18 = arith.constant 0 : index
    %c0_19 = arith.constant 0 : index
    %c0_20 = arith.constant 0 : index
    %20 = vector.load %arg15[%c0_18, %c0_19, %c0_20] : memref<4x8x128xf32, #tpu.memory_space<vmem>>, vector<4x8x128xf32>
    tpu.vector_store %arg15[%c0_18, %c0_19, %c0_20], %19 {strides = array<i32>} : memref<4x8x128xf32, #tpu.memory_space<vmem>>, vector<4x8x128xf32>,
    %c0_21 = arith.constant 0 : index
    %c0_22 = arith.constant 0 : index
    %21 = vector.load %arg5[%c0_21, %c0_22] : memref<128x128xbf16, #tpu.memory_space<vmem>>, vector<128x128xbf16>
    %c0_23 = arith.constant 0 : index
    %c0_24 = arith.constant 0 : index
    %22 = vector.load %arg6[%c0_23, %c0_24] : memref<128x128xbf16, #tpu.memory_space<vmem>>, vector<128x128xbf16>
    %c0_25 = arith.constant 0 : index
    %c0_26 = arith.constant 0 : index
    %23 = vector.load %arg12[%c0_25, %c0_26] : memref<8x128xf32, #tpu.memory_space<vmem>>, vector<8x128xf32>
    %c0_27 = arith.constant 0 : index
    %c0_28 = arith.constant 0 : index
    %24 = vector.load %arg13[%c0_27, %c0_28] : memref<8x128xf32, #tpu.memory_space<vmem>>, vector<8x128xf32>
    %c0_i32_29 = arith.constant 0 : i32
    %c3_i32 = arith.constant 3 : i32
    %25 = arith.subi %c3_i32, %c0_i32_29 : i32
    %26 = arith.index_cast %c0_i32_29 : i32 to index
    %c0_30 = arith.constant 0 : index
    %c0_31 = arith.constant 0 : index
    %27 = vector.load %arg14[%26, %c0_30, %c0_31] : memref<4x8x128xf32, #tpu.memory_space<vmem>>, vector<1x8x128xf32>
    %28 = vector.shape_cast %27 : vector<1x8x128xf32> to vector<8x128xf32>
    %29 = arith.truncf %23 : vector<8x128xf32> to vector<8x128xbf16>
    %cst_32 = arith.constant dense<0.000000e+00> : vector<8x128xf32>
    %30 = tpu.matmul %29, %21, %cst_32 {dimension_numbers = #tpu.dot_dimension_numbers<[1], [0], [0], [1], [0, 0, 1, 1], [], []>} : vector<8x128xbf16>, vector<128x128xbf16>, vector<8x128xf32> -> vector<8x128xf32>
    %31 = arith.addf %28, %30 : vector<8x128xf32>
    %32 = math.tanh %31 : vector<8x128xf32>
    %33 = arith.index_cast %25 : i32 to index
    %c0_33 = arith.constant 0 : index
    %c0_34 = arith.constant 0 : index
    %34 = vector.load %arg15[%33, %c0_33, %c0_34] : memref<4x8x128xf32, #tpu.memory_space<vmem>>, vector<1x8x128xf32>
    %35 = vector.shape_cast %34 : vector<1x8x128xf32> to vector<8x128xf32>
    %36 = arith.truncf %24 : vector<8x128xf32> to vector<8x128xbf16>
    %cst_35 = arith.constant dense<0.000000e+00> : vector<8x128xf32>
    %37 = tpu.matmul %36, %22, %cst_35 {dimension_numbers = #tpu.dot_dimension_numbers<[1], [0], [0], [1], [0, 0, 1, 1], [], []>} : vector<8x128xbf16>, vector<128x128xbf16>, vector<8x128xf32> -> vector<8x128xf32>
    %38 = arith.addf %35, %37 : vector<8x128xf32>
    %39 = math.tanh %38 : vector<8x128xf32>
    %40 = arith.index_cast %c0_i32_29 : i32 to index
    %c0_36 = arith.constant 0 : index
    %c0_37 = arith.constant 0 : index
    %41 = vector.load %arg14[%40, %c0_36, %c0_37] : memref<4x8x128xf32, #tpu.memory_space<vmem>>, vector<1x8x128xf32>
    %42 = vector.shape_cast %41 : vector<1x8x128xf32> to vector<8x128xf32>
    %43 = vector.shape_cast %32 : vector<8x128xf32> to vector<1x8x128xf32>
    tpu.vector_store %arg14[%40, %c0_36, %c0_37], %43 {strides = array<i32>} : memref<4x8x128xf32, #tpu.memory_space<vmem>>, vector<1x8x128xf32>,
    %44 = arith.index_cast %25 : i32 to index
    %c0_38 = arith.constant 0 : index
    %c0_39 = arith.constant 0 : index
    %45 = vector.load %arg15[%44, %c0_38, %c0_39] : memref<4x8x128xf32, #tpu.memory_space<vmem>>, vector<1x8x128xf32>
    %46 = vector.shape_cast %45 : vector<1x8x128xf32> to vector<8x128xf32>
    %47 = vector.shape_cast %39 : vector<8x128xf32> to vector<1x8x128xf32>
    tpu.vector_store %arg15[%44, %c0_38, %c0_39], %47 {strides = array<i32>} : memref<4x8x128xf32, #tpu.memory_space<vmem>>, vector<1x8x128xf32>,
    %c1_i32 = arith.constant 1 : i32
    %c3_i32_40 = arith.constant 3 : i32
    %48 = arith.subi %c3_i32_40, %c1_i32 : i32
    %49 = arith.index_cast %c1_i32 : i32 to index
    %c0_41 = arith.constant 0 : index
    %c0_42 = arith.constant 0 : index
    %50 = vector.load %arg14[%49, %c0_41, %c0_42] : memref<4x8x128xf32, #tpu.memory_space<vmem>>, vector<1x8x128xf32>
    %51 = vector.shape_cast %50 : vector<1x8x128xf32> to vector<8x128xf32>
    %52 = arith.truncf %32 : vector<8x128xf32> to vector<8x128xbf16>
    %cst_43 = arith.constant dense<0.000000e+00> : vector<8x128xf32>
    %53 = tpu.matmul %52, %21, %cst_43 {dimension_numbers = #tpu.dot_dimension_numbers<[1], [0], [0], [1], [0, 0, 1, 1], [], []>} : vector<8x128xbf16>, vector<128x128xbf16>, vector<8x128xf32> -> vector<8x128xf32>
    %54 = arith.addf %51, %53 : vector<8x128xf32>
    %55 = math.tanh %54 : vector<8x128xf32>
    %56 = arith.index_cast %48 : i32 to index
    %c0_44 = arith.constant 0 : index
    %c0_45 = arith.constant 0 : index
    %57 = vector.load %arg15[%56, %c0_44, %c0_45] : memref<4x8x128xf32, #tpu.memory_space<vmem>>, vector<1x8x128xf32>
    %58 = vector.shape_cast %57 : vector<1x8x128xf32> to vector<8x128xf32>
    %59 = arith.truncf %39 : vector<8x128xf32> to vector<8x128xbf16>
    %cst_46 = arith.constant dense<0.000000e+00> : vector<8x128xf32>
    %60 = tpu.matmul %59, %22, %cst_46 {dimension_numbers = #tpu.dot_dimension_numbers<[1], [0], [0], [1], [0, 0, 1, 1], [], []>} : vector<8x128xbf16>, vector<128x128xbf16>, vector<8x128xf32> -> vector<8x128xf32>
    %61 = arith.addf %58, %60 : vector<8x128xf32>
    %62 = math.tanh %61 : vector<8x128xf32>
    %63 = arith.index_cast %c1_i32 : i32 to index
    %c0_47 = arith.constant 0 : index
    %c0_48 = arith.constant 0 : index
    %64 = vector.load %arg14[%63, %c0_47, %c0_48] : memref<4x8x128xf32, #tpu.memory_space<vmem>>, vector<1x8x128xf32>
    %65 = vector.shape_cast %64 : vector<1x8x128xf32> to vector<8x128xf32>
    %66 = vector.shape_cast %55 : vector<8x128xf32> to vector<1x8x128xf32>
    tpu.vector_store %arg14[%63, %c0_47, %c0_48], %66 {strides = array<i32>} : memref<4x8x128xf32, #tpu.memory_space<vmem>>, vector<1x8x128xf32>,
    %67 = arith.index_cast %48 : i32 to index
    %c0_49 = arith.constant 0 : index
    %c0_50 = arith.constant 0 : index
    %68 = vector.load %arg15[%67, %c0_49, %c0_50] : memref<4x8x128xf32, #tpu.memory_space<vmem>>, vector<1x8x128xf32>
    %69 = vector.shape_cast %68 : vector<1x8x128xf32> to vector<8x128xf32>
    %70 = vector.shape_cast %62 : vector<8x128xf32> to vector<1x8x128xf32>
    tpu.vector_store %arg15[%67, %c0_49, %c0_50], %70 {strides = array<i32>} : memref<4x8x128xf32, #tpu.memory_space<vmem>>, vector<1x8x128xf32>,
    %c2_i32 = arith.constant 2 : i32
    %c3_i32_51 = arith.constant 3 : i32
    %71 = arith.subi %c3_i32_51, %c2_i32 : i32
    %72 = arith.index_cast %c2_i32 : i32 to index
    %c0_52 = arith.constant 0 : index
    %c0_53 = arith.constant 0 : index
    %73 = vector.load %arg14[%72, %c0_52, %c0_53] : memref<4x8x128xf32, #tpu.memory_space<vmem>>, vector<1x8x128xf32>
    %74 = vector.shape_cast %73 : vector<1x8x128xf32> to vector<8x128xf32>
    %75 = arith.truncf %55 : vector<8x128xf32> to vector<8x128xbf16>
    %cst_54 = arith.constant dense<0.000000e+00> : vector<8x128xf32>
    %76 = tpu.matmul %75, %21, %cst_54 {dimension_numbers = #tpu.dot_dimension_numbers<[1], [0], [0], [1], [0, 0, 1, 1], [], []>} : vector<8x128xbf16>, vector<128x128xbf16>, vector<8x128xf32> -> vector<8x128xf32>
    %77 = arith.addf %74, %76 : vector<8x128xf32>
    %78 = math.tanh %77 : vector<8x128xf32>
    %79 = arith.index_cast %71 : i32 to index
    %c0_55 = arith.constant 0 : index
    %c0_56 = arith.constant 0 : index
    %80 = vector.load %arg15[%79, %c0_55, %c0_56] : memref<4x8x128xf32, #tpu.memory_space<vmem>>, vector<1x8x128xf32>
    %81 = vector.shape_cast %80 : vector<1x8x128xf32> to vector<8x128xf32>
    %82 = arith.truncf %62 : vector<8x128xf32> to vector<8x128xbf16>
    %cst_57 = arith.constant dense<0.000000e+00> : vector<8x128xf32>
    %83 = tpu.matmul %82, %22, %cst_57 {dimension_numbers = #tpu.dot_dimension_numbers<[1], [0], [0], [1], [0, 0, 1, 1], [], []>} : vector<8x128xbf16>, vector<128x128xbf16>, vector<8x128xf32> -> vector<8x128xf32>
    %84 = arith.addf %81, %83 : vector<8x128xf32>
    %85 = math.tanh %84 : vector<8x128xf32>
    %86 = arith.index_cast %c2_i32 : i32 to index
    %c0_58 = arith.constant 0 : index
    %c0_59 = arith.constant 0 : index
    %87 = vector.load %arg14[%86, %c0_58, %c0_59] : memref<4x8x128xf32, #tpu.memory_space<vmem>>, vector<1x8x128xf32>
    %88 = vector.shape_cast %87 : vector<1x8x128xf32> to vector<8x128xf32>
    %89 = vector.shape_cast %78 : vector<8x128xf32> to vector<1x8x128xf32>
    tpu.vector_store %arg14[%86, %c0_58, %c0_59], %89 {strides = array<i32>} : memref<4x8x128xf32, #tpu.memory_space<vmem>>, vector<1x8x128xf32>,
    %90 = arith.index_cast %71 : i32 to index
    %c0_60 = arith.constant 0 : index
    %c0_61 = arith.constant 0 : index
    %91 = vector.load %arg15[%90, %c0_60, %c0_61] : memref<4x8x128xf32, #tpu.memory_space<vmem>>, vector<1x8x128xf32>
    %92 = vector.shape_cast %91 : vector<1x8x128xf32> to vector<8x128xf32>
    %93 = vector.shape_cast %85 : vector<8x128xf32> to vector<1x8x128xf32>
    tpu.vector_store %arg15[%90, %c0_60, %c0_61], %93 {strides = array<i32>} : memref<4x8x128xf32, #tpu.memory_space<vmem>>, vector<1x8x128xf32>,
    %c3_i32_62 = arith.constant 3 : i32
    %c3_i32_63 = arith.constant 3 : i32
    %94 = arith.subi %c3_i32_63, %c3_i32_62 : i32
    %95 = arith.index_cast %c3_i32_62 : i32 to index
    %c0_64 = arith.constant 0 : index
    %c0_65 = arith.constant 0 : index
    %96 = vector.load %arg14[%95, %c0_64, %c0_65] : memref<4x8x128xf32, #tpu.memory_space<vmem>>, vector<1x8x128xf32>
    %97 = vector.shape_cast %96 : vector<1x8x128xf32> to vector<8x128xf32>
    %98 = arith.truncf %78 : vector<8x128xf32> to vector<8x128xbf16>
    %cst_66 = arith.constant dense<0.000000e+00> : vector<8x128xf32>
    %99 = tpu.matmul %98, %21, %cst_66 {dimension_numbers = #tpu.dot_dimension_numbers<[1], [0], [0], [1], [0, 0, 1, 1], [], []>} : vector<8x128xbf16>, vector<128x128xbf16>, vector<8x128xf32> -> vector<8x128xf32>
    %100 = arith.addf %97, %99 : vector<8x128xf32>
    %101 = math.tanh %100 : vector<8x128xf32>
    %102 = arith.index_cast %94 : i32 to index
    %c0_67 = arith.constant 0 : index
    %c0_68 = arith.constant 0 : index
    %103 = vector.load %arg15[%102, %c0_67, %c0_68] : memref<4x8x128xf32, #tpu.memory_space<vmem>>, vector<1x8x128xf32>
    %104 = vector.shape_cast %103 : vector<1x8x128xf32> to vector<8x128xf32>
    %105 = arith.truncf %85 : vector<8x128xf32> to vector<8x128xbf16>
    %cst_69 = arith.constant dense<0.000000e+00> : vector<8x128xf32>
    %106 = tpu.matmul %105, %22, %cst_69 {dimension_numbers = #tpu.dot_dimension_numbers<[1], [0], [0], [1], [0, 0, 1, 1], [], []>} : vector<8x128xbf16>, vector<128x128xbf16>, vector<8x128xf32> -> vector<8x128xf32>
    %107 = arith.addf %104, %106 : vector<8x128xf32>
    %108 = math.tanh %107 : vector<8x128xf32>
    %109 = arith.index_cast %c3_i32_62 : i32 to index
    %c0_70 = arith.constant 0 : index
    %c0_71 = arith.constant 0 : index
    %110 = vector.load %arg14[%109, %c0_70, %c0_71] : memref<4x8x128xf32, #tpu.memory_space<vmem>>, vector<1x8x128xf32>
    %111 = vector.shape_cast %110 : vector<1x8x128xf32> to vector<8x128xf32>
    %112 = vector.shape_cast %101 : vector<8x128xf32> to vector<1x8x128xf32>
    tpu.vector_store %arg14[%109, %c0_70, %c0_71], %112 {strides = array<i32>} : memref<4x8x128xf32, #tpu.memory_space<vmem>>, vector<1x8x128xf32>,
    %113 = arith.index_cast %94 : i32 to index
    %c0_72 = arith.constant 0 : index
    %c0_73 = arith.constant 0 : index
    %114 = vector.load %arg15[%113, %c0_72, %c0_73] : memref<4x8x128xf32, #tpu.memory_space<vmem>>, vector<1x8x128xf32>
    %115 = vector.shape_cast %114 : vector<1x8x128xf32> to vector<8x128xf32>
    %116 = vector.shape_cast %108 : vector<8x128xf32> to vector<1x8x128xf32>
    tpu.vector_store %arg15[%113, %c0_72, %c0_73], %116 {strides = array<i32>} : memref<4x8x128xf32, #tpu.memory_space<vmem>>, vector<1x8x128xf32>,
    %c4_i32 = arith.constant 4 : i32
    %c0_74 = arith.constant 0 : index
    %c0_75 = arith.constant 0 : index
    %117 = vector.load %arg12[%c0_74, %c0_75] : memref<8x128xf32, #tpu.memory_space<vmem>>, vector<8x128xf32>
    tpu.vector_store %arg12[%c0_74, %c0_75], %101 {strides = array<i32>} : memref<8x128xf32, #tpu.memory_space<vmem>>, vector<8x128xf32>,
    %c0_76 = arith.constant 0 : index
    %c0_77 = arith.constant 0 : index
    %118 = vector.load %arg13[%c0_76, %c0_77] : memref<8x128xf32, #tpu.memory_space<vmem>>, vector<8x128xf32>
    tpu.vector_store %arg13[%c0_76, %c0_77], %108 {strides = array<i32>} : memref<8x128xf32, #tpu.memory_space<vmem>>, vector<8x128xf32>,
    %c0_78 = arith.constant 0 : index
    %c0_79 = arith.constant 0 : index
    %c0_80 = arith.constant 0 : index
    %119 = vector.load %arg14[%c0_78, %c0_79, %c0_80] : memref<4x8x128xf32, #tpu.memory_space<vmem>>, vector<4x8x128xf32>
    %120 = arith.truncf %119 : vector<4x8x128xf32> to vector<4x8x128xbf16>
    %c0_81 = arith.constant 0 : index
    %c0_82 = arith.constant 0 : index
    %c0_83 = arith.constant 0 : index
    %121 = vector.load %arg9[%c0_81, %c0_82, %c0_83] : memref<4x8x128xbf16, #tpu.memory_space<vmem>>, vector<4x8x128xbf16>
    tpu.vector_store %arg9[%c0_81, %c0_82, %c0_83], %120 {strides = array<i32>} : memref<4x8x128xbf16, #tpu.memory_space<vmem>>, vector<4x8x128xbf16>,
    %c0_84 = arith.constant 0 : index
    %c0_85 = arith.constant 0 : index
    %c0_86 = arith.constant 0 : index
    %122 = vector.load %arg15[%c0_84, %c0_85, %c0_86] : memref<4x8x128xf32, #tpu.memory_space<vmem>>, vector<4x8x128xf32>
    %123 = arith.truncf %122 : vector<4x8x128xf32> to vector<4x8x128xbf16>
    %c0_87 = arith.constant 0 : index
    %c0_88 = arith.constant 0 : index
    %c0_89 = arith.constant 0 : index
    %124 = vector.load %arg10[%c0_87, %c0_88, %c0_89] : memref<4x8x128xbf16, #tpu.memory_space<vmem>>, vector<4x8x128xbf16>
    tpu.vector_store %arg10[%c0_87, %c0_88, %c0_89], %123 {strides = array<i32>} : memref<4x8x128xbf16, #tpu.memory_space<vmem>>, vector<4x8x128xbf16>,
    %c1_i32_90 = arith.constant 1 : i32
    %125 = arith.cmpi eq, %arg0, %c1_i32_90 : i32
    %126 = arith.extui %125 : i1 to i32
    %c0_i32_91 = arith.constant 0 : i32
    %127 = arith.cmpi ne, %126, %c0_i32_91 : i32
    scf.if %127 {
      %128 = arith.addf %101, %108 : vector<8x128xf32>
      %c0_92 = arith.constant 0 : index
      %c0_93 = arith.constant 0 : index
      %129 = vector.load %arg11[%c0_92, %c0_93] : memref<8x128xf32, #tpu.memory_space<vmem>>, vector<8x128xf32>
      tpu.vector_store %arg11[%c0_92, %c0_93], %128 {strides = array<i32>} : memref<8x128xf32, #tpu.memory_space<vmem>>, vector<8x128xf32>,
    } else {
    }
    return
  }
  func.func @transform_0(%arg0: i32) -> (i32, i32, i32) {
    %c0_i32 = arith.constant 0 : i32
    %c0_i32_0 = arith.constant 0 : i32
    %c0_i32_1 = arith.constant 0 : i32
    return %arg0, %c0_i32, %c0_i32_0 : i32, i32, i32
  }
  func.func @transform_1(%arg0: i32) -> (i32, i32, i32) {
    %c1_i32 = arith.constant 1 : i32
    %0 = arith.subi %c1_i32, %arg0 : i32
    %c0_i32 = arith.constant 0 : i32
    %c0_i32_0 = arith.constant 0 : i32
    %c0_i32_1 = arith.constant 0 : i32
    return %0, %c0_i32, %c0_i32_0 : i32, i32, i32
  }
  func.func @transform_2(%arg0: i32) -> (i32, i32) {
    %c0_i32 = arith.constant 0 : i32
    %c0_i32_0 = arith.constant 0 : i32
    %c0_i32_1 = arith.constant 0 : i32
    return %c0_i32, %c0_i32_0 : i32, i32
  }
  func.func @transform_3(%arg0: i32) -> (i32, i32) {
    %c0_i32 = arith.constant 0 : i32
    %c0_i32_0 = arith.constant 0 : i32
    %c0_i32_1 = arith.constant 0 : i32
    return %c0_i32, %c0_i32_0 : i32, i32
  }
  func.func @transform_4(%arg0: i32) -> (i32, i32) {
    %c0_i32 = arith.constant 0 : i32
    %c0_i32_0 = arith.constant 0 : i32
    %c0_i32_1 = arith.constant 0 : i32
    return %c0_i32, %c0_i32_0 : i32, i32
  }
  func.func @transform_5(%arg0: i32) -> (i32, i32) {
    %c0_i32 = arith.constant 0 : i32
    %c0_i32_0 = arith.constant 0 : i32
    %c0_i32_1 = arith.constant 0 : i32
    return %c0_i32, %c0_i32_0 : i32, i32
  }
  func.func @transform_6(%arg0: i32) -> (i32, i32) {
    %c0_i32 = arith.constant 0 : i32
    %c0_i32_0 = arith.constant 0 : i32
    %c0_i32_1 = arith.constant 0 : i32
    return %c0_i32, %c0_i32_0 : i32, i32
  }
  func.func @transform_7(%arg0: i32) -> (i32, i32) {
    %c0_i32 = arith.constant 0 : i32
    %c0_i32_0 = arith.constant 0 : i32
    %c0_i32_1 = arith.constant 0 : i32
    return %c0_i32, %c0_i32_0 : i32, i32
  }
  func.func @transform_8(%arg0: i32) -> (i32, i32, i32) {
    %c0_i32 = arith.constant 0 : i32
    %c0_i32_0 = arith.constant 0 : i32
    %c0_i32_1 = arith.constant 0 : i32
    return %arg0, %c0_i32, %c0_i32_0 : i32, i32, i32
  }
  func.func @transform_9(%arg0: i32) -> (i32, i32, i32) {
    %c1_i32 = arith.constant 1 : i32
    %0 = arith.subi %c1_i32, %arg0 : i32
    %c0_i32 = arith.constant 0 : i32
    %c0_i32_0 = arith.constant 0 : i32
    %c0_i32_1 = arith.constant 0 : i32
    return %0, %c0_i32, %c0_i32_0 : i32, i32, i32
  }
  func.func @transform_10(%arg0: i32) -> (i32, i32) {
    %c0_i32 = arith.constant 0 : i32
    %c0_i32_0 = arith.constant 0 : i32
    %c0_i32_1 = arith.constant 0 : i32
    return %c0_i32, %c0_i32_0 : i32, i32
  }
}

module attributes {stable_mosaic.version = 11 : i64} {
  func.func @kernel(%arg0: i32, %arg1: memref<4x8x128xbf16, #tpu.memory_space<vmem>>, %arg2: memref<4x8x128xbf16, #tpu.memory_space<vmem>>, %arg3: memref<4x8x128xbf16, #tpu.memory_space<vmem>>, %arg4: memref<4x8x128xbf16, #tpu.memory_space<vmem>>, %arg5: memref<128x128xbf16, #tpu.memory_space<vmem>>, %arg6: memref<128x128xbf16, #tpu.memory_space<vmem>>, %arg7: memref<128x128xbf16, #tpu.memory_space<vmem>>, %arg8: memref<128x128xbf16, #tpu.memory_space<vmem>>, %arg9: memref<128x128xbf16, #tpu.memory_space<vmem>>, %arg10: memref<128x128xbf16, #tpu.memory_space<vmem>>, %arg11: memref<1x128xf32, #tpu.memory_space<vmem>>, %arg12: memref<1x128xf32, #tpu.memory_space<vmem>>, %arg13: memref<8x128xf32, #tpu.memory_space<vmem>>, %arg14: memref<4x8x128xbf16, #tpu.memory_space<vmem>>, %arg15: memref<4x8x128xbf16, #tpu.memory_space<vmem>>, %arg16: memref<8x128xf32, #tpu.memory_space<vmem>>, %arg17: memref<8x128xf32, #tpu.memory_space<vmem>>, %arg18: memref<8x128xf32, #tpu.memory_space<vmem>>, %arg19: memref<4x8x128xf32, #tpu.memory_space<vmem>>, %arg20: memref<4x8x128xf32, #tpu.memory_space<vmem>>) attributes {dimension_semantics = [#tpu.dimension_semantics<arbitrary>], iteration_bounds = array<i64: 2>, scalar_prefetch = 0 : i64, scratch_operands = 4 : i64, tpu.core_type = #tpu.core_type<tc>, window_params = [{transform_indices = @transform_0, window_bounds = array<i64: 4, 8, 128>}, {transform_indices = @transform_1, window_bounds = array<i64: 4, 8, 128>}, {transform_indices = @transform_2, window_bounds = array<i64: 4, 8, 128>}, {transform_indices = @transform_3, window_bounds = array<i64: 4, 8, 128>}, {pipeline_mode = #tpu.pipeline_mode<synchronous>, transform_indices = @transform_4, window_bounds = array<i64: 128, 128>}, {pipeline_mode = #tpu.pipeline_mode<synchronous>, transform_indices = @transform_5, window_bounds = array<i64: 128, 128>}, {pipeline_mode = #tpu.pipeline_mode<synchronous>, transform_indices = @transform_6, window_bounds = array<i64: 128, 128>}, {pipeline_mode = #tpu.pipeline_mode<synchronous>, transform_indices = @transform_7, window_bounds = array<i64: 128, 128>}, {pipeline_mode = #tpu.pipeline_mode<synchronous>, transform_indices = @transform_8, window_bounds = array<i64: 128, 128>}, {pipeline_mode = #tpu.pipeline_mode<synchronous>, transform_indices = @transform_9, window_bounds = array<i64: 128, 128>}, {pipeline_mode = #tpu.pipeline_mode<synchronous>, transform_indices = @transform_10, window_bounds = array<i64: 1, 128>}, {pipeline_mode = #tpu.pipeline_mode<synchronous>, transform_indices = @transform_11, window_bounds = array<i64: 1, 128>}, {pipeline_mode = #tpu.pipeline_mode<synchronous>, transform_indices = @transform_12, window_bounds = array<i64: 8, 128>}, {transform_indices = @transform_13, window_bounds = array<i64: 4, 8, 128>}, {transform_indices = @transform_14, window_bounds = array<i64: 4, 8, 128>}, {pipeline_mode = #tpu.pipeline_mode<synchronous>, transform_indices = @transform_15, window_bounds = array<i64: 8, 128>}]} {
    %c0_i32 = arith.constant 0 : i32
    %0 = arith.cmpi eq, %arg0, %c0_i32 : i32
    %1 = arith.extui %0 : i1 to i32
    %c0_i32_0 = arith.constant 0 : i32
    %2 = arith.cmpi ne, %1, %c0_i32_0 : i32
    scf.if %2 {
      %cst_104 = arith.constant 0.000000e+00 : f32
      %138 = vector.broadcast %cst_104 : f32 to vector<8x128xf32>
      %c0_105 = arith.constant 0 : index
      %c0_106 = arith.constant 0 : index
      %139 = vector.load %arg17[%c0_105, %c0_106] : memref<8x128xf32, #tpu.memory_space<vmem>>, vector<8x128xf32>
      tpu.vector_store %arg17[%c0_105, %c0_106], %138 {strides = array<i32>} : memref<8x128xf32, #tpu.memory_space<vmem>>, vector<8x128xf32>,
      %cst_107 = arith.constant 0.000000e+00 : f32
      %140 = vector.broadcast %cst_107 : f32 to vector<8x128xf32>
      %c0_108 = arith.constant 0 : index
      %c0_109 = arith.constant 0 : index
      %141 = vector.load %arg18[%c0_108, %c0_109] : memref<8x128xf32, #tpu.memory_space<vmem>>, vector<8x128xf32>
      tpu.vector_store %arg18[%c0_108, %c0_109], %140 {strides = array<i32>} : memref<8x128xf32, #tpu.memory_space<vmem>>, vector<8x128xf32>,
    } else {
    }
    %c0 = arith.constant 0 : index
    %c0_1 = arith.constant 0 : index
    %c0_2 = arith.constant 0 : index
    %3 = vector.load %arg1[%c0, %c0_1, %c0_2] : memref<4x8x128xbf16, #tpu.memory_space<vmem>>, vector<4x8x128xbf16>
    %4 = vector.shape_cast %3 : vector<4x8x128xbf16> to vector<32x128xbf16>
    %c0_3 = arith.constant 0 : index
    %c0_4 = arith.constant 0 : index
    %5 = vector.load %arg5[%c0_3, %c0_4] : memref<128x128xbf16, #tpu.memory_space<vmem>>, vector<128x128xbf16>
    %cst = arith.constant dense<0.000000e+00> : vector<32x128xf32>
    %6 = tpu.matmul %4, %5, %cst {dimension_numbers = #tpu.dot_dimension_numbers<[1], [0], [0], [1], [0, 0, 1, 1], [], []>} : vector<32x128xbf16>, vector<128x128xbf16>, vector<32x128xf32> -> vector<32x128xf32>
    %c0_5 = arith.constant 0 : index
    %c0_6 = arith.constant 0 : index
    %c0_7 = arith.constant 0 : index
    %7 = vector.load %arg2[%c0_5, %c0_6, %c0_7] : memref<4x8x128xbf16, #tpu.memory_space<vmem>>, vector<4x8x128xbf16>
    %8 = vector.shape_cast %7 : vector<4x8x128xbf16> to vector<32x128xbf16>
    %c0_8 = arith.constant 0 : index
    %c0_9 = arith.constant 0 : index
    %9 = vector.load %arg6[%c0_8, %c0_9] : memref<128x128xbf16, #tpu.memory_space<vmem>>, vector<128x128xbf16>
    %cst_10 = arith.constant dense<0.000000e+00> : vector<32x128xf32>
    %10 = tpu.matmul %8, %9, %cst_10 {dimension_numbers = #tpu.dot_dimension_numbers<[1], [0], [0], [1], [0, 0, 1, 1], [], []>} : vector<32x128xbf16>, vector<128x128xbf16>, vector<32x128xf32> -> vector<32x128xf32>
    %11 = arith.addf %6, %10 : vector<32x128xf32>
    %c0_11 = arith.constant 0 : index
    %c0_12 = arith.constant 0 : index
    %12 = vector.load %arg11[%c0_11, %c0_12] : memref<1x128xf32, #tpu.memory_space<vmem>>, vector<1x128xf32>
    %13 = vector.broadcast %12 : vector<1x128xf32> to vector<32x128xf32>
    %14 = arith.addf %11, %13 : vector<32x128xf32>
    %15 = vector.shape_cast %14 : vector<32x128xf32> to vector<4x8x128xf32>
    %c0_13 = arith.constant 0 : index
    %c0_14 = arith.constant 0 : index
    %c0_15 = arith.constant 0 : index
    %16 = vector.load %arg19[%c0_13, %c0_14, %c0_15] : memref<4x8x128xf32, #tpu.memory_space<vmem>>, vector<4x8x128xf32>
    tpu.vector_store %arg19[%c0_13, %c0_14, %c0_15], %15 {strides = array<i32>} : memref<4x8x128xf32, #tpu.memory_space<vmem>>, vector<4x8x128xf32>,
    %c0_16 = arith.constant 0 : index
    %c0_17 = arith.constant 0 : index
    %c0_18 = arith.constant 0 : index
    %17 = vector.load %arg3[%c0_16, %c0_17, %c0_18] : memref<4x8x128xbf16, #tpu.memory_space<vmem>>, vector<4x8x128xbf16>
    %18 = vector.shape_cast %17 : vector<4x8x128xbf16> to vector<32x128xbf16>
    %c0_19 = arith.constant 0 : index
    %c0_20 = arith.constant 0 : index
    %19 = vector.load %arg7[%c0_19, %c0_20] : memref<128x128xbf16, #tpu.memory_space<vmem>>, vector<128x128xbf16>
    %cst_21 = arith.constant dense<0.000000e+00> : vector<32x128xf32>
    %20 = tpu.matmul %18, %19, %cst_21 {dimension_numbers = #tpu.dot_dimension_numbers<[1], [0], [0], [1], [0, 0, 1, 1], [], []>} : vector<32x128xbf16>, vector<128x128xbf16>, vector<32x128xf32> -> vector<32x128xf32>
    %c0_22 = arith.constant 0 : index
    %c0_23 = arith.constant 0 : index
    %c0_24 = arith.constant 0 : index
    %21 = vector.load %arg4[%c0_22, %c0_23, %c0_24] : memref<4x8x128xbf16, #tpu.memory_space<vmem>>, vector<4x8x128xbf16>
    %22 = vector.shape_cast %21 : vector<4x8x128xbf16> to vector<32x128xbf16>
    %c0_25 = arith.constant 0 : index
    %c0_26 = arith.constant 0 : index
    %23 = vector.load %arg8[%c0_25, %c0_26] : memref<128x128xbf16, #tpu.memory_space<vmem>>, vector<128x128xbf16>
    %cst_27 = arith.constant dense<0.000000e+00> : vector<32x128xf32>
    %24 = tpu.matmul %22, %23, %cst_27 {dimension_numbers = #tpu.dot_dimension_numbers<[1], [0], [0], [1], [0, 0, 1, 1], [], []>} : vector<32x128xbf16>, vector<128x128xbf16>, vector<32x128xf32> -> vector<32x128xf32>
    %25 = arith.addf %20, %24 : vector<32x128xf32>
    %c0_28 = arith.constant 0 : index
    %c0_29 = arith.constant 0 : index
    %26 = vector.load %arg12[%c0_28, %c0_29] : memref<1x128xf32, #tpu.memory_space<vmem>>, vector<1x128xf32>
    %27 = vector.broadcast %26 : vector<1x128xf32> to vector<32x128xf32>
    %28 = arith.addf %25, %27 : vector<32x128xf32>
    %29 = vector.shape_cast %28 : vector<32x128xf32> to vector<4x8x128xf32>
    %c0_30 = arith.constant 0 : index
    %c0_31 = arith.constant 0 : index
    %c0_32 = arith.constant 0 : index
    %30 = vector.load %arg20[%c0_30, %c0_31, %c0_32] : memref<4x8x128xf32, #tpu.memory_space<vmem>>, vector<4x8x128xf32>
    tpu.vector_store %arg20[%c0_30, %c0_31, %c0_32], %29 {strides = array<i32>} : memref<4x8x128xf32, #tpu.memory_space<vmem>>, vector<4x8x128xf32>,
    %c0_33 = arith.constant 0 : index
    %c0_34 = arith.constant 0 : index
    %31 = vector.load %arg9[%c0_33, %c0_34] : memref<128x128xbf16, #tpu.memory_space<vmem>>, vector<128x128xbf16>
    %c0_35 = arith.constant 0 : index
    %c0_36 = arith.constant 0 : index
    %32 = vector.load %arg10[%c0_35, %c0_36] : memref<128x128xbf16, #tpu.memory_space<vmem>>, vector<128x128xbf16>
    %c0_37 = arith.constant 0 : index
    %c0_38 = arith.constant 0 : index
    %33 = vector.load %arg17[%c0_37, %c0_38] : memref<8x128xf32, #tpu.memory_space<vmem>>, vector<8x128xf32>
    %c0_39 = arith.constant 0 : index
    %c0_40 = arith.constant 0 : index
    %34 = vector.load %arg18[%c0_39, %c0_40] : memref<8x128xf32, #tpu.memory_space<vmem>>, vector<8x128xf32>
    %c0_i32_41 = arith.constant 0 : i32
    %c3_i32 = arith.constant 3 : i32
    %35 = arith.subi %c3_i32, %c0_i32_41 : i32
    %36 = arith.index_cast %c0_i32_41 : i32 to index
    %c0_42 = arith.constant 0 : index
    %c0_43 = arith.constant 0 : index
    %37 = vector.load %arg19[%36, %c0_42, %c0_43] : memref<4x8x128xf32, #tpu.memory_space<vmem>>, vector<1x8x128xf32>
    %38 = vector.shape_cast %37 : vector<1x8x128xf32> to vector<8x128xf32>
    %39 = arith.truncf %33 : vector<8x128xf32> to vector<8x128xbf16>
    %cst_44 = arith.constant dense<0.000000e+00> : vector<8x128xf32>
    %40 = tpu.matmul %39, %31, %cst_44 {dimension_numbers = #tpu.dot_dimension_numbers<[1], [0], [0], [1], [0, 0, 1, 1], [], []>} : vector<8x128xbf16>, vector<128x128xbf16>, vector<8x128xf32> -> vector<8x128xf32>
    %41 = arith.addf %38, %40 : vector<8x128xf32>
    %42 = math.tanh %41 : vector<8x128xf32>
    %43 = arith.index_cast %35 : i32 to index
    %c0_45 = arith.constant 0 : index
    %c0_46 = arith.constant 0 : index
    %44 = vector.load %arg20[%43, %c0_45, %c0_46] : memref<4x8x128xf32, #tpu.memory_space<vmem>>, vector<1x8x128xf32>
    %45 = vector.shape_cast %44 : vector<1x8x128xf32> to vector<8x128xf32>
    %46 = arith.truncf %34 : vector<8x128xf32> to vector<8x128xbf16>
    %cst_47 = arith.constant dense<0.000000e+00> : vector<8x128xf32>
    %47 = tpu.matmul %46, %32, %cst_47 {dimension_numbers = #tpu.dot_dimension_numbers<[1], [0], [0], [1], [0, 0, 1, 1], [], []>} : vector<8x128xbf16>, vector<128x128xbf16>, vector<8x128xf32> -> vector<8x128xf32>
    %48 = arith.addf %45, %47 : vector<8x128xf32>
    %49 = math.tanh %48 : vector<8x128xf32>
    %50 = arith.index_cast %c0_i32_41 : i32 to index
    %c0_48 = arith.constant 0 : index
    %c0_49 = arith.constant 0 : index
    %51 = vector.load %arg19[%50, %c0_48, %c0_49] : memref<4x8x128xf32, #tpu.memory_space<vmem>>, vector<1x8x128xf32>
    %52 = vector.shape_cast %51 : vector<1x8x128xf32> to vector<8x128xf32>
    %53 = vector.shape_cast %42 : vector<8x128xf32> to vector<1x8x128xf32>
    tpu.vector_store %arg19[%50, %c0_48, %c0_49], %53 {strides = array<i32>} : memref<4x8x128xf32, #tpu.memory_space<vmem>>, vector<1x8x128xf32>,
    %54 = arith.index_cast %35 : i32 to index
    %c0_50 = arith.constant 0 : index
    %c0_51 = arith.constant 0 : index
    %55 = vector.load %arg20[%54, %c0_50, %c0_51] : memref<4x8x128xf32, #tpu.memory_space<vmem>>, vector<1x8x128xf32>
    %56 = vector.shape_cast %55 : vector<1x8x128xf32> to vector<8x128xf32>
    %57 = vector.shape_cast %49 : vector<8x128xf32> to vector<1x8x128xf32>
    tpu.vector_store %arg20[%54, %c0_50, %c0_51], %57 {strides = array<i32>} : memref<4x8x128xf32, #tpu.memory_space<vmem>>, vector<1x8x128xf32>,
    %c1_i32 = arith.constant 1 : i32
    %c3_i32_52 = arith.constant 3 : i32
    %58 = arith.subi %c3_i32_52, %c1_i32 : i32
    %59 = arith.index_cast %c1_i32 : i32 to index
    %c0_53 = arith.constant 0 : index
    %c0_54 = arith.constant 0 : index
    %60 = vector.load %arg19[%59, %c0_53, %c0_54] : memref<4x8x128xf32, #tpu.memory_space<vmem>>, vector<1x8x128xf32>
    %61 = vector.shape_cast %60 : vector<1x8x128xf32> to vector<8x128xf32>
    %62 = arith.truncf %42 : vector<8x128xf32> to vector<8x128xbf16>
    %cst_55 = arith.constant dense<0.000000e+00> : vector<8x128xf32>
    %63 = tpu.matmul %62, %31, %cst_55 {dimension_numbers = #tpu.dot_dimension_numbers<[1], [0], [0], [1], [0, 0, 1, 1], [], []>} : vector<8x128xbf16>, vector<128x128xbf16>, vector<8x128xf32> -> vector<8x128xf32>
    %64 = arith.addf %61, %63 : vector<8x128xf32>
    %65 = math.tanh %64 : vector<8x128xf32>
    %66 = arith.index_cast %58 : i32 to index
    %c0_56 = arith.constant 0 : index
    %c0_57 = arith.constant 0 : index
    %67 = vector.load %arg20[%66, %c0_56, %c0_57] : memref<4x8x128xf32, #tpu.memory_space<vmem>>, vector<1x8x128xf32>
    %68 = vector.shape_cast %67 : vector<1x8x128xf32> to vector<8x128xf32>
    %69 = arith.truncf %49 : vector<8x128xf32> to vector<8x128xbf16>
    %cst_58 = arith.constant dense<0.000000e+00> : vector<8x128xf32>
    %70 = tpu.matmul %69, %32, %cst_58 {dimension_numbers = #tpu.dot_dimension_numbers<[1], [0], [0], [1], [0, 0, 1, 1], [], []>} : vector<8x128xbf16>, vector<128x128xbf16>, vector<8x128xf32> -> vector<8x128xf32>
    %71 = arith.addf %68, %70 : vector<8x128xf32>
    %72 = math.tanh %71 : vector<8x128xf32>
    %73 = arith.index_cast %c1_i32 : i32 to index
    %c0_59 = arith.constant 0 : index
    %c0_60 = arith.constant 0 : index
    %74 = vector.load %arg19[%73, %c0_59, %c0_60] : memref<4x8x128xf32, #tpu.memory_space<vmem>>, vector<1x8x128xf32>
    %75 = vector.shape_cast %74 : vector<1x8x128xf32> to vector<8x128xf32>
    %76 = vector.shape_cast %65 : vector<8x128xf32> to vector<1x8x128xf32>
    tpu.vector_store %arg19[%73, %c0_59, %c0_60], %76 {strides = array<i32>} : memref<4x8x128xf32, #tpu.memory_space<vmem>>, vector<1x8x128xf32>,
    %77 = arith.index_cast %58 : i32 to index
    %c0_61 = arith.constant 0 : index
    %c0_62 = arith.constant 0 : index
    %78 = vector.load %arg20[%77, %c0_61, %c0_62] : memref<4x8x128xf32, #tpu.memory_space<vmem>>, vector<1x8x128xf32>
    %79 = vector.shape_cast %78 : vector<1x8x128xf32> to vector<8x128xf32>
    %80 = vector.shape_cast %72 : vector<8x128xf32> to vector<1x8x128xf32>
    tpu.vector_store %arg20[%77, %c0_61, %c0_62], %80 {strides = array<i32>} : memref<4x8x128xf32, #tpu.memory_space<vmem>>, vector<1x8x128xf32>,
    %c2_i32 = arith.constant 2 : i32
    %c3_i32_63 = arith.constant 3 : i32
    %81 = arith.subi %c3_i32_63, %c2_i32 : i32
    %82 = arith.index_cast %c2_i32 : i32 to index
    %c0_64 = arith.constant 0 : index
    %c0_65 = arith.constant 0 : index
    %83 = vector.load %arg19[%82, %c0_64, %c0_65] : memref<4x8x128xf32, #tpu.memory_space<vmem>>, vector<1x8x128xf32>
    %84 = vector.shape_cast %83 : vector<1x8x128xf32> to vector<8x128xf32>
    %85 = arith.truncf %65 : vector<8x128xf32> to vector<8x128xbf16>
    %cst_66 = arith.constant dense<0.000000e+00> : vector<8x128xf32>
    %86 = tpu.matmul %85, %31, %cst_66 {dimension_numbers = #tpu.dot_dimension_numbers<[1], [0], [0], [1], [0, 0, 1, 1], [], []>} : vector<8x128xbf16>, vector<128x128xbf16>, vector<8x128xf32> -> vector<8x128xf32>
    %87 = arith.addf %84, %86 : vector<8x128xf32>
    %88 = math.tanh %87 : vector<8x128xf32>
    %89 = arith.index_cast %81 : i32 to index
    %c0_67 = arith.constant 0 : index
    %c0_68 = arith.constant 0 : index
    %90 = vector.load %arg20[%89, %c0_67, %c0_68] : memref<4x8x128xf32, #tpu.memory_space<vmem>>, vector<1x8x128xf32>
    %91 = vector.shape_cast %90 : vector<1x8x128xf32> to vector<8x128xf32>
    %92 = arith.truncf %72 : vector<8x128xf32> to vector<8x128xbf16>
    %cst_69 = arith.constant dense<0.000000e+00> : vector<8x128xf32>
    %93 = tpu.matmul %92, %32, %cst_69 {dimension_numbers = #tpu.dot_dimension_numbers<[1], [0], [0], [1], [0, 0, 1, 1], [], []>} : vector<8x128xbf16>, vector<128x128xbf16>, vector<8x128xf32> -> vector<8x128xf32>
    %94 = arith.addf %91, %93 : vector<8x128xf32>
    %95 = math.tanh %94 : vector<8x128xf32>
    %96 = arith.index_cast %c2_i32 : i32 to index
    %c0_70 = arith.constant 0 : index
    %c0_71 = arith.constant 0 : index
    %97 = vector.load %arg19[%96, %c0_70, %c0_71] : memref<4x8x128xf32, #tpu.memory_space<vmem>>, vector<1x8x128xf32>
    %98 = vector.shape_cast %97 : vector<1x8x128xf32> to vector<8x128xf32>
    %99 = vector.shape_cast %88 : vector<8x128xf32> to vector<1x8x128xf32>
    tpu.vector_store %arg19[%96, %c0_70, %c0_71], %99 {strides = array<i32>} : memref<4x8x128xf32, #tpu.memory_space<vmem>>, vector<1x8x128xf32>,
    %100 = arith.index_cast %81 : i32 to index
    %c0_72 = arith.constant 0 : index
    %c0_73 = arith.constant 0 : index
    %101 = vector.load %arg20[%100, %c0_72, %c0_73] : memref<4x8x128xf32, #tpu.memory_space<vmem>>, vector<1x8x128xf32>
    %102 = vector.shape_cast %101 : vector<1x8x128xf32> to vector<8x128xf32>
    %103 = vector.shape_cast %95 : vector<8x128xf32> to vector<1x8x128xf32>
    tpu.vector_store %arg20[%100, %c0_72, %c0_73], %103 {strides = array<i32>} : memref<4x8x128xf32, #tpu.memory_space<vmem>>, vector<1x8x128xf32>,
    %c3_i32_74 = arith.constant 3 : i32
    %c3_i32_75 = arith.constant 3 : i32
    %104 = arith.subi %c3_i32_75, %c3_i32_74 : i32
    %105 = arith.index_cast %c3_i32_74 : i32 to index
    %c0_76 = arith.constant 0 : index
    %c0_77 = arith.constant 0 : index
    %106 = vector.load %arg19[%105, %c0_76, %c0_77] : memref<4x8x128xf32, #tpu.memory_space<vmem>>, vector<1x8x128xf32>
    %107 = vector.shape_cast %106 : vector<1x8x128xf32> to vector<8x128xf32>
    %108 = arith.truncf %88 : vector<8x128xf32> to vector<8x128xbf16>
    %cst_78 = arith.constant dense<0.000000e+00> : vector<8x128xf32>
    %109 = tpu.matmul %108, %31, %cst_78 {dimension_numbers = #tpu.dot_dimension_numbers<[1], [0], [0], [1], [0, 0, 1, 1], [], []>} : vector<8x128xbf16>, vector<128x128xbf16>, vector<8x128xf32> -> vector<8x128xf32>
    %110 = arith.addf %107, %109 : vector<8x128xf32>
    %111 = math.tanh %110 : vector<8x128xf32>
    %112 = arith.index_cast %104 : i32 to index
    %c0_79 = arith.constant 0 : index
    %c0_80 = arith.constant 0 : index
    %113 = vector.load %arg20[%112, %c0_79, %c0_80] : memref<4x8x128xf32, #tpu.memory_space<vmem>>, vector<1x8x128xf32>
    %114 = vector.shape_cast %113 : vector<1x8x128xf32> to vector<8x128xf32>
    %115 = arith.truncf %95 : vector<8x128xf32> to vector<8x128xbf16>
    %cst_81 = arith.constant dense<0.000000e+00> : vector<8x128xf32>
    %116 = tpu.matmul %115, %32, %cst_81 {dimension_numbers = #tpu.dot_dimension_numbers<[1], [0], [0], [1], [0, 0, 1, 1], [], []>} : vector<8x128xbf16>, vector<128x128xbf16>, vector<8x128xf32> -> vector<8x128xf32>
    %117 = arith.addf %114, %116 : vector<8x128xf32>
    %118 = math.tanh %117 : vector<8x128xf32>
    %119 = arith.index_cast %c3_i32_74 : i32 to index
    %c0_82 = arith.constant 0 : index
    %c0_83 = arith.constant 0 : index
    %120 = vector.load %arg19[%119, %c0_82, %c0_83] : memref<4x8x128xf32, #tpu.memory_space<vmem>>, vector<1x8x128xf32>
    %121 = vector.shape_cast %120 : vector<1x8x128xf32> to vector<8x128xf32>
    %122 = vector.shape_cast %111 : vector<8x128xf32> to vector<1x8x128xf32>
    tpu.vector_store %arg19[%119, %c0_82, %c0_83], %122 {strides = array<i32>} : memref<4x8x128xf32, #tpu.memory_space<vmem>>, vector<1x8x128xf32>,
    %123 = arith.index_cast %104 : i32 to index
    %c0_84 = arith.constant 0 : index
    %c0_85 = arith.constant 0 : index
    %124 = vector.load %arg20[%123, %c0_84, %c0_85] : memref<4x8x128xf32, #tpu.memory_space<vmem>>, vector<1x8x128xf32>
    %125 = vector.shape_cast %124 : vector<1x8x128xf32> to vector<8x128xf32>
    %126 = vector.shape_cast %118 : vector<8x128xf32> to vector<1x8x128xf32>
    tpu.vector_store %arg20[%123, %c0_84, %c0_85], %126 {strides = array<i32>} : memref<4x8x128xf32, #tpu.memory_space<vmem>>, vector<1x8x128xf32>,
    %c4_i32 = arith.constant 4 : i32
    %c0_86 = arith.constant 0 : index
    %c0_87 = arith.constant 0 : index
    %127 = vector.load %arg17[%c0_86, %c0_87] : memref<8x128xf32, #tpu.memory_space<vmem>>, vector<8x128xf32>
    tpu.vector_store %arg17[%c0_86, %c0_87], %111 {strides = array<i32>} : memref<8x128xf32, #tpu.memory_space<vmem>>, vector<8x128xf32>,
    %c0_88 = arith.constant 0 : index
    %c0_89 = arith.constant 0 : index
    %128 = vector.load %arg18[%c0_88, %c0_89] : memref<8x128xf32, #tpu.memory_space<vmem>>, vector<8x128xf32>
    tpu.vector_store %arg18[%c0_88, %c0_89], %118 {strides = array<i32>} : memref<8x128xf32, #tpu.memory_space<vmem>>, vector<8x128xf32>,
    %c0_90 = arith.constant 0 : index
    %c0_91 = arith.constant 0 : index
    %c0_92 = arith.constant 0 : index
    %129 = vector.load %arg19[%c0_90, %c0_91, %c0_92] : memref<4x8x128xf32, #tpu.memory_space<vmem>>, vector<4x8x128xf32>
    %130 = arith.truncf %129 : vector<4x8x128xf32> to vector<4x8x128xbf16>
    %c0_93 = arith.constant 0 : index
    %c0_94 = arith.constant 0 : index
    %c0_95 = arith.constant 0 : index
    %131 = vector.load %arg14[%c0_93, %c0_94, %c0_95] : memref<4x8x128xbf16, #tpu.memory_space<vmem>>, vector<4x8x128xbf16>
    tpu.vector_store %arg14[%c0_93, %c0_94, %c0_95], %130 {strides = array<i32>} : memref<4x8x128xbf16, #tpu.memory_space<vmem>>, vector<4x8x128xbf16>,
    %c0_96 = arith.constant 0 : index
    %c0_97 = arith.constant 0 : index
    %c0_98 = arith.constant 0 : index
    %132 = vector.load %arg20[%c0_96, %c0_97, %c0_98] : memref<4x8x128xf32, #tpu.memory_space<vmem>>, vector<4x8x128xf32>
    %133 = arith.truncf %132 : vector<4x8x128xf32> to vector<4x8x128xbf16>
    %c0_99 = arith.constant 0 : index
    %c0_100 = arith.constant 0 : index
    %c0_101 = arith.constant 0 : index
    %134 = vector.load %arg15[%c0_99, %c0_100, %c0_101] : memref<4x8x128xbf16, #tpu.memory_space<vmem>>, vector<4x8x128xbf16>
    tpu.vector_store %arg15[%c0_99, %c0_100, %c0_101], %133 {strides = array<i32>} : memref<4x8x128xbf16, #tpu.memory_space<vmem>>, vector<4x8x128xbf16>,
    %c1_i32_102 = arith.constant 1 : i32
    %135 = arith.cmpi eq, %arg0, %c1_i32_102 : i32
    %136 = arith.extui %135 : i1 to i32
    %c0_i32_103 = arith.constant 0 : i32
    %137 = arith.cmpi ne, %136, %c0_i32_103 : i32
    scf.if %137 {
      %138 = arith.addf %111, %118 : vector<8x128xf32>
      %c0_104 = arith.constant 0 : index
      %c0_105 = arith.constant 0 : index
      %139 = vector.load %arg13[%c0_104, %c0_105] : memref<8x128xf32, #tpu.memory_space<vmem>>, vector<8x128xf32>
      %140 = arith.addf %138, %139 : vector<8x128xf32>
      %c0_106 = arith.constant 0 : index
      %c0_107 = arith.constant 0 : index
      %141 = vector.load %arg16[%c0_106, %c0_107] : memref<8x128xf32, #tpu.memory_space<vmem>>, vector<8x128xf32>
      tpu.vector_store %arg16[%c0_106, %c0_107], %140 {strides = array<i32>} : memref<8x128xf32, #tpu.memory_space<vmem>>, vector<8x128xf32>,
    } else {
    }
    return
  }
  func.func @transform_0(%arg0: i32) -> (i32, i32, i32) {
    %c0_i32 = arith.constant 0 : i32
    %c0_i32_0 = arith.constant 0 : i32
    %c0_i32_1 = arith.constant 0 : i32
    return %arg0, %c0_i32, %c0_i32_0 : i32, i32, i32
  }
  func.func @transform_1(%arg0: i32) -> (i32, i32, i32) {
    %c0_i32 = arith.constant 0 : i32
    %c0_i32_0 = arith.constant 0 : i32
    %c0_i32_1 = arith.constant 0 : i32
    return %arg0, %c0_i32, %c0_i32_0 : i32, i32, i32
  }
  func.func @transform_2(%arg0: i32) -> (i32, i32, i32) {
    %c1_i32 = arith.constant 1 : i32
    %0 = arith.subi %c1_i32, %arg0 : i32
    %c0_i32 = arith.constant 0 : i32
    %c0_i32_0 = arith.constant 0 : i32
    %c0_i32_1 = arith.constant 0 : i32
    return %0, %c0_i32, %c0_i32_0 : i32, i32, i32
  }
  func.func @transform_3(%arg0: i32) -> (i32, i32, i32) {
    %c1_i32 = arith.constant 1 : i32
    %0 = arith.subi %c1_i32, %arg0 : i32
    %c0_i32 = arith.constant 0 : i32
    %c0_i32_0 = arith.constant 0 : i32
    %c0_i32_1 = arith.constant 0 : i32
    return %0, %c0_i32, %c0_i32_0 : i32, i32, i32
  }
  func.func @transform_4(%arg0: i32) -> (i32, i32) {
    %c0_i32 = arith.constant 0 : i32
    %c0_i32_0 = arith.constant 0 : i32
    %c0_i32_1 = arith.constant 0 : i32
    return %c0_i32, %c0_i32_0 : i32, i32
  }
  func.func @transform_5(%arg0: i32) -> (i32, i32) {
    %c0_i32 = arith.constant 0 : i32
    %c0_i32_0 = arith.constant 0 : i32
    %c0_i32_1 = arith.constant 0 : i32
    return %c0_i32, %c0_i32_0 : i32, i32
  }
  func.func @transform_6(%arg0: i32) -> (i32, i32) {
    %c0_i32 = arith.constant 0 : i32
    %c0_i32_0 = arith.constant 0 : i32
    %c0_i32_1 = arith.constant 0 : i32
    return %c0_i32, %c0_i32_0 : i32, i32
  }
  func.func @transform_7(%arg0: i32) -> (i32, i32) {
    %c0_i32 = arith.constant 0 : i32
    %c0_i32_0 = arith.constant 0 : i32
    %c0_i32_1 = arith.constant 0 : i32
    return %c0_i32, %c0_i32_0 : i32, i32
  }
  func.func @transform_8(%arg0: i32) -> (i32, i32) {
    %c0_i32 = arith.constant 0 : i32
    %c0_i32_0 = arith.constant 0 : i32
    %c0_i32_1 = arith.constant 0 : i32
    return %c0_i32, %c0_i32_0 : i32, i32
  }
  func.func @transform_9(%arg0: i32) -> (i32, i32) {
    %c0_i32 = arith.constant 0 : i32
    %c0_i32_0 = arith.constant 0 : i32
    %c0_i32_1 = arith.constant 0 : i32
    return %c0_i32, %c0_i32_0 : i32, i32
  }
  func.func @transform_10(%arg0: i32) -> (i32, i32) {
    %c0_i32 = arith.constant 0 : i32
    %c0_i32_0 = arith.constant 0 : i32
    %c0_i32_1 = arith.constant 0 : i32
    return %c0_i32, %c0_i32_0 : i32, i32
  }
  func.func @transform_11(%arg0: i32) -> (i32, i32) {
    %c0_i32 = arith.constant 0 : i32
    %c0_i32_0 = arith.constant 0 : i32
    %c0_i32_1 = arith.constant 0 : i32
    return %c0_i32, %c0_i32_0 : i32, i32
  }
  func.func @transform_12(%arg0: i32) -> (i32, i32) {
    %c0_i32 = arith.constant 0 : i32
    %c0_i32_0 = arith.constant 0 : i32
    %c0_i32_1 = arith.constant 0 : i32
    return %c0_i32, %c0_i32_0 : i32, i32
  }
  func.func @transform_13(%arg0: i32) -> (i32, i32, i32) {
    %c0_i32 = arith.constant 0 : i32
    %c0_i32_0 = arith.constant 0 : i32
    %c0_i32_1 = arith.constant 0 : i32
    return %arg0, %c0_i32, %c0_i32_0 : i32, i32, i32
  }
  func.func @transform_14(%arg0: i32) -> (i32, i32, i32) {
    %c1_i32 = arith.constant 1 : i32
    %0 = arith.subi %c1_i32, %arg0 : i32
    %c0_i32 = arith.constant 0 : i32
    %c0_i32_0 = arith.constant 0 : i32
    %c0_i32_1 = arith.constant 0 : i32
    return %0, %c0_i32, %c0_i32_0 : i32, i32, i32
  }
  func.func @transform_15(%arg0: i32) -> (i32, i32) {
    %c0_i32 = arith.constant 0 : i32
    %c0_i32_0 = arith.constant 0 : i32
    %c0_i32_1 = arith.constant 0 : i32
    return %c0_i32, %c0_i32_0 : i32, i32
  }
}

module attributes {stable_mosaic.version = 11 : i64} {
  func.func @kernel(%arg0: i32, %arg1: memref<4x8x128xbf16, #tpu.memory_space<vmem>>, %arg2: memref<4x8x128xbf16, #tpu.memory_space<vmem>>, %arg3: memref<4x8x128xbf16, #tpu.memory_space<vmem>>, %arg4: memref<4x8x128xbf16, #tpu.memory_space<vmem>>, %arg5: memref<128x128xbf16, #tpu.memory_space<vmem>>, %arg6: memref<128x128xbf16, #tpu.memory_space<vmem>>, %arg7: memref<128x128xbf16, #tpu.memory_space<vmem>>, %arg8: memref<128x128xbf16, #tpu.memory_space<vmem>>, %arg9: memref<128x128xbf16, #tpu.memory_space<vmem>>, %arg10: memref<128x128xbf16, #tpu.memory_space<vmem>>, %arg11: memref<1x128xf32, #tpu.memory_space<vmem>>, %arg12: memref<1x128xf32, #tpu.memory_space<vmem>>, %arg13: memref<8x128xf32, #tpu.memory_space<vmem>>, %arg14: memref<128x128xf32, #tpu.memory_space<vmem>>, %arg15: memref<1x128xf32, #tpu.memory_space<vmem>>, %arg16: memref<8x128xf32, #tpu.memory_space<vmem>>, %arg17: memref<8x128xf32, #tpu.memory_space<vmem>>, %arg18: memref<8x128xf32, #tpu.memory_space<vmem>>, %arg19: memref<4x8x128xf32, #tpu.memory_space<vmem>>, %arg20: memref<4x8x128xf32, #tpu.memory_space<vmem>>) attributes {dimension_semantics = [#tpu.dimension_semantics<arbitrary>], iteration_bounds = array<i64: 2>, scalar_prefetch = 0 : i64, scratch_operands = 4 : i64, tpu.core_type = #tpu.core_type<tc>, window_params = [{transform_indices = @transform_0, window_bounds = array<i64: 4, 8, 128>}, {transform_indices = @transform_1, window_bounds = array<i64: 4, 8, 128>}, {transform_indices = @transform_2, window_bounds = array<i64: 4, 8, 128>}, {transform_indices = @transform_3, window_bounds = array<i64: 4, 8, 128>}, {pipeline_mode = #tpu.pipeline_mode<synchronous>, transform_indices = @transform_4, window_bounds = array<i64: 128, 128>}, {pipeline_mode = #tpu.pipeline_mode<synchronous>, transform_indices = @transform_5, window_bounds = array<i64: 128, 128>}, {pipeline_mode = #tpu.pipeline_mode<synchronous>, transform_indices = @transform_6, window_bounds = array<i64: 128, 128>}, {pipeline_mode = #tpu.pipeline_mode<synchronous>, transform_indices = @transform_7, window_bounds = array<i64: 128, 128>}, {pipeline_mode = #tpu.pipeline_mode<synchronous>, transform_indices = @transform_8, window_bounds = array<i64: 128, 128>}, {pipeline_mode = #tpu.pipeline_mode<synchronous>, transform_indices = @transform_9, window_bounds = array<i64: 128, 128>}, {pipeline_mode = #tpu.pipeline_mode<synchronous>, transform_indices = @transform_10, window_bounds = array<i64: 1, 128>}, {pipeline_mode = #tpu.pipeline_mode<synchronous>, transform_indices = @transform_11, window_bounds = array<i64: 1, 128>}, {pipeline_mode = #tpu.pipeline_mode<synchronous>, transform_indices = @transform_12, window_bounds = array<i64: 8, 128>}, {pipeline_mode = #tpu.pipeline_mode<synchronous>, transform_indices = @transform_13, window_bounds = array<i64: 128, 128>}, {pipeline_mode = #tpu.pipeline_mode<synchronous>, transform_indices = @transform_14, window_bounds = array<i64: 1, 128>}, {pipeline_mode = #tpu.pipeline_mode<synchronous>, transform_indices = @transform_15, window_bounds = array<i64: 8, 128>}]} {
    %c0_i32 = arith.constant 0 : i32
    %0 = arith.cmpi eq, %arg0, %c0_i32 : i32
    %1 = arith.extui %0 : i1 to i32
    %c0_i32_0 = arith.constant 0 : i32
    %2 = arith.cmpi ne, %1, %c0_i32_0 : i32
    scf.if %2 {
      %cst_76 = arith.constant 0.000000e+00 : f32
      %100 = vector.broadcast %cst_76 : f32 to vector<8x128xf32>
      %c0_77 = arith.constant 0 : index
      %c0_78 = arith.constant 0 : index
      %101 = vector.load %arg17[%c0_77, %c0_78] : memref<8x128xf32, #tpu.memory_space<vmem>>, vector<8x128xf32>
      tpu.vector_store %arg17[%c0_77, %c0_78], %100 {strides = array<i32>} : memref<8x128xf32, #tpu.memory_space<vmem>>, vector<8x128xf32>,
      %cst_79 = arith.constant 0.000000e+00 : f32
      %102 = vector.broadcast %cst_79 : f32 to vector<8x128xf32>
      %c0_80 = arith.constant 0 : index
      %c0_81 = arith.constant 0 : index
      %103 = vector.load %arg18[%c0_80, %c0_81] : memref<8x128xf32, #tpu.memory_space<vmem>>, vector<8x128xf32>
      tpu.vector_store %arg18[%c0_80, %c0_81], %102 {strides = array<i32>} : memref<8x128xf32, #tpu.memory_space<vmem>>, vector<8x128xf32>,
    } else {
    }
    %c0 = arith.constant 0 : index
    %c0_1 = arith.constant 0 : index
    %c0_2 = arith.constant 0 : index
    %3 = vector.load %arg1[%c0, %c0_1, %c0_2] : memref<4x8x128xbf16, #tpu.memory_space<vmem>>, vector<4x8x128xbf16>
    %4 = vector.shape_cast %3 : vector<4x8x128xbf16> to vector<32x128xbf16>
    %c0_3 = arith.constant 0 : index
    %c0_4 = arith.constant 0 : index
    %5 = vector.load %arg5[%c0_3, %c0_4] : memref<128x128xbf16, #tpu.memory_space<vmem>>, vector<128x128xbf16>
    %cst = arith.constant dense<0.000000e+00> : vector<32x128xf32>
    %6 = tpu.matmul %4, %5, %cst {dimension_numbers = #tpu.dot_dimension_numbers<[1], [0], [0], [1], [0, 0, 1, 1], [], []>} : vector<32x128xbf16>, vector<128x128xbf16>, vector<32x128xf32> -> vector<32x128xf32>
    %c0_5 = arith.constant 0 : index
    %c0_6 = arith.constant 0 : index
    %c0_7 = arith.constant 0 : index
    %7 = vector.load %arg2[%c0_5, %c0_6, %c0_7] : memref<4x8x128xbf16, #tpu.memory_space<vmem>>, vector<4x8x128xbf16>
    %8 = vector.shape_cast %7 : vector<4x8x128xbf16> to vector<32x128xbf16>
    %c0_8 = arith.constant 0 : index
    %c0_9 = arith.constant 0 : index
    %9 = vector.load %arg6[%c0_8, %c0_9] : memref<128x128xbf16, #tpu.memory_space<vmem>>, vector<128x128xbf16>
    %cst_10 = arith.constant dense<0.000000e+00> : vector<32x128xf32>
    %10 = tpu.matmul %8, %9, %cst_10 {dimension_numbers = #tpu.dot_dimension_numbers<[1], [0], [0], [1], [0, 0, 1, 1], [], []>} : vector<32x128xbf16>, vector<128x128xbf16>, vector<32x128xf32> -> vector<32x128xf32>
    %11 = arith.addf %6, %10 : vector<32x128xf32>
    %c0_11 = arith.constant 0 : index
    %c0_12 = arith.constant 0 : index
    %12 = vector.load %arg11[%c0_11, %c0_12] : memref<1x128xf32, #tpu.memory_space<vmem>>, vector<1x128xf32>
    %13 = vector.broadcast %12 : vector<1x128xf32> to vector<32x128xf32>
    %14 = arith.addf %11, %13 : vector<32x128xf32>
    %15 = vector.shape_cast %14 : vector<32x128xf32> to vector<4x8x128xf32>
    %c0_13 = arith.constant 0 : index
    %c0_14 = arith.constant 0 : index
    %c0_15 = arith.constant 0 : index
    %16 = vector.load %arg19[%c0_13, %c0_14, %c0_15] : memref<4x8x128xf32, #tpu.memory_space<vmem>>, vector<4x8x128xf32>
    tpu.vector_store %arg19[%c0_13, %c0_14, %c0_15], %15 {strides = array<i32>} : memref<4x8x128xf32, #tpu.memory_space<vmem>>, vector<4x8x128xf32>,
    %c0_16 = arith.constant 0 : index
    %c0_17 = arith.constant 0 : index
    %c0_18 = arith.constant 0 : index
    %17 = vector.load %arg3[%c0_16, %c0_17, %c0_18] : memref<4x8x128xbf16, #tpu.memory_space<vmem>>, vector<4x8x128xbf16>
    %18 = vector.shape_cast %17 : vector<4x8x128xbf16> to vector<32x128xbf16>
    %c0_19 = arith.constant 0 : index
    %c0_20 = arith.constant 0 : index
    %19 = vector.load %arg7[%c0_19, %c0_20] : memref<128x128xbf16, #tpu.memory_space<vmem>>, vector<128x128xbf16>
    %cst_21 = arith.constant dense<0.000000e+00> : vector<32x128xf32>
    %20 = tpu.matmul %18, %19, %cst_21 {dimension_numbers = #tpu.dot_dimension_numbers<[1], [0], [0], [1], [0, 0, 1, 1], [], []>} : vector<32x128xbf16>, vector<128x128xbf16>, vector<32x128xf32> -> vector<32x128xf32>
    %c0_22 = arith.constant 0 : index
    %c0_23 = arith.constant 0 : index
    %c0_24 = arith.constant 0 : index
    %21 = vector.load %arg4[%c0_22, %c0_23, %c0_24] : memref<4x8x128xbf16, #tpu.memory_space<vmem>>, vector<4x8x128xbf16>
    %22 = vector.shape_cast %21 : vector<4x8x128xbf16> to vector<32x128xbf16>
    %c0_25 = arith.constant 0 : index
    %c0_26 = arith.constant 0 : index
    %23 = vector.load %arg8[%c0_25, %c0_26] : memref<128x128xbf16, #tpu.memory_space<vmem>>, vector<128x128xbf16>
    %cst_27 = arith.constant dense<0.000000e+00> : vector<32x128xf32>
    %24 = tpu.matmul %22, %23, %cst_27 {dimension_numbers = #tpu.dot_dimension_numbers<[1], [0], [0], [1], [0, 0, 1, 1], [], []>} : vector<32x128xbf16>, vector<128x128xbf16>, vector<32x128xf32> -> vector<32x128xf32>
    %25 = arith.addf %20, %24 : vector<32x128xf32>
    %c0_28 = arith.constant 0 : index
    %c0_29 = arith.constant 0 : index
    %26 = vector.load %arg12[%c0_28, %c0_29] : memref<1x128xf32, #tpu.memory_space<vmem>>, vector<1x128xf32>
    %27 = vector.broadcast %26 : vector<1x128xf32> to vector<32x128xf32>
    %28 = arith.addf %25, %27 : vector<32x128xf32>
    %29 = vector.shape_cast %28 : vector<32x128xf32> to vector<4x8x128xf32>
    %c0_30 = arith.constant 0 : index
    %c0_31 = arith.constant 0 : index
    %c0_32 = arith.constant 0 : index
    %30 = vector.load %arg20[%c0_30, %c0_31, %c0_32] : memref<4x8x128xf32, #tpu.memory_space<vmem>>, vector<4x8x128xf32>
    tpu.vector_store %arg20[%c0_30, %c0_31, %c0_32], %29 {strides = array<i32>} : memref<4x8x128xf32, #tpu.memory_space<vmem>>, vector<4x8x128xf32>,
    %c0_33 = arith.constant 0 : index
    %c0_34 = arith.constant 0 : index
    %31 = vector.load %arg9[%c0_33, %c0_34] : memref<128x128xbf16, #tpu.memory_space<vmem>>, vector<128x128xbf16>
    %c0_35 = arith.constant 0 : index
    %c0_36 = arith.constant 0 : index
    %32 = vector.load %arg10[%c0_35, %c0_36] : memref<128x128xbf16, #tpu.memory_space<vmem>>, vector<128x128xbf16>
    %c0_37 = arith.constant 0 : index
    %c0_38 = arith.constant 0 : index
    %33 = vector.load %arg17[%c0_37, %c0_38] : memref<8x128xf32, #tpu.memory_space<vmem>>, vector<8x128xf32>
    %c0_39 = arith.constant 0 : index
    %c0_40 = arith.constant 0 : index
    %34 = vector.load %arg18[%c0_39, %c0_40] : memref<8x128xf32, #tpu.memory_space<vmem>>, vector<8x128xf32>
    %c0_i32_41 = arith.constant 0 : i32
    %c3_i32 = arith.constant 3 : i32
    %35 = arith.subi %c3_i32, %c0_i32_41 : i32
    %36 = arith.index_cast %c0_i32_41 : i32 to index
    %c0_42 = arith.constant 0 : index
    %c0_43 = arith.constant 0 : index
    %37 = vector.load %arg19[%36, %c0_42, %c0_43] : memref<4x8x128xf32, #tpu.memory_space<vmem>>, vector<1x8x128xf32>
    %38 = vector.shape_cast %37 : vector<1x8x128xf32> to vector<8x128xf32>
    %39 = arith.truncf %33 : vector<8x128xf32> to vector<8x128xbf16>
    %cst_44 = arith.constant dense<0.000000e+00> : vector<8x128xf32>
    %40 = tpu.matmul %39, %31, %cst_44 {dimension_numbers = #tpu.dot_dimension_numbers<[1], [0], [0], [1], [0, 0, 1, 1], [], []>} : vector<8x128xbf16>, vector<128x128xbf16>, vector<8x128xf32> -> vector<8x128xf32>
    %41 = arith.addf %38, %40 : vector<8x128xf32>
    %42 = math.tanh %41 : vector<8x128xf32>
    %43 = arith.index_cast %35 : i32 to index
    %c0_45 = arith.constant 0 : index
    %c0_46 = arith.constant 0 : index
    %44 = vector.load %arg20[%43, %c0_45, %c0_46] : memref<4x8x128xf32, #tpu.memory_space<vmem>>, vector<1x8x128xf32>
    %45 = vector.shape_cast %44 : vector<1x8x128xf32> to vector<8x128xf32>
    %46 = arith.truncf %34 : vector<8x128xf32> to vector<8x128xbf16>
    %cst_47 = arith.constant dense<0.000000e+00> : vector<8x128xf32>
    %47 = tpu.matmul %46, %32, %cst_47 {dimension_numbers = #tpu.dot_dimension_numbers<[1], [0], [0], [1], [0, 0, 1, 1], [], []>} : vector<8x128xbf16>, vector<128x128xbf16>, vector<8x128xf32> -> vector<8x128xf32>
    %48 = arith.addf %45, %47 : vector<8x128xf32>
    %49 = math.tanh %48 : vector<8x128xf32>
    %c1_i32 = arith.constant 1 : i32
    %c3_i32_48 = arith.constant 3 : i32
    %50 = arith.subi %c3_i32_48, %c1_i32 : i32
    %51 = arith.index_cast %c1_i32 : i32 to index
    %c0_49 = arith.constant 0 : index
    %c0_50 = arith.constant 0 : index
    %52 = vector.load %arg19[%51, %c0_49, %c0_50] : memref<4x8x128xf32, #tpu.memory_space<vmem>>, vector<1x8x128xf32>
    %53 = vector.shape_cast %52 : vector<1x8x128xf32> to vector<8x128xf32>
    %54 = arith.truncf %42 : vector<8x128xf32> to vector<8x128xbf16>
    %cst_51 = arith.constant dense<0.000000e+00> : vector<8x128xf32>
    %55 = tpu.matmul %54, %31, %cst_51 {dimension_numbers = #tpu.dot_dimension_numbers<[1], [0], [0], [1], [0, 0, 1, 1], [], []>} : vector<8x128xbf16>, vector<128x128xbf16>, vector<8x128xf32> -> vector<8x128xf32>
    %56 = arith.addf %53, %55 : vector<8x128xf32>
    %57 = math.tanh %56 : vector<8x128xf32>
    %58 = arith.index_cast %50 : i32 to index
    %c0_52 = arith.constant 0 : index
    %c0_53 = arith.constant 0 : index
    %59 = vector.load %arg20[%58, %c0_52, %c0_53] : memref<4x8x128xf32, #tpu.memory_space<vmem>>, vector<1x8x128xf32>
    %60 = vector.shape_cast %59 : vector<1x8x128xf32> to vector<8x128xf32>
    %61 = arith.truncf %49 : vector<8x128xf32> to vector<8x128xbf16>
    %cst_54 = arith.constant dense<0.000000e+00> : vector<8x128xf32>
    %62 = tpu.matmul %61, %32, %cst_54 {dimension_numbers = #tpu.dot_dimension_numbers<[1], [0], [0], [1], [0, 0, 1, 1], [], []>} : vector<8x128xbf16>, vector<128x128xbf16>, vector<8x128xf32> -> vector<8x128xf32>
    %63 = arith.addf %60, %62 : vector<8x128xf32>
    %64 = math.tanh %63 : vector<8x128xf32>
    %c2_i32 = arith.constant 2 : i32
    %c3_i32_55 = arith.constant 3 : i32
    %65 = arith.subi %c3_i32_55, %c2_i32 : i32
    %66 = arith.index_cast %c2_i32 : i32 to index
    %c0_56 = arith.constant 0 : index
    %c0_57 = arith.constant 0 : index
    %67 = vector.load %arg19[%66, %c0_56, %c0_57] : memref<4x8x128xf32, #tpu.memory_space<vmem>>, vector<1x8x128xf32>
    %68 = vector.shape_cast %67 : vector<1x8x128xf32> to vector<8x128xf32>
    %69 = arith.truncf %57 : vector<8x128xf32> to vector<8x128xbf16>
    %cst_58 = arith.constant dense<0.000000e+00> : vector<8x128xf32>
    %70 = tpu.matmul %69, %31, %cst_58 {dimension_numbers = #tpu.dot_dimension_numbers<[1], [0], [0], [1], [0, 0, 1, 1], [], []>} : vector<8x128xbf16>, vector<128x128xbf16>, vector<8x128xf32> -> vector<8x128xf32>
    %71 = arith.addf %68, %70 : vector<8x128xf32>
    %72 = math.tanh %71 : vector<8x128xf32>
    %73 = arith.index_cast %65 : i32 to index
    %c0_59 = arith.constant 0 : index
    %c0_60 = arith.constant 0 : index
    %74 = vector.load %arg20[%73, %c0_59, %c0_60] : memref<4x8x128xf32, #tpu.memory_space<vmem>>, vector<1x8x128xf32>
    %75 = vector.shape_cast %74 : vector<1x8x128xf32> to vector<8x128xf32>
    %76 = arith.truncf %64 : vector<8x128xf32> to vector<8x128xbf16>
    %cst_61 = arith.constant dense<0.000000e+00> : vector<8x128xf32>
    %77 = tpu.matmul %76, %32, %cst_61 {dimension_numbers = #tpu.dot_dimension_numbers<[1], [0], [0], [1], [0, 0, 1, 1], [], []>} : vector<8x128xbf16>, vector<128x128xbf16>, vector<8x128xf32> -> vector<8x128xf32>
    %78 = arith.addf %75, %77 : vector<8x128xf32>
    %79 = math.tanh %78 : vector<8x128xf32>
    %c3_i32_62 = arith.constant 3 : i32
    %c3_i32_63 = arith.constant 3 : i32
    %80 = arith.subi %c3_i32_63, %c3_i32_62 : i32
    %81 = arith.index_cast %c3_i32_62 : i32 to index
    %c0_64 = arith.constant 0 : index
    %c0_65 = arith.constant 0 : index
    %82 = vector.load %arg19[%81, %c0_64, %c0_65] : memref<4x8x128xf32, #tpu.memory_space<vmem>>, vector<1x8x128xf32>
    %83 = vector.shape_cast %82 : vector<1x8x128xf32> to vector<8x128xf32>
    %84 = arith.truncf %72 : vector<8x128xf32> to vector<8x128xbf16>
    %cst_66 = arith.constant dense<0.000000e+00> : vector<8x128xf32>
    %85 = tpu.matmul %84, %31, %cst_66 {dimension_numbers = #tpu.dot_dimension_numbers<[1], [0], [0], [1], [0, 0, 1, 1], [], []>} : vector<8x128xbf16>, vector<128x128xbf16>, vector<8x128xf32> -> vector<8x128xf32>
    %86 = arith.addf %83, %85 : vector<8x128xf32>
    %87 = math.tanh %86 : vector<8x128xf32>
    %88 = arith.index_cast %80 : i32 to index
    %c0_67 = arith.constant 0 : index
    %c0_68 = arith.constant 0 : index
    %89 = vector.load %arg20[%88, %c0_67, %c0_68] : memref<4x8x128xf32, #tpu.memory_space<vmem>>, vector<1x8x128xf32>
    %90 = vector.shape_cast %89 : vector<1x8x128xf32> to vector<8x128xf32>
    %91 = arith.truncf %79 : vector<8x128xf32> to vector<8x128xbf16>
    %cst_69 = arith.constant dense<0.000000e+00> : vector<8x128xf32>
    %92 = tpu.matmul %91, %32, %cst_69 {dimension_numbers = #tpu.dot_dimension_numbers<[1], [0], [0], [1], [0, 0, 1, 1], [], []>} : vector<8x128xbf16>, vector<128x128xbf16>, vector<8x128xf32> -> vector<8x128xf32>
    %93 = arith.addf %90, %92 : vector<8x128xf32>
    %94 = math.tanh %93 : vector<8x128xf32>
    %c4_i32 = arith.constant 4 : i32
    %c0_70 = arith.constant 0 : index
    %c0_71 = arith.constant 0 : index
    %95 = vector.load %arg17[%c0_70, %c0_71] : memref<8x128xf32, #tpu.memory_space<vmem>>, vector<8x128xf32>
    tpu.vector_store %arg17[%c0_70, %c0_71], %87 {strides = array<i32>} : memref<8x128xf32, #tpu.memory_space<vmem>>, vector<8x128xf32>,
    %c0_72 = arith.constant 0 : index
    %c0_73 = arith.constant 0 : index
    %96 = vector.load %arg18[%c0_72, %c0_73] : memref<8x128xf32, #tpu.memory_space<vmem>>, vector<8x128xf32>
    tpu.vector_store %arg18[%c0_72, %c0_73], %94 {strides = array<i32>} : memref<8x128xf32, #tpu.memory_space<vmem>>, vector<8x128xf32>,
    %c1_i32_74 = arith.constant 1 : i32
    %97 = arith.cmpi eq, %arg0, %c1_i32_74 : i32
    %98 = arith.extui %97 : i1 to i32
    %c0_i32_75 = arith.constant 0 : i32
    %99 = arith.cmpi ne, %98, %c0_i32_75 : i32
    scf.if %99 {
      %100 = arith.addf %87, %94 : vector<8x128xf32>
      %c0_76 = arith.constant 0 : index
      %c0_77 = arith.constant 0 : index
      %101 = vector.load %arg13[%c0_76, %c0_77] : memref<8x128xf32, #tpu.memory_space<vmem>>, vector<8x128xf32>
      %102 = arith.addf %100, %101 : vector<8x128xf32>
      %c0_78 = arith.constant 0 : index
      %c0_79 = arith.constant 0 : index
      %103 = vector.load %arg14[%c0_78, %c0_79] : memref<128x128xf32, #tpu.memory_space<vmem>>, vector<128x128xf32>
      %cst_80 = arith.constant dense<0.000000e+00> : vector<8x128xf32>
      %104 = tpu.matmul %102, %103, %cst_80 {dimension_numbers = #tpu.dot_dimension_numbers<[1], [0], [0], [1], [0, 0, 1, 1], [], []>} : vector<8x128xf32>, vector<128x128xf32>, vector<8x128xf32> -> vector<8x128xf32>
      %c0_81 = arith.constant 0 : index
      %c0_82 = arith.constant 0 : index
      %105 = vector.load %arg15[%c0_81, %c0_82] : memref<1x128xf32, #tpu.memory_space<vmem>>, vector<1x128xf32>
      %106 = vector.broadcast %105 : vector<1x128xf32> to vector<8x128xf32>
      %107 = arith.addf %104, %106 : vector<8x128xf32>
      %c0_83 = arith.constant 0 : index
      %c0_84 = arith.constant 0 : index
      %108 = vector.load %arg16[%c0_83, %c0_84] : memref<8x128xf32, #tpu.memory_space<vmem>>, vector<8x128xf32>
      tpu.vector_store %arg16[%c0_83, %c0_84], %107 {strides = array<i32>} : memref<8x128xf32, #tpu.memory_space<vmem>>, vector<8x128xf32>,
    } else {
    }
    return
  }
  func.func @transform_0(%arg0: i32) -> (i32, i32, i32) {
    %c0_i32 = arith.constant 0 : i32
    %c0_i32_0 = arith.constant 0 : i32
    %c0_i32_1 = arith.constant 0 : i32
    return %arg0, %c0_i32, %c0_i32_0 : i32, i32, i32
  }
  func.func @transform_1(%arg0: i32) -> (i32, i32, i32) {
    %c0_i32 = arith.constant 0 : i32
    %c0_i32_0 = arith.constant 0 : i32
    %c0_i32_1 = arith.constant 0 : i32
    return %arg0, %c0_i32, %c0_i32_0 : i32, i32, i32
  }
  func.func @transform_2(%arg0: i32) -> (i32, i32, i32) {
    %c1_i32 = arith.constant 1 : i32
    %0 = arith.subi %c1_i32, %arg0 : i32
    %c0_i32 = arith.constant 0 : i32
    %c0_i32_0 = arith.constant 0 : i32
    %c0_i32_1 = arith.constant 0 : i32
    return %0, %c0_i32, %c0_i32_0 : i32, i32, i32
  }
  func.func @transform_3(%arg0: i32) -> (i32, i32, i32) {
    %c1_i32 = arith.constant 1 : i32
    %0 = arith.subi %c1_i32, %arg0 : i32
    %c0_i32 = arith.constant 0 : i32
    %c0_i32_0 = arith.constant 0 : i32
    %c0_i32_1 = arith.constant 0 : i32
    return %0, %c0_i32, %c0_i32_0 : i32, i32, i32
  }
  func.func @transform_4(%arg0: i32) -> (i32, i32) {
    %c0_i32 = arith.constant 0 : i32
    %c0_i32_0 = arith.constant 0 : i32
    %c0_i32_1 = arith.constant 0 : i32
    return %c0_i32, %c0_i32_0 : i32, i32
  }
  func.func @transform_5(%arg0: i32) -> (i32, i32) {
    %c0_i32 = arith.constant 0 : i32
    %c0_i32_0 = arith.constant 0 : i32
    %c0_i32_1 = arith.constant 0 : i32
    return %c0_i32, %c0_i32_0 : i32, i32
  }
  func.func @transform_6(%arg0: i32) -> (i32, i32) {
    %c0_i32 = arith.constant 0 : i32
    %c0_i32_0 = arith.constant 0 : i32
    %c0_i32_1 = arith.constant 0 : i32
    return %c0_i32, %c0_i32_0 : i32, i32
  }
  func.func @transform_7(%arg0: i32) -> (i32, i32) {
    %c0_i32 = arith.constant 0 : i32
    %c0_i32_0 = arith.constant 0 : i32
    %c0_i32_1 = arith.constant 0 : i32
    return %c0_i32, %c0_i32_0 : i32, i32
  }
  func.func @transform_8(%arg0: i32) -> (i32, i32) {
    %c0_i32 = arith.constant 0 : i32
    %c0_i32_0 = arith.constant 0 : i32
    %c0_i32_1 = arith.constant 0 : i32
    return %c0_i32, %c0_i32_0 : i32, i32
  }
  func.func @transform_9(%arg0: i32) -> (i32, i32) {
    %c0_i32 = arith.constant 0 : i32
    %c0_i32_0 = arith.constant 0 : i32
    %c0_i32_1 = arith.constant 0 : i32
    return %c0_i32, %c0_i32_0 : i32, i32
  }
  func.func @transform_10(%arg0: i32) -> (i32, i32) {
    %c0_i32 = arith.constant 0 : i32
    %c0_i32_0 = arith.constant 0 : i32
    %c0_i32_1 = arith.constant 0 : i32
    return %c0_i32, %c0_i32_0 : i32, i32
  }
  func.func @transform_11(%arg0: i32) -> (i32, i32) {
    %c0_i32 = arith.constant 0 : i32
    %c0_i32_0 = arith.constant 0 : i32
    %c0_i32_1 = arith.constant 0 : i32
    return %c0_i32, %c0_i32_0 : i32, i32
  }
  func.func @transform_12(%arg0: i32) -> (i32, i32) {
    %c0_i32 = arith.constant 0 : i32
    %c0_i32_0 = arith.constant 0 : i32
    %c0_i32_1 = arith.constant 0 : i32
    return %c0_i32, %c0_i32_0 : i32, i32
  }
  func.func @transform_13(%arg0: i32) -> (i32, i32) {
    %c0_i32 = arith.constant 0 : i32
    %c0_i32_0 = arith.constant 0 : i32
    %c0_i32_1 = arith.constant 0 : i32
    return %c0_i32, %c0_i32_0 : i32, i32
  }
  func.func @transform_14(%arg0: i32) -> (i32, i32) {
    %c0_i32 = arith.constant 0 : i32
    %c0_i32_0 = arith.constant 0 : i32
    %c0_i32_1 = arith.constant 0 : i32
    return %c0_i32, %c0_i32_0 : i32, i32
  }
  func.func @transform_15(%arg0: i32) -> (i32, i32) {
    %c0_i32 = arith.constant 0 : i32
    %c0_i32_0 = arith.constant 0 : i32
    %c0_i32_1 = arith.constant 0 : i32
    return %c0_i32, %c0_i32_0 : i32, i32
  }
}

</mosaic_0001>

<llo_original>
// kernel: _lambda_.3
$region0: #{_lambda_.3}
  #allocation0 [shape = 'u32[]', space=smem, size = 0x4, offset = 0x4, fixed_abs, tag = 'smem constant byte address 0x4 - core index']
  #allocation1 [shape = 'u32[72,128]{1,0:T(1,128)}', space=vmem, size = 0x9000, scoped, tag = 'internal scratch']
  #allocation2 [shape = 'f32[8,128]{1,0:T(8,128)}', space=vmem, size = 0x1000, scoped, tag = 'scratch operand']
  #allocation3 [shape = 'f32[8,128]{1,0:T(8,128)}', space=vmem, size = 0x1000, scoped, tag = 'scratch operand']
  #allocation4 [shape = 'f32[4,8,128]{2,1,0:T(8,128)}', space=vmem, size = 0x4000, scoped, tag = 'scratch operand']
  #allocation5 [shape = 'f32[4,8,128]{2,1,0:T(8,128)}', space=vmem, size = 0x4000, scoped, tag = 'scratch operand']
  %s0 = inlined_call_operand.vmem [shape: bf16[8,8,128], index: 0, kind: input, shape index: {}, may-alias: {0,1}]
  %s1 = inlined_call_operand.vmem [shape: bf16[8,8,128], index: 1, kind: input, shape index: {}, may-alias: {0,1}]
  %s2 = inlined_call_operand.vmem [shape: bf16[128,128], index: 2, kind: input, shape index: {}]
  %s3 = inlined_call_operand.vmem [shape: bf16[128,128], index: 3, kind: input, shape index: {}]
  %s4 = inlined_call_operand.vmem [shape: bf16[128,128], index: 4, kind: input, shape index: {}]
  %s5 = inlined_call_operand.vmem [shape: bf16[128,128], index: 5, kind: input, shape index: {}]
  %s6 = inlined_call_operand.vmem [shape: f32[1,128], index: 6, kind: input, shape index: {}]
  %s7 = inlined_call_operand.vmem [shape: f32[1,128], index: 7, kind: input, shape index: {}]
  %s8 = inlined_call_operand.vmem [shape: bf16[8,8,128], index: 8, kind: output, shape index: {0}]
  %s9 = inlined_call_operand.vmem [shape: bf16[8,8,128], index: 9, kind: output, shape index: {1}]
  %s10 = inlined_call_operand.vmem [shape: f32[8,128], index: 10, kind: output, shape index: {2}]
  %11 = xla_tuple %s8, %s9, %s10
  %s12 = sld [smem:[#allocation0]]
  $region89: #{_lambda_.3} parent=0
    _
  %s14 = ssub.s32 1, %s12
  %s15 = scalar_select 0, %s14, %s12
  loop: start=0, step=1, limit=4
  $region2: #{_lambda_.3} parent=0 // loop_pre_header
    _
  $region3: #{_lambda_.3} parent=0 // loop_header
    %s17 = sphi 0, %s21
    %p18 = scmp.ge.s32.totalorder %s17, 4
    %s27 = sphi 0, %s29
    %s30 = sphi 0, %s27
    %s31 = sphi 0, %s30
    %s47 = sphi 0, %s31
    %s55 = sphi 0, %s57
    %s58 = sphi 0, %s55
    %s59 = sphi 0, %s58
    %s75 = sphi 0, %s59
    %s79 = sphi 0, %s79
    %s81 = sphi 0, %s79
    %s82 = sphi 0, %s81
    %s96 = sphi 0, %s82
    %s100 = sphi 0, %s100
    %s102 = sphi 0, %s100
    %s103 = sphi 0, %s102
    %s117 = sphi 0, %s103
    %s121 = sphi 0, %s121
    %s123 = sphi 0, %s121
    %s124 = sphi 0, %s123
    %s138 = sphi 0, %s124
    %s142 = sphi 0, %s142
    %s144 = sphi 0, %s142
    %s145 = sphi 0, %s144
    %s159 = sphi 0, %s145
    %s163 = sphi 0, %s163
    %s165 = sphi 0, %s163
    %s166 = sphi 0, %s165
    %s180 = sphi 0, %s166
    %s184 = sphi 0, %s184
    %s186 = sphi 0, %s184
    %s187 = sphi 0, %s186
    %s201 = sphi 0, %s187
    %s207 = sphi 0, %s209
    %s210 = sphi 0, %s207
    %s211 = sphi 0, %s210
    %s227 = sphi 0, %s211
    %s235 = sphi 0, %s237
    %s238 = sphi 0, %s235
    %s239 = sphi 0, %s238
    %s255 = sphi 0, %s239
    %s259 = sphi 0, %s259
    %s261 = sphi 0, %s259
    %s262 = sphi 0, %s261
    %s276 = sphi 0, %s262
  $region4: #{_lambda_.3} parent=0 // loop_header_branch
    %20 = sbr.rel (%p18) target = $region8
  $region5: #{_lambda_.3} parent=0 // loop_body
    %s22 = ssub.s32 %s17, 1
    %s23 = ssub.s32 %s17, 2
    %s24 = sadd.s32 %s17, 1
    %s25 = ssub.s32 %s17, %s24
    %p26 = scmp.eq.s32.totalorder %s25, 0
    %s28 = sadd.s32 %s27, 1
    %s29 = scalar_select %p26, %s27, %s28
    %p32 = pneg %p26
    %p33 = scmp.eq.s32.totalorder %s17, 1
    %p34 = por %p32, %p33
    %p35 = scmp.ne.s32.totalorder %s27, %s30
    %p36 = scmp.eq.s32.totalorder %s17, 0
    %p37 = por %p35, %p36
    %p38 = scmp.ne.s32.totalorder %s27, %s30
    %p39 = scmp.eq.s32.totalorder %s22, 1
    %p40 = por %p38, %p39
    %p41 = scmp.ne.s32.totalorder %s30, %s31
    %p42 = scmp.eq.s32.totalorder %s22, 0
    %p43 = por %p41, %p42
    %p44 = scmp.ne.s32.totalorder %s30, %s31
    %p45 = scmp.eq.s32.totalorder %s23, 1
    %p46 = por %p44, %p45
    %p48 = scmp.ne.s32.totalorder %s31, %s47
    %p49 = scmp.eq.s32.totalorder %s23, 0
    %p50 = por %p48, %p49
    %s51 = ssub.s32 1, %s17
    %s52 = ssub.s32 1, %s24
    %s53 = ssub.s32 %s51, %s52
    %p54 = scmp.eq.s32.totalorder %s53, 0
    %s56 = sadd.s32 %s55, 1
    %s57 = scalar_select %p54, %s55, %s56
    %p60 = pneg %p54
    %p61 = scmp.eq.s32.totalorder %s17, 1
    %p62 = por %p60, %p61
    %p63 = scmp.ne.s32.totalorder %s55, %s58
    %p64 = scmp.eq.s32.totalorder %s17, 0
    %p65 = por %p63, %p64
    %p66 = scmp.ne.s32.totalorder %s55, %s58
    %p67 = scmp.eq.s32.totalorder %s22, 1
    %p68 = por %p66, %p67
    %p69 = scmp.ne.s32.totalorder %s58, %s59
    %p70 = scmp.eq.s32.totalorder %s22, 0
    %p71 = por %p69, %p70
    %p72 = scmp.ne.s32.totalorder %s58, %s59
    %p73 = scmp.eq.s32.totalorder %s23, 1
    %p74 = por %p72, %p73
    %p76 = scmp.ne.s32.totalorder %s59, %s75
    %p77 = scmp.eq.s32.totalorder %s23, 0
    %p78 = por %p76, %p77
    %s80 = sadd.s32 %s79, 1
    %p83 = scmp.eq.s32.totalorder %s17, 1
    %p84 = scmp.ne.s32.totalorder %s79, %s81
    %p85 = scmp.eq.s32.totalorder %s17, 0
    %p86 = por %p84, %p85
    %p87 = scmp.ne.s32.totalorder %s79, %s81
    %p88 = scmp.eq.s32.totalorder %s22, 1
    %p89 = por %p87, %p88
    %p90 = scmp.ne.s32.totalorder %s81, %s82
    %p91 = scmp.eq.s32.totalorder %s22, 0
    %p92 = por %p90, %p91
    %p93 = scmp.ne.s32.totalorder %s81, %s82
    %p94 = scmp.eq.s32.totalorder %s23, 1
    %p95 = por %p93, %p94
    %p97 = scmp.ne.s32.totalorder %s82, %s96
    %p98 = scmp.eq.s32.totalorder %s23, 0
    %p99 = por %p97, %p98
    %s101 = sadd.s32 %s100, 1
    %p104 = scmp.eq.s32.totalorder %s17, 1
    %p105 = scmp.ne.s32.totalorder %s100, %s102
    %p106 = scmp.eq.s32.totalorder %s17, 0
    %p107 = por %p105, %p106
    %p108 = scmp.ne.s32.totalorder %s100, %s102
    %p109 = scmp.eq.s32.totalorder %s22, 1
    %p110 = por %p108, %p109
    %p111 = scmp.ne.s32.totalorder %s102, %s103
    %p112 = scmp.eq.s32.totalorder %s22, 0
    %p113 = por %p111, %p112
    %p114 = scmp.ne.s32.totalorder %s102, %s103
    %p115 = scmp.eq.s32.totalorder %s23, 1
    %p116 = por %p114, %p115
    %p118 = scmp.ne.s32.totalorder %s103, %s117
    %p119 = scmp.eq.s32.totalorder %s23, 0
    %p120 = por %p118, %p119
    %s122 = sadd.s32 %s121, 1
    %p125 = scmp.eq.s32.totalorder %s17, 1
    %p126 = scmp.ne.s32.totalorder %s121, %s123
    %p127 = scmp.eq.s32.totalorder %s17, 0
    %p128 = por %p126, %p127
    %p129 = scmp.ne.s32.totalorder %s121, %s123
    %p130 = scmp.eq.s32.totalorder %s22, 1
    %p131 = por %p129, %p130
    %p132 = scmp.ne.s32.totalorder %s123, %s124
    %p133 = scmp.eq.s32.totalorder %s22, 0
    %p134 = por %p132, %p133
    %p135 = scmp.ne.s32.totalorder %s123, %s124
    %p136 = scmp.eq.s32.totalorder %s23, 1
    %p137 = por %p135, %p136
    %p139 = scmp.ne.s32.totalorder %s124, %s138
    %p140 = scmp.eq.s32.totalorder %s23, 0
    %p141 = por %p139, %p140
    %s143 = sadd.s32 %s142, 1
    %p146 = scmp.eq.s32.totalorder %s17, 1
    %p147 = scmp.ne.s32.totalorder %s142, %s144
    %p148 = scmp.eq.s32.totalorder %s17, 0
    %p149 = por %p147, %p148
    %p150 = scmp.ne.s32.totalorder %s142, %s144
    %p151 = scmp.eq.s32.totalorder %s22, 1
    %p152 = por %p150, %p151
    %p153 = scmp.ne.s32.totalorder %s144, %s145
    %p154 = scmp.eq.s32.totalorder %s22, 0
    %p155 = por %p153, %p154
    %p156 = scmp.ne.s32.totalorder %s144, %s145
    %p157 = scmp.eq.s32.totalorder %s23, 1
    %p158 = por %p156, %p157
    %p160 = scmp.ne.s32.totalorder %s145, %s159
    %p161 = scmp.eq.s32.totalorder %s23, 0
    %p162 = por %p160, %p161
    %s164 = sadd.s32 %s163, 1
    %p167 = scmp.eq.s32.totalorder %s17, 1
    %p168 = scmp.ne.s32.totalorder %s163, %s165
    %p169 = scmp.eq.s32.totalorder %s17, 0
    %p170 = por %p168, %p169
    %p171 = scmp.ne.s32.totalorder %s163, %s165
    %p172 = scmp.eq.s32.totalorder %s22, 1
    %p173 = por %p171, %p172
    %p174 = scmp.ne.s32.totalorder %s165, %s166
    %p175 = scmp.eq.s32.totalorder %s22, 0
    %p176 = por %p174, %p175
    %p177 = scmp.ne.s32.totalorder %s165, %s166
    %p178 = scmp.eq.s32.totalorder %s23, 1
    %p179 = por %p177, %p178
    %p181 = scmp.ne.s32.totalorder %s166, %s180
    %p182 = scmp.eq.s32.totalorder %s23, 0
    %p183 = por %p181, %p182
    %s185 = sadd.s32 %s184, 1
    %p188 = scmp.eq.s32.totalorder %s17, 1
    %p189 = scmp.ne.s32.totalorder %s184, %s186
    %p190 = scmp.eq.s32.totalorder %s17, 0
    %p191 = por %p189, %p190
    %p192 = scmp.ne.s32.totalorder %s184, %s186
    %p193 = scmp.eq.s32.totalorder %s22, 1
    %p194 = por %p192, %p193
    %p195 = scmp.ne.s32.totalorder %s186, %s187
    %p196 = scmp.eq.s32.totalorder %s22, 0
    %p197 = por %p195, %p196
    %p198 = scmp.ne.s32.totalorder %s186, %s187
    %p199 = scmp.eq.s32.totalorder %s23, 1
    %p200 = por %p198, %p199
    %p202 = scmp.ne.s32.totalorder %s187, %s201
    %p203 = scmp.eq.s32.totalorder %s23, 0
    %p204 = por %p202, %p203
    %s205 = ssub.s32 %s17, %s24
    %p206 = scmp.eq.s32.totalorder %s205, 0
    %s208 = sadd.s32 %s207, 1
    %s209 = scalar_select %p206, %s207, %s208
    %p212 = pneg %p206
    %p213 = scmp.eq.s32.totalorder %s17, 1
    %p214 = por %p212, %p213
    %p215 = scmp.ne.s32.totalorder %s207, %s210
    %p216 = scmp.eq.s32.totalorder %s17, 0
    %p217 = por %p215, %p216
    %p218 = scmp.ne.s32.totalorder %s207, %s210
    %p219 = scmp.eq.s32.totalorder %s22, 1
    %p220 = por %p218, %p219
    %p221 = scmp.ne.s32.totalorder %s210, %s211
    %p222 = scmp.eq.s32.totalorder %s22, 0
    %p223 = por %p221, %p222
    %p224 = scmp.ne.s32.totalorder %s210, %s211
    %p225 = scmp.eq.s32.totalorder %s23, 1
    %p226 = por %p224, %p225
    %p228 = scmp.ne.s32.totalorder %s211, %s227
    %p229 = scmp.eq.s32.totalorder %s23, 0
    %p230 = por %p228, %p229
    %s231 = ssub.s32 1, %s17
    %s232 = ssub.s32 1, %s24
    %s233 = ssub.s32 %s231, %s232
    %p234 = scmp.eq.s32.totalorder %s233, 0
    %s236 = sadd.s32 %s235, 1
    %s237 = scalar_select %p234, %s235, %s236
    %p240 = pneg %p234
    %p241 = scmp.eq.s32.totalorder %s17, 1
    %p242 = por %p240, %p241
    %p243 = scmp.ne.s32.totalorder %s235, %s238
    %p244 = scmp.eq.s32.totalorder %s17, 0
    %p245 = por %p243, %p244
    %p246 = scmp.ne.s32.totalorder %s235, %s238
    %p247 = scmp.eq.s32.totalorder %s22, 1
    %p248 = por %p246, %p247
    %p249 = scmp.ne.s32.totalorder %s238, %s239
    %p250 = scmp.eq.s32.totalorder %s22, 0
    %p251 = por %p249, %p250
    %p252 = scmp.ne.s32.totalorder %s238, %s239
    %p253 = scmp.eq.s32.totalorder %s23, 1
    %p254 = por %p252, %p253
    %p256 = scmp.ne.s32.totalorder %s239, %s255
    %p257 = scmp.eq.s32.totalorder %s23, 0
    %p258 = por %p256, %p257
    %s260 = sadd.s32 %s259, 1
    %p263 = scmp.eq.s32.totalorder %s17, 1
    %p264 = scmp.ne.s32.totalorder %s259, %s261
    %p265 = scmp.eq.s32.totalorder %s17, 0
    %p266 = por %p264, %p265
    %p267 = scmp.ne.s32.totalorder %s259, %s261
    %p268 = scmp.eq.s32.totalorder %s22, 1
    %p269 = por %p267, %p268
    %p270 = scmp.ne.s32.totalorder %s261, %s262
    %p271 = scmp.eq.s32.totalorder %s22, 0
    %p272 = por %p270, %p271
    %p273 = scmp.ne.s32.totalorder %s261, %s262
    %p274 = scmp.eq.s32.totalorder %s23, 1
    %p275 = por %p273, %p274
    %p277 = scmp.ne.s32.totalorder %s262, %s276
    %p278 = scmp.eq.s32.totalorder %s23, 0
    %p279 = por %p277, %p278
    %p280 = scmp.le.s32.totalorder 1, %s17
    %p281 = scmp.lt.s32.totalorder %s17, 3
    %p282 = pnand %p280, %p281
    %p283 = pneg %p282
    // Predicated region
    $region9: #{_lambda_.3} parent=5 // pred_check
      _
    $region10: #{_lambda_.3} parent=5 // pred_check_branch
      %285 = sbr.rel (%p282) target = $region12
    $region11: #{_lambda_.3} parent=5 // pred_region
      %s286 = ssub.s32 %s17, 1
      // Predicated region
      $region13: #{_lambda_.3} parent=11 // pred_check
        %p287 = pneg %p92
      $region14: #{_lambda_.3} parent=11 // pred_check_branch
        %289 = sbr.rel (%p287) target = $region16
      $region15: #{_lambda_.3} parent=11 // pred_region
        _
      $region16: #{_lambda_.3} parent=11 // pred_fallthru
        _
      // Predicated region
      $region17: #{_lambda_.3} parent=11 // pred_check
        %p290 = pneg %p113
      $region18: #{_lambda_.3} parent=11 // pred_check_branch
        %292 = sbr.rel (%p290) target = $region20
      $region19: #{_lambda_.3} parent=11 // pred_region
        _
      $region20: #{_lambda_.3} parent=11 // pred_fallthru
        _
      // Predicated region
      $region21: #{_lambda_.3} parent=11 // pred_check
        %p293 = pneg %p134
      $region22: #{_lambda_.3} parent=11 // pred_check_branch
        %295 = sbr.rel (%p293) target = $region24
      $region23: #{_lambda_.3} parent=11 // pred_region
        _
      $region24: #{_lambda_.3} parent=11 // pred_fallthru
        _
      // Predicated region
      $region25: #{_lambda_.3} parent=11 // pred_check
        %p296 = pneg %p155
      $region26: #{_lambda_.3} parent=11 // pred_check_branch
        %298 = sbr.rel (%p296) target = $region28
      $region27: #{_lambda_.3} parent=11 // pred_region
        _
      $region28: #{_lambda_.3} parent=11 // pred_fallthru
        _
      // Predicated region
      $region29: #{_lambda_.3} parent=11 // pred_check
        %p299 = pneg %p176
      $region30: #{_lambda_.3} parent=11 // pred_check_branch
        %301 = sbr.rel (%p299) target = $region32
      $region31: #{_lambda_.3} parent=11 // pred_region
        _
      $region32: #{_lambda_.3} parent=11 // pred_fallthru
        _
      // Predicated region
      $region33: #{_lambda_.3} parent=11 // pred_check
        %p302 = pneg %p197
      $region34: #{_lambda_.3} parent=11 // pred_check_branch
        %304 = sbr.rel (%p302) target = $region36
      $region35: #{_lambda_.3} parent=11 // pred_region
        _
      $region36: #{_lambda_.3} parent=11 // pred_fallthru
        _
    $region12: #{_lambda_.3} parent=5 // pred_fallthru
      _
    %p305 = scmp.lt.s32.totalorder %s17, 2
    // Predicated region
    $region37: #{_lambda_.3} parent=5 // pred_check
      %p306 = pneg %p305
    $region38: #{_lambda_.3} parent=5 // pred_check_branch
      %308 = sbr.rel (%p306) target = $region40
    $region39: #{_lambda_.3} parent=5 // pred_region
      // Predicated region
      $region41: #{_lambda_.3} parent=39 // pred_check
        %p309 = pneg %p37
      $region42: #{_lambda_.3} parent=39 // pred_check_branch
        %311 = sbr.rel (%p309) target = $region44
      $region43: #{_lambda_.3} parent=39 // pred_region
        %s312 = smul.u32 4, %s17
        %p313 = scmp.lt.s32.totalorder %s312, 7
        %s314 = scalar_select %p313, %s312, 7
        %s315 = smul.addr %s314, 4
        %s316 = scalar_lea.vmem %s0, %s315
        %s317 = smul.u32 4, %s17
      $region44: #{_lambda_.3} parent=39 // pred_fallthru
        _
      // Predicated region
      $region45: #{_lambda_.3} parent=39 // pred_check
        %p318 = pneg %p65
      $region46: #{_lambda_.3} parent=39 // pred_check_branch
        %320 = sbr.rel (%p318) target = $region48
      $region47: #{_lambda_.3} parent=39 // pred_region
        %s321 = ssub.s32 1, %s17
        %s322 = smul.u32 4, %s321
        %p323 = scmp.lt.s32.totalorder %s322, 7
        %s324 = scalar_select %p323, %s322, 7
        %s325 = smul.addr %s324, 4
        %s326 = scalar_lea.vmem %s1, %s325
        %s327 = ssub.s32 1, %s17
        %s328 = smul.u32 4, %s327
      $region48: #{_lambda_.3} parent=39 // pred_fallthru
        _
    $region40: #{_lambda_.3} parent=5 // pred_fallthru
      _
    %p329 = scmp.le.s32.totalorder 1, %s17
    %p330 = scmp.lt.s32.totalorder %s17, 3
    %p331 = pnand %p329, %p330
    %p332 = pneg %p331
    // Predicated region
    $region49: #{_lambda_.3} parent=5 // pred_check
      _
    $region50: #{_lambda_.3} parent=5 // pred_check_branch
      %334 = sbr.rel (%p331) target = $region52
    $region51: #{_lambda_.3} parent=5 // pred_region
      %s335 = ssub.s32 %s17, 1
      %s336 = smul.u32 4, %s22
      %p337 = scmp.lt.s32.totalorder %s336, 7
      %s338 = scalar_select %p337, %s336, 7
      %s339 = smul.addr %s338, 4
      %s340 = scalar_lea.vmem %s0, %s339
      %p341 = pneg %p43
      %p342 = pneg %p40
      %s343 = ssub.s32 1, %s22
      %s344 = smul.u32 4, %s343
      %p345 = scmp.lt.s32.totalorder %s344, 7
      %s346 = scalar_select %p345, %s344, 7
      %s347 = smul.addr %s346, 4
      %s348 = scalar_lea.vmem %s1, %s347
      %p349 = pneg %p71
      %p350 = pneg %p68
      %p351 = pneg %p92
      %p352 = pneg %p89
      %p353 = pneg %p113
      %p354 = pneg %p110
      %p355 = pneg %p134
      %p356 = pneg %p131
      %p357 = pneg %p155
      %p358 = pneg %p152
      %p359 = pneg %p176
      %p360 = pneg %p173
      %p361 = pneg %p197
      %p362 = pneg %p194
      %p363 = pneg %p223
      %p364 = pneg %p220
      %s365 = smul.u32 4, %s22
      %p366 = scmp.lt.s32.totalorder %s365, 7
      %s367 = scalar_select %p366, %s365, 7
      %s368 = smul.addr %s367, 4
      %s369 = scalar_lea.vmem %s8, %s368
      %p370 = pneg %p251
      %p371 = pneg %p248
      %s372 = ssub.s32 1, %s22
      %s373 = smul.u32 4, %s372
      %p374 = scmp.lt.s32.totalorder %s373, 7
      %s375 = scalar_select %p374, %s373, 7
      %s376 = smul.addr %s375, 4
      %s377 = scalar_lea.vmem %s9, %s376
      %p378 = pneg %p272
      %p379 = pneg %p269
      %s380 = smul.u32 4, %s22
      %p381 = scmp.lt.s32.totalorder %s380, 7
      %s382 = scalar_select %p381, %s380, 7
      %s383 = smul.addr %s382, 4
      %s384 = scalar_lea.vmem %s0, %s383
      %s385 = smul.u32 4, %s22
      %s386 = ssub.s32 1, %s22
      %s387 = smul.u32 4, %s386
      %p388 = scmp.lt.s32.totalorder %s387, 7
      %s389 = scalar_select %p388, %s387, 7
      %s390 = smul.addr %s389, 4
      %s391 = scalar_lea.vmem %s1, %s390
      %s392 = ssub.s32 1, %s22
      %s393 = smul.u32 4, %s392
      %s394 = smul.u32 4, %s22
      %p395 = scmp.lt.s32.totalorder %s394, 7
      %s396 = scalar_select %p395, %s394, 7
      %s397 = smul.addr %s396, 4
      %s398 = scalar_lea.vmem %s8, %s397
      %s399 = smul.u32 4, %s22
      %s400 = ssub.s32 1, %s22
      %s401 = smul.u32 4, %s400
      %p402 = scmp.lt.s32.totalorder %s401, 7
      %s403 = scalar_select %p402, %s401, 7
      %s404 = smul.addr %s403, 4
      %s405 = scalar_lea.vmem %s9, %s404
      %s406 = ssub.s32 1, %s22
      %s407 = smul.u32 4, %s406
      %p408 = scmp.eq.s32.totalorder %s22, 0
      // Predicated region
      $region53: #{_lambda_.3} parent=51 // pred_check
        %p409 = pneg %p408
      $region54: #{_lambda_.3} parent=51 // pred_check_branch
        %411 = sbr.rel (%p409) target = $region56
      $region55: #{_lambda_.3} parent=51 // pred_region
        %412 = vst [vmem:[#allocation2] sm:$0xff] 0.0
        %413 = vst [vmem:[#allocation3] sm:$0xff] 0.0
      $region56: #{_lambda_.3} parent=51 // pred_fallthru
        _
      %v414 = vld [vmem:[%s384] sm:$0xf]
      %v415 = vld [vmem:[%s384 + $0x4] sm:$0xf]
      %v416 = vld [vmem:[%s384 + $0x8] sm:$0xf]
      %v417 = vld [vmem:[%s384 + $0xc] sm:$0xf]
      %v418 = vld [vmem:[%s2] sm:$0xf]
      %v419 = vld [vmem:[%s2 + $0x4] sm:$0xf]
      %v420 = vld [vmem:[%s2 + $0x8] sm:$0xf]
      %v421 = vld [vmem:[%s2 + $0xc] sm:$0xf]
      %v422 = vld [vmem:[%s2 + $0x10] sm:$0xf]
      %v423 = vld [vmem:[%s2 + $0x14] sm:$0xf]
      %v424 = vld [vmem:[%s2 + $0x18] sm:$0xf]
      %v425 = vld [vmem:[%s2 + $0x1c] sm:$0xf]
      %v426 = vld [vmem:[%s2 + $0x20] sm:$0xf]
      %v427 = vld [vmem:[%s2 + $0x24] sm:$0xf]
      %v428 = vld [vmem:[%s2 + $0x28] sm:$0xf]
      %v429 = vld [vmem:[%s2 + $0x2c] sm:$0xf]
      %v430 = vld [vmem:[%s2 + $0x30] sm:$0xf]
      %v431 = vld [vmem:[%s2 + $0x34] sm:$0xf]
      %v432 = vld [vmem:[%s2 + $0x38] sm:$0xf]
      %v433 = vld [vmem:[%s2 + $0x3c] sm:$0xf]
      %v434 = vld [vmem:[%s6] sm:$0x1]
      %v436 = vperm.slane %v434, 0
      %v442 = vunpack.c.l.b16 %v414
      %v443 = vunpack.c.l.b16 %v415
      %v444 = vunpack.c.l.b16 %v416
      %v445 = vunpack.c.l.b16 %v417
      %v446 = vpack.c.b16 %v443, %v442
      %v447 = vpack.c.b16 %v445, %v444
      %v466 = vunpack.c.l.b16 %v418
      %v467 = vunpack.c.l.b16 %v419
      %v468 = vunpack.c.l.b16 %v420
      %v469 = vunpack.c.l.b16 %v421
      %v470 = vunpack.c.l.b16 %v422
      %v471 = vunpack.c.l.b16 %v423
      %v472 = vunpack.c.l.b16 %v424
      %v473 = vunpack.c.l.b16 %v425
      %v474 = vunpack.c.l.b16 %v426
      %v475 = vunpack.c.l.b16 %v427
      %v476 = vunpack.c.l.b16 %v428
      %v477 = vunpack.c.l.b16 %v429
      %v478 = vunpack.c.l.b16 %v430
      %v479 = vunpack.c.l.b16 %v431
      %v480 = vunpack.c.l.b16 %v432
      %v481 = vunpack.c.l.b16 %v433
      %v482 = vpack.c.b16 %v467, %v466
      %v483 = vpack.c.b16 %v469, %v468
      %v484 = vpack.c.b16 %v471, %v470
      %v485 = vpack.c.b16 %v473, %v472
      %v486 = vpack.c.b16 %v475, %v474
      %v487 = vpack.c.b16 %v477, %v476
      %v488 = vpack.c.b16 %v479, %v478
      %v489 = vpack.c.b16 %v481, %v480
      %498 = vmatpush.bf16.msra.mxu0 %v489
      %499 = vmatpush.bf16.msra.mxu0 %v488
      %500 = vmatpush.bf16.msra.mxu0 %v487
      %501 = vmatpush.bf16.msra.mxu0 %v486
      %502 = vmatpush.bf16.msra.mxu0 %v485
      %503 = vmatpush.bf16.msra.mxu0 %v484
      %504 = vmatpush.bf16.msra.mxu0 %v483
      %505 = vmatpush.bf16.msra.mxu0 %v482
      %506 = vmatmul.bf16.gmra.mxu0 %v446
      %v507 = vpop.f32.mrf.mxu0
      %v508 = vadd.f32 %v436, %v507
      %v509 = vpop.f32.mrf.mxu0
      %v510 = vadd.f32 %v436, %v509
      %511 = vmatmul.bf16.gmra.mxu0 %v447
      %v512 = vpop.f32.mrf.mxu0
      %v513 = vadd.f32 %v436, %v512
      %v514 = vpop.f32.mrf.mxu0
      %v515 = vadd.f32 %v436, %v514
      %516 = vdwg.mxu0
      %517 = vst [vmem:[#allocation4] sm:$0xff] %v508
      %518 = vst [vmem:[#allocation4 + $0x8] sm:$0xff] %v510
      %519 = vst [vmem:[#allocation4 + $0x10] sm:$0xff] %v513
      %520 = vst [vmem:[#allocation4 + $0x18] sm:$0xff] %v515
      %v521 = vld [vmem:[%s391] sm:$0xf]
      %v522 = vld [vmem:[%s391 + $0x4] sm:$0xf]
      %v523 = vld [vmem:[%s391 + $0x8] sm:$0xf]
      %v524 = vld [vmem:[%s391 + $0xc] sm:$0xf]
      %v525 = vld [vmem:[%s3] sm:$0xf]
      %v526 = vld [vmem:[%s3 + $0x4] sm:$0xf]
      %v527 = vld [vmem:[%s3 + $0x8] sm:$0xf]
      %v528 = vld [vmem:[%s3 + $0xc] sm:$0xf]
      %v529 = vld [vmem:[%s3 + $0x10] sm:$0xf]
      %v530 = vld [vmem:[%s3 + $0x14] sm:$0xf]
      %v531 = vld [vmem:[%s3 + $0x18] sm:$0xf]
      %v532 = vld [vmem:[%s3 + $0x1c] sm:$0xf]
      %v533 = vld [vmem:[%s3 + $0x20] sm:$0xf]
      %v534 = vld [vmem:[%s3 + $0x24] sm:$0xf]
      %v535 = vld [vmem:[%s3 + $0x28] sm:$0xf]
      %v536 = vld [vmem:[%s3 + $0x2c] sm:$0xf]
      %v537 = vld [vmem:[%s3 + $0x30] sm:$0xf]
      %v538 = vld [vmem:[%s3 + $0x34] sm:$0xf]
      %v539 = vld [vmem:[%s3 + $0x38] sm:$0xf]
      %v540 = vld [vmem:[%s3 + $0x3c] sm:$0xf]
      %v541 = vld [vmem:[%s7] sm:$0x1]
      %v543 = vperm.slane %v541, 0
      %v549 = vunpack.c.l.b16 %v521
      %v550 = vunpack.c.l.b16 %v522
      %v551 = vunpack.c.l.b16 %v523
      %v552 = vunpack.c.l.b16 %v524
      %v553 = vpack.c.b16 %v550, %v549
      %v554 = vpack.c.b16 %v552, %v551
      %v573 = vunpack.c.l.b16 %v525
      %v574 = vunpack.c.l.b16 %v526
      %v575 = vunpack.c.l.b16 %v527
      %v576 = vunpack.c.l.b16 %v528
      %v577 = vunpack.c.l.b16 %v529
      %v578 = vunpack.c.l.b16 %v530
      %v579 = vunpack.c.l.b16 %v531
      %v580 = vunpack.c.l.b16 %v532
      %v581 = vunpack.c.l.b16 %v533
      %v582 = vunpack.c.l.b16 %v534
      %v583 = vunpack.c.l.b16 %v535
      %v584 = vunpack.c.l.b16 %v536
      %v585 = vunpack.c.l.b16 %v537
      %v586 = vunpack.c.l.b16 %v538
      %v587 = vunpack.c.l.b16 %v539
      %v588 = vunpack.c.l.b16 %v540
      %v589 = vpack.c.b16 %v574, %v573
      %v590 = vpack.c.b16 %v576, %v575
      %v591 = vpack.c.b16 %v578, %v577
      %v592 = vpack.c.b16 %v580, %v579
      %v593 = vpack.c.b16 %v582, %v581
      %v594 = vpack.c.b16 %v584, %v583
      %v595 = vpack.c.b16 %v586, %v585
      %v596 = vpack.c.b16 %v588, %v587
      %605 = vmatpush.bf16.msra.mxu0 %v596
      %606 = vmatpush.bf16.msra.mxu0 %v595
      %607 = vmatpush.bf16.msra.mxu0 %v594
      %608 = vmatpush.bf16.msra.mxu0 %v593
      %609 = vmatpush.bf16.msra.mxu0 %v592
      %610 = vmatpush.bf16.msra.mxu0 %v591
      %611 = vmatpush.bf16.msra.mxu0 %v590
      %612 = vmatpush.bf16.msra.mxu0 %v589
      %613 = vmatmul.bf16.gmra.mxu0 %v553
      %v614 = vpop.f32.mrf.mxu0
      %v615 = vadd.f32 %v543, %v614
      %v616 = vpop.f32.mrf.mxu0
      %v617 = vadd.f32 %v543, %v616
      %618 = vmatmul.bf16.gmra.mxu0 %v554
      %v619 = vpop.f32.mrf.mxu0
      %v620 = vadd.f32 %v543, %v619
      %v621 = vpop.f32.mrf.mxu0
      %v622 = vadd.f32 %v543, %v621
      %623 = vdwg.mxu0
      %624 = vst [vmem:[#allocation5] sm:$0xff] %v615
      %625 = vst [vmem:[#allocation5 + $0x8] sm:$0xff] %v617
      %626 = vst [vmem:[#allocation5 + $0x10] sm:$0xff] %v620
      %627 = vst [vmem:[#allocation5 + $0x18] sm:$0xff] %v622
      %v628 = vld [vmem:[%s4] sm:$0xf]
      %v629 = vld [vmem:[%s4 + $0x4] sm:$0xf]
      %v630 = vld [vmem:[%s4 + $0x8] sm:$0xf]
      %v631 = vld [vmem:[%s4 + $0xc] sm:$0xf]
      %v632 = vld [vmem:[%s4 + $0x10] sm:$0xf]
      %v633 = vld [vmem:[%s4 + $0x14] sm:$0xf]
      %v634 = vld [vmem:[%s4 + $0x18] sm:$0xf]
      %v635 = vld [vmem:[%s4 + $0x1c] sm:$0xf]
      %v636 = vld [vmem:[%s4 + $0x20] sm:$0xf]
      %v637 = vld [vmem:[%s4 + $0x24] sm:$0xf]
      %v638 = vld [vmem:[%s4 + $0x28] sm:$0xf]
      %v639 = vld [vmem:[%s4 + $0x2c] sm:$0xf]
      %v640 = vld [vmem:[%s4 + $0x30] sm:$0xf]
      %v641 = vld [vmem:[%s4 + $0x34] sm:$0xf]
      %v642 = vld [vmem:[%s4 + $0x38] sm:$0xf]
      %v643 = vld [vmem:[%s4 + $0x3c] sm:$0xf]
      %v644 = vld [vmem:[%s5] sm:$0xf]
      %v645 = vld [vmem:[%s5 + $0x4] sm:$0xf]
      %v646 = vld [vmem:[%s5 + $0x8] sm:$0xf]
      %v647 = vld [vmem:[%s5 + $0xc] sm:$0xf]
      %v648 = vld [vmem:[%s5 + $0x10] sm:$0xf]
      %v649 = vld [vmem:[%s5 + $0x14] sm:$0xf]
      %v650 = vld [vmem:[%s5 + $0x18] sm:$0xf]
      %v651 = vld [vmem:[%s5 + $0x1c] sm:$0xf]
      %v652 = vld [vmem:[%s5 + $0x20] sm:$0xf]
      %v653 = vld [vmem:[%s5 + $0x24] sm:$0xf]
      %v654 = vld [vmem:[%s5 + $0x28] sm:$0xf]
      %v655 = vld [vmem:[%s5 + $0x2c] sm:$0xf]
      %v656 = vld [vmem:[%s5 + $0x30] sm:$0xf]
      %v657 = vld [vmem:[%s5 + $0x34] sm:$0xf]
      %v658 = vld [vmem:[%s5 + $0x38] sm:$0xf]
      %v659 = vld [vmem:[%s5 + $0x3c] sm:$0xf]
      %v660 = vld [vmem:[#allocation2] sm:$0xff]
      %v661 = vld [vmem:[#allocation3] sm:$0xff]
      %v662 = vld [vmem:[#allocation4] sm:$0xff]
      %v663 = vpack.c.bf16 %v660, %v660
      %v680 = vunpack.c.l.b16 %v628
      %v681 = vunpack.c.l.b16 %v629
      %v682 = vunpack.c.l.b16 %v630
      %v683 = vunpack.c.l.b16 %v631
      %v684 = vunpack.c.l.b16 %v632
      %v685 = vunpack.c.l.b16 %v633
      %v686 = vunpack.c.l.b16 %v634
      %v687 = vunpack.c.l.b16 %v635
      %v688 = vunpack.c.l.b16 %v636
      %v689 = vunpack.c.l.b16 %v637
      %v690 = vunpack.c.l.b16 %v638
      %v691 = vunpack.c.l.b16 %v639
      %v692 = vunpack.c.l.b16 %v640
      %v693 = vunpack.c.l.b16 %v641
      %v694 = vunpack.c.l.b16 %v642
      %v695 = vunpack.c.l.b16 %v643
      %v696 = vpack.c.b16 %v681, %v680
      %v697 = vpack.c.b16 %v683, %v682
      %v698 = vpack.c.b16 %v685, %v684
      %v699 = vpack.c.b16 %v687, %v686
      %v700 = vpack.c.b16 %v689, %v688
      %v701 = vpack.c.b16 %v691, %v690
      %v702 = vpack.c.b16 %v693, %v692
      %v703 = vpack.c.b16 %v695, %v694
      %712 = vmatpush.bf16.msra.mxu0 %v703
      %713 = vmatpush.bf16.msra.mxu0 %v702
      %714 = vmatpush.bf16.msra.mxu0 %v701
      %715 = vmatpush.bf16.msra.mxu0 %v700
      %716 = vmatpush.bf16.msra.mxu0 %v699
      %717 = vmatpush.bf16.msra.mxu0 %v698
      %718 = vmatpush.bf16.msra.mxu0 %v697
      %719 = vmatpush.bf16.msra.mxu0 %v696
      %720 = vmatmul.bf16.gmra.mxu0 %v663
      %v721 = vpop.f32.mrf.mxu0
      %v722 = vadd.f32 0.0, %v721
      %v723 = vpop.f32.mrf.mxu0
      %724 = vdwg.mxu0
      %v725 = vadd.f32 %v662, %v722
      %v726 = vtanh.pop %v725
      %s727 = scalar_lea.vmem [#allocation5], 24
      %v728 = vld [vmem:[%s727] sm:$0xff]
      %v729 = vpack.c.bf16 %v661, %v661
      %v746 = vunpack.c.l.b16 %v644
      %v747 = vunpack.c.l.b16 %v645
      %v748 = vunpack.c.l.b16 %v646
      %v749 = vunpack.c.l.b16 %v647
      %v750 = vunpack.c.l.b16 %v648
      %v751 = vunpack.c.l.b16 %v649
      %v752 = vunpack.c.l.b16 %v650
      %v753 = vunpack.c.l.b16 %v651
      %v754 = vunpack.c.l.b16 %v652
      %v755 = vunpack.c.l.b16 %v653
      %v756 = vunpack.c.l.b16 %v654
      %v757 = vunpack.c.l.b16 %v655
      %v758 = vunpack.c.l.b16 %v656
      %v759 = vunpack.c.l.b16 %v657
      %v760 = vunpack.c.l.b16 %v658
      %v761 = vunpack.c.l.b16 %v659
      %v762 = vpack.c.b16 %v747, %v746
      %v763 = vpack.c.b16 %v749, %v748
      %v764 = vpack.c.b16 %v751, %v750
      %v765 = vpack.c.b16 %v753, %v752
      %v766 = vpack.c.b16 %v755, %v754
      %v767 = vpack.c.b16 %v757, %v756
      %v768 = vpack.c.b16 %v759, %v758
      %v769 = vpack.c.b16 %v761, %v760
      %778 = vmatpush.bf16.msra.mxu0 %v769
      %779 = vmatpush.bf16.msra.mxu0 %v768
      %780 = vmatpush.bf16.msra.mxu0 %v767
      %781 = vmatpush.bf16.msra.mxu0 %v766
      %782 = vmatpush.bf16.msra.mxu0 %v765
      %783 = vmatpush.bf16.msra.mxu0 %v764
      %784 = vmatpush.bf16.msra.mxu0 %v763
      %785 = vmatpush.bf16.msra.mxu0 %v762
      %786 = vmatmul.bf16.gmra.mxu0 %v729
      %v787 = vpop.f32.mrf.mxu0
      %v788 = vadd.f32 0.0, %v787
      %v789 = vpop.f32.mrf.mxu0
      %790 = vdwg.mxu0
      %v791 = vadd.f32 %v728, %v788
      %v792 = vtanh.pop %v791
      %793 = vst [vmem:[#allocation4] sm:$0xff] %v726
      %794 = vst [vmem:[%s727] sm:$0xff] %v792
      %s795 = scalar_lea.vmem [#allocation4], 8
      %v796 = vld [vmem:[%s795] sm:$0xff]
      %v797 = vpack.c.bf16 %v726, %v726
      %798 = vmatpush.bf16.msra.mxu0 %v703
      %799 = vmatpush.bf16.msra.mxu0 %v702
      %800 = vmatpush.bf16.msra.mxu0 %v701
      %801 = vmatpush.bf16.msra.mxu0 %v700
      %802 = vmatpush.bf16.msra.mxu0 %v699
      %803 = vmatpush.bf16.msra.mxu0 %v698
      %804 = vmatpush.bf16.msra.mxu0 %v697
      %805 = vmatpush.bf16.msra.mxu0 %v696
      %806 = vmatmul.bf16.gmra.mxu0 %v797
      %v807 = vpop.f32.mrf.mxu0
      %v808 = vadd.f32 0.0, %v807
      %v809 = vpop.f32.mrf.mxu0
      %810 = vdwg.mxu0
      %v811 = vadd.f32 %v796, %v808
      %v812 = vtanh.pop %v811
      %s813 = scalar_lea.vmem [#allocation5], 16
      %v814 = vld [vmem:[%s813] sm:$0xff]
      %v815 = vpack.c.bf16 %v792, %v792
      %816 = vmatpush.bf16.msra.mxu0 %v769
      %817 = vmatpush.bf16.msra.mxu0 %v768
      %818 = vmatpush.bf16.msra.mxu0 %v767
      %819 = vmatpush.bf16.msra.mxu0 %v766
      %820 = vmatpush.bf16.msra.mxu0 %v765
      %821 = vmatpush.bf16.msra.mxu0 %v764
      %822 = vmatpush.bf16.msra.mxu0 %v763
      %823 = vmatpush.bf16.msra.mxu0 %v762
      %824 = vmatmul.bf16.gmra.mxu0 %v815
      %v825 = vpop.f32.mrf.mxu0
      %v826 = vadd.f32 0.0, %v825
      %v827 = vpop.f32.mrf.mxu0
      %828 = vdwg.mxu0
      %v829 = vadd.f32 %v814, %v826
      %v830 = vtanh.pop %v829
      %831 = vst [vmem:[%s795] sm:$0xff] %v812
      %832 = vst [vmem:[%s813] sm:$0xff] %v830
      %s833 = scalar_lea.vmem [#allocation4], 16
      %v834 = vld [vmem:[%s833] sm:$0xff]
      %v835 = vpack.c.bf16 %v812, %v812
      %836 = vmatpush.bf16.msra.mxu0 %v703
      %837 = vmatpush.bf16.msra.mxu0 %v702
      %838 = vmatpush.bf16.msra.mxu0 %v701
      %839 = vmatpush.bf16.msra.mxu0 %v700
      %840 = vmatpush.bf16.msra.mxu0 %v699
      %841 = vmatpush.bf16.msra.mxu0 %v698
      %842 = vmatpush.bf16.msra.mxu0 %v697
      %843 = vmatpush.bf16.msra.mxu0 %v696
      %844 = vmatmul.bf16.gmra.mxu0 %v835
      %v845 = vpop.f32.mrf.mxu0
      %v846 = vadd.f32 0.0, %v845
      %v847 = vpop.f32.mrf.mxu0
      %848 = vdwg.mxu0
      %v849 = vadd.f32 %v834, %v846
      %v850 = vtanh.pop %v849
      %s851 = scalar_lea.vmem [#allocation5], 8
      %v852 = vld [vmem:[%s851] sm:$0xff]
      %v853 = vpack.c.bf16 %v830, %v830
      %854 = vmatpush.bf16.msra.mxu0 %v769
      %855 = vmatpush.bf16.msra.mxu0 %v768
      %856 = vmatpush.bf16.msra.mxu0 %v767
      %857 = vmatpush.bf16.msra.mxu0 %v766
      %858 = vmatpush.bf16.msra.mxu0 %v765
      %859 = vmatpush.bf16.msra.mxu0 %v764
      %860 = vmatpush.bf16.msra.mxu0 %v763
      %861 = vmatpush.bf16.msra.mxu0 %v762
      %862 = vmatmul.bf16.gmra.mxu0 %v853
      %v863 = vpop.f32.mrf.mxu0
      %v864 = vadd.f32 0.0, %v863
      %v865 = vpop.f32.mrf.mxu0
      %866 = vdwg.mxu0
      %v867 = vadd.f32 %v852, %v864
      %v868 = vtanh.pop %v867
      %869 = vst [vmem:[%s833] sm:$0xff] %v850
      %870 = vst [vmem:[%s851] sm:$0xff] %v868
      %s871 = scalar_lea.vmem [#allocation4], 24
      %v872 = vld [vmem:[%s871] sm:$0xff]
      %v873 = vpack.c.bf16 %v850, %v850
      %874 = vmatpush.bf16.msra.mxu0 %v703
      %875 = vmatpush.bf16.msra.mxu0 %v702
      %876 = vmatpush.bf16.msra.mxu0 %v701
      %877 = vmatpush.bf16.msra.mxu0 %v700
      %878 = vmatpush.bf16.msra.mxu0 %v699
      %879 = vmatpush.bf16.msra.mxu0 %v698
      %880 = vmatpush.bf16.msra.mxu0 %v697
      %881 = vmatpush.bf16.msra.mxu0 %v696
      %882 = vmatmul.bf16.gmra.mxu0 %v873
      %v883 = vpop.f32.mrf.mxu0
      %v884 = vadd.f32 0.0, %v883
      %v885 = vpop.f32.mrf.mxu0
      %886 = vdwg.mxu0
      %v887 = vadd.f32 %v872, %v884
      %v888 = vtanh.pop %v887
      %v889 = vld [vmem:[#allocation5] sm:$0xff]
      %v890 = vpack.c.bf16 %v868, %v868
      %891 = vmatpush.bf16.msra.mxu0 %v769
      %892 = vmatpush.bf16.msra.mxu0 %v768
      %893 = vmatpush.bf16.msra.mxu0 %v767
      %894 = vmatpush.bf16.msra.mxu0 %v766
      %895 = vmatpush.bf16.msra.mxu0 %v765
      %896 = vmatpush.bf16.msra.mxu0 %v764
      %897 = vmatpush.bf16.msra.mxu0 %v763
      %898 = vmatpush.bf16.msra.mxu0 %v762
      %899 = vmatmul.bf16.gmra.mxu0 %v890
      %v900 = vpop.f32.mrf.mxu0
      %v901 = vadd.f32 0.0, %v900
      %v902 = vpop.f32.mrf.mxu0
      %903 = vdwg.mxu0
      %v904 = vadd.f32 %v889, %v901
      %v905 = vtanh.pop %v904
      %906 = vst [vmem:[%s871] sm:$0xff] %v888
      %907 = vst [vmem:[#allocation5] sm:$0xff] %v905
      %908 = vst [vmem:[#allocation2] sm:$0xff] %v888
      %909 = vst [vmem:[#allocation3] sm:$0xff] %v905
      %v910 = vld [vmem:[#allocation4] sm:$0xff]
      %v911 = vld [vmem:[#allocation4 + $0x8] sm:$0xff]
      %v912 = vld [vmem:[#allocation4 + $0x10] sm:$0xff]
      %v913 = vld [vmem:[#allocation4 + $0x18] sm:$0xff]
      %v914 = vpack.c.bf16 %v910, %v910
      %v915 = vpack.c.bf16 %v911, %v911
      %v916 = vpack.c.bf16 %v912, %v912
      %v917 = vpack.c.bf16 %v913, %v913
      %918 = vst [vmem:[%s398] sm:$0xf] %v914
      %919 = vst [vmem:[%s398 + $0x4] sm:$0xf] %v915
      %920 = vst [vmem:[%s398 + $0x8] sm:$0xf] %v916
      %921 = vst [vmem:[%s398 + $0xc] sm:$0xf] %v917
      %v922 = vld [vmem:[#allocation5] sm:$0xff]
      %v923 = vld [vmem:[#allocation5 + $0x8] sm:$0xff]
      %v924 = vld [vmem:[#allocation5 + $0x10] sm:$0xff]
      %v925 = vld [vmem:[#allocation5 + $0x18] sm:$0xff]
      %v926 = vpack.c.bf16 %v922, %v922
      %v927 = vpack.c.bf16 %v923, %v923
      %v928 = vpack.c.bf16 %v924, %v924
      %v929 = vpack.c.bf16 %v925, %v925
      %930 = vst [vmem:[%s405] sm:$0xf] %v926
      %931 = vst [vmem:[%s405 + $0x4] sm:$0xf] %v927
      %932 = vst [vmem:[%s405 + $0x8] sm:$0xf] %v928
      %933 = vst [vmem:[%s405 + $0xc] sm:$0xf] %v929
      %p934 = scmp.eq.s32.totalorder %s22, 1
      // Predicated region
      $region57: #{_lambda_.3} parent=51 // pred_check
        %p935 = pneg %p934
      $region58: #{_lambda_.3} parent=51 // pred_check_branch
        %937 = sbr.rel (%p935) target = $region60
      $region59: #{_lambda_.3} parent=51 // pred_region
        %v938 = vadd.f32 %v888, %v905
        %939 = vst [vmem:[%s10] sm:$0xff] %v938
      $region60: #{_lambda_.3} parent=51 // pred_fallthru
        _
      %s940 = smul.u32 4, %s22
      %p941 = scmp.lt.s32.totalorder %s940, 7
      %s942 = scalar_select %p941, %s940, 7
      %s943 = smul.addr %s942, 4
      %s944 = scalar_lea.vmem %s8, %s943
      %s945 = ssub.s32 1, %s22
      %s946 = smul.u32 4, %s945
      %p947 = scmp.lt.s32.totalorder %s946, 7
      %s948 = scalar_select %p947, %s946, 7
      %s949 = smul.addr %s948, 4
      %s950 = scalar_lea.vmem %s9, %s949
      // Predicated region
      $region61: #{_lambda_.3} parent=51 // pred_check
        %p951 = pneg %p220
      $region62: #{_lambda_.3} parent=51 // pred_check_branch
        %953 = sbr.rel (%p951) target = $region64
      $region63: #{_lambda_.3} parent=51 // pred_region
        %s954 = smul.u32 4, %s22
      $region64: #{_lambda_.3} parent=51 // pred_fallthru
        _
      // Predicated region
      $region65: #{_lambda_.3} parent=51 // pred_check
        %p955 = pneg %p248
      $region66: #{_lambda_.3} parent=51 // pred_check_branch
        %957 = sbr.rel (%p955) target = $region68
      $region67: #{_lambda_.3} parent=51 // pred_region
        %s958 = ssub.s32 1, %s22
        %s959 = smul.u32 4, %s958
      $region68: #{_lambda_.3} parent=51 // pred_fallthru
        _
      // Predicated region
      $region69: #{_lambda_.3} parent=51 // pred_check
        %p960 = pneg %p269
      $region70: #{_lambda_.3} parent=51 // pred_check_branch
        %962 = sbr.rel (%p960) target = $region72
      $region71: #{_lambda_.3} parent=51 // pred_region
        _
      $region72: #{_lambda_.3} parent=51 // pred_fallthru
        _
      // Predicated region
      $region73: #{_lambda_.3} parent=51 // pred_check
        %p963 = pneg %p269
      $region74: #{_lambda_.3} parent=51 // pred_check_branch
        %965 = sbr.rel (%p963) target = $region76
      $region75: #{_lambda_.3} parent=51 // pred_region
        _
      $region76: #{_lambda_.3} parent=51 // pred_fallthru
        _
    $region52: #{_lambda_.3} parent=5 // pred_fallthru
      _
    %p966 = scmp.le.s32.totalorder 2, %s17
    // Predicated region
    $region77: #{_lambda_.3} parent=5 // pred_check
      %p967 = pneg %p966
    $region78: #{_lambda_.3} parent=5 // pred_check_branch
      %969 = sbr.rel (%p967) target = $region80
    $region79: #{_lambda_.3} parent=5 // pred_region
      %s970 = ssub.s32 %s17, 2
      // Predicated region
      $region81: #{_lambda_.3} parent=79 // pred_check
        %p971 = pneg %p226
      $region82: #{_lambda_.3} parent=79 // pred_check_branch
        %973 = sbr.rel (%p971) target = $region84
      $region83: #{_lambda_.3} parent=79 // pred_region
        %s974 = smul.u32 4, %s23
        %p975 = scmp.lt.s32.totalorder %s974, 7
        %s976 = scalar_select %p975, %s974, 7
        %s977 = smul.addr %s976, 4
        %s978 = scalar_lea.vmem %s8, %s977
      $region84: #{_lambda_.3} parent=79 // pred_fallthru
        _
      // Predicated region
      $region85: #{_lambda_.3} parent=79 // pred_check
        %p979 = pneg %p254
      $region86: #{_lambda_.3} parent=79 // pred_check_branch
        %981 = sbr.rel (%p979) target = $region88
      $region87: #{_lambda_.3} parent=79 // pred_region
        %s982 = ssub.s32 1, %s23
        %s983 = smul.u32 4, %s982
        %p984 = scmp.lt.s32.totalorder %s983, 7
        %s985 = scalar_select %p984, %s983, 7
        %s986 = smul.addr %s985, 4
        %s987 = scalar_lea.vmem %s9, %s986
      $region88: #{_lambda_.3} parent=79 // pred_fallthru
        _
    $region80: #{_lambda_.3} parent=5 // pred_fallthru
      _
  $region6: #{_lambda_.3} parent=0 // loop_footer
    %s21 = sadd.s32 1, %s17
  $region7: #{_lambda_.3} parent=0 // loop_footer_branch
    %16 = sbr.rel target = $region3
  $region8: #{_lambda_.3} parent=0 // loop_exit
    _

// kernel: _lambda_.4
$region0: #{_lambda_.4}
  #allocation0 [shape = 'u32[]', space=smem, size = 0x4, offset = 0x4, fixed_abs, tag = 'smem constant byte address 0x4 - core index']
  #allocation1 [shape = 'u32[72,128]{1,0:T(1,128)}', space=vmem, size = 0x9000, scoped, tag = 'internal scratch']
  #allocation2 [shape = 'f32[8,128]{1,0:T(8,128)}', space=vmem, size = 0x1000, scoped, tag = 'scratch operand']
  #allocation3 [shape = 'f32[8,128]{1,0:T(8,128)}', space=vmem, size = 0x1000, scoped, tag = 'scratch operand']
  #allocation4 [shape = 'f32[4,8,128]{2,1,0:T(8,128)}', space=vmem, size = 0x4000, scoped, tag = 'scratch operand']
  #allocation5 [shape = 'f32[4,8,128]{2,1,0:T(8,128)}', space=vmem, size = 0x4000, scoped, tag = 'scratch operand']
  %s0 = inlined_call_operand.vmem [shape: bf16[8,8,128], index: 0, kind: input, shape index: {}, may-alias: {0,2}]
  %s1 = inlined_call_operand.vmem [shape: bf16[8,8,128], index: 1, kind: input, shape index: {}, may-alias: {1,3}]
  %s2 = inlined_call_operand.vmem [shape: bf16[8,8,128], index: 2, kind: input, shape index: {}, may-alias: {0,2}]
  %s3 = inlined_call_operand.vmem [shape: bf16[8,8,128], index: 3, kind: input, shape index: {}, may-alias: {1,3}]
  %s4 = inlined_call_operand.vmem [shape: bf16[128,128], index: 4, kind: input, shape index: {}]
  %s5 = inlined_call_operand.vmem [shape: bf16[128,128], index: 5, kind: input, shape index: {}]
  %s6 = inlined_call_operand.vmem [shape: bf16[128,128], index: 6, kind: input, shape index: {}]
  %s7 = inlined_call_operand.vmem [shape: bf16[128,128], index: 7, kind: input, shape index: {}]
  %s8 = inlined_call_operand.vmem [shape: bf16[128,128], index: 8, kind: input, shape index: {}]
  %s9 = inlined_call_operand.vmem [shape: bf16[128,128], index: 9, kind: input, shape index: {}]
  %s10 = inlined_call_operand.vmem [shape: f32[1,128], index: 10, kind: input, shape index: {}]
  %s11 = inlined_call_operand.vmem [shape: f32[1,128], index: 11, kind: input, shape index: {}]
  %s12 = inlined_call_operand.vmem [shape: f32[8,128], index: 12, kind: input, shape index: {}, may-alias: {12,15}]
  %s13 = inlined_call_operand.vmem [shape: bf16[8,8,128], index: 13, kind: output, shape index: {0}]
  %s14 = inlined_call_operand.vmem [shape: bf16[8,8,128], index: 14, kind: output, shape index: {1}]
  %s15 = inlined_call_operand.vmem [shape: f32[8,128], index: 15, kind: output, shape index: {2}, may-alias: {12,15}]
  %16 = xla_tuple %s13, %s14, %s15
  %s17 = sld [smem:[#allocation0]]
  $region109: #{_lambda_.4} parent=0
    _
  %s19 = ssub.s32 1, %s17
  %s20 = scalar_select 0, %s19, %s17
  loop: start=0, step=1, limit=4
  $region2: #{_lambda_.4} parent=0 // loop_pre_header
    _
  $region3: #{_lambda_.4} parent=0 // loop_header
    %s22 = sphi 0, %s26
    %p23 = scmp.ge.s32.totalorder %s22, 4
    %s32 = sphi 0, %s34
    %s35 = sphi 0, %s32
    %s36 = sphi 0, %s35
    %s52 = sphi 0, %s36
    %s58 = sphi 0, %s60
    %s61 = sphi 0, %s58
    %s62 = sphi 0, %s61
    %s78 = sphi 0, %s62
    %s86 = sphi 0, %s88
    %s89 = sphi 0, %s86
    %s90 = sphi 0, %s89
    %s106 = sphi 0, %s90
    %s114 = sphi 0, %s116
    %s117 = sphi 0, %s114
    %s118 = sphi 0, %s117
    %s134 = sphi 0, %s118
    %s138 = sphi 0, %s138
    %s140 = sphi 0, %s138
    %s141 = sphi 0, %s140
    %s155 = sphi 0, %s141
    %s159 = sphi 0, %s159
    %s161 = sphi 0, %s159
    %s162 = sphi 0, %s161
    %s176 = sphi 0, %s162
    %s180 = sphi 0, %s180
    %s182 = sphi 0, %s180
    %s183 = sphi 0, %s182
    %s197 = sphi 0, %s183
    %s201 = sphi 0, %s201
    %s203 = sphi 0, %s201
    %s204 = sphi 0, %s203
    %s218 = sphi 0, %s204
    %s222 = sphi 0, %s222
    %s224 = sphi 0, %s222
    %s225 = sphi 0, %s224
    %s239 = sphi 0, %s225
    %s243 = sphi 0, %s243
    %s245 = sphi 0, %s243
    %s246 = sphi 0, %s245
    %s260 = sphi 0, %s246
    %s264 = sphi 0, %s264
    %s266 = sphi 0, %s264
    %s267 = sphi 0, %s266
    %s281 = sphi 0, %s267
    %s285 = sphi 0, %s285
    %s287 = sphi 0, %s285
    %s288 = sphi 0, %s287
    %s302 = sphi 0, %s288
    %s306 = sphi 0, %s306
    %s308 = sphi 0, %s306
    %s309 = sphi 0, %s308
    %s323 = sphi 0, %s309
    %s329 = sphi 0, %s331
    %s332 = sphi 0, %s329
    %s333 = sphi 0, %s332
    %s349 = sphi 0, %s333
    %s357 = sphi 0, %s359
    %s360 = sphi 0, %s357
    %s361 = sphi 0, %s360
    %s377 = sphi 0, %s361
    %s381 = sphi 0, %s381
    %s383 = sphi 0, %s381
    %s384 = sphi 0, %s383
    %s398 = sphi 0, %s384
  $region4: #{_lambda_.4} parent=0 // loop_header_branch
    %25 = sbr.rel (%p23) target = $region8
  $region5: #{_lambda_.4} parent=0 // loop_body
    %s27 = ssub.s32 %s22, 1
    %s28 = ssub.s32 %s22, 2
    %s29 = sadd.s32 %s22, 1
    %s30 = ssub.s32 %s22, %s29
    %p31 = scmp.eq.s32.totalorder %s30, 0
    %s33 = sadd.s32 %s32, 1
    %s34 = scalar_select %p31, %s32, %s33
    %p37 = pneg %p31
    %p38 = scmp.eq.s32.totalorder %s22, 1
    %p39 = por %p37, %p38
    %p40 = scmp.ne.s32.totalorder %s32, %s35
    %p41 = scmp.eq.s32.totalorder %s22, 0
    %p42 = por %p40, %p41
    %p43 = scmp.ne.s32.totalorder %s32, %s35
    %p44 = scmp.eq.s32.totalorder %s27, 1
    %p45 = por %p43, %p44
    %p46 = scmp.ne.s32.totalorder %s35, %s36
    %p47 = scmp.eq.s32.totalorder %s27, 0
    %p48 = por %p46, %p47
    %p49 = scmp.ne.s32.totalorder %s35, %s36
    %p50 = scmp.eq.s32.totalorder %s28, 1
    %p51 = por %p49, %p50
    %p53 = scmp.ne.s32.totalorder %s36, %s52
    %p54 = scmp.eq.s32.totalorder %s28, 0
    %p55 = por %p53, %p54
    %s56 = ssub.s32 %s22, %s29
    %p57 = scmp.eq.s32.totalorder %s56, 0
    %s59 = sadd.s32 %s58, 1
    %s60 = scalar_select %p57, %s58, %s59
    %p63 = pneg %p57
    %p64 = scmp.eq.s32.totalorder %s22, 1
    %p65 = por %p63, %p64
    %p66 = scmp.ne.s32.totalorder %s58, %s61
    %p67 = scmp.eq.s32.totalorder %s22, 0
    %p68 = por %p66, %p67
    %p69 = scmp.ne.s32.totalorder %s58, %s61
    %p70 = scmp.eq.s32.totalorder %s27, 1
    %p71 = por %p69, %p70
    %p72 = scmp.ne.s32.totalorder %s61, %s62
    %p73 = scmp.eq.s32.totalorder %s27, 0
    %p74 = por %p72, %p73
    %p75 = scmp.ne.s32.totalorder %s61, %s62
    %p76 = scmp.eq.s32.totalorder %s28, 1
    %p77 = por %p75, %p76
    %p79 = scmp.ne.s32.totalorder %s62, %s78
    %p80 = scmp.eq.s32.totalorder %s28, 0
    %p81 = por %p79, %p80
    %s82 = ssub.s32 1, %s22
    %s83 = ssub.s32 1, %s29
    %s84 = ssub.s32 %s82, %s83
    %p85 = scmp.eq.s32.totalorder %s84, 0
    %s87 = sadd.s32 %s86, 1
    %s88 = scalar_select %p85, %s86, %s87
    %p91 = pneg %p85
    %p92 = scmp.eq.s32.totalorder %s22, 1
    %p93 = por %p91, %p92
    %p94 = scmp.ne.s32.totalorder %s86, %s89
    %p95 = scmp.eq.s32.totalorder %s22, 0
    %p96 = por %p94, %p95
    %p97 = scmp.ne.s32.totalorder %s86, %s89
    %p98 = scmp.eq.s32.totalorder %s27, 1
    %p99 = por %p97, %p98
    %p100 = scmp.ne.s32.totalorder %s89, %s90
    %p101 = scmp.eq.s32.totalorder %s27, 0
    %p102 = por %p100, %p101
    %p103 = scmp.ne.s32.totalorder %s89, %s90
    %p104 = scmp.eq.s32.totalorder %s28, 1
    %p105 = por %p103, %p104
    %p107 = scmp.ne.s32.totalorder %s90, %s106
    %p108 = scmp.eq.s32.totalorder %s28, 0
    %p109 = por %p107, %p108
    %s110 = ssub.s32 1, %s22
    %s111 = ssub.s32 1, %s29
    %s112 = ssub.s32 %s110, %s111
    %p113 = scmp.eq.s32.totalorder %s112, 0
    %s115 = sadd.s32 %s114, 1
    %s116 = scalar_select %p113, %s114, %s115
    %p119 = pneg %p113
    %p120 = scmp.eq.s32.totalorder %s22, 1
    %p121 = por %p119, %p120
    %p122 = scmp.ne.s32.totalorder %s114, %s117
    %p123 = scmp.eq.s32.totalorder %s22, 0
    %p124 = por %p122, %p123
    %p125 = scmp.ne.s32.totalorder %s114, %s117
    %p126 = scmp.eq.s32.totalorder %s27, 1
    %p127 = por %p125, %p126
    %p128 = scmp.ne.s32.totalorder %s117, %s118
    %p129 = scmp.eq.s32.totalorder %s27, 0
    %p130 = por %p128, %p129
    %p131 = scmp.ne.s32.totalorder %s117, %s118
    %p132 = scmp.eq.s32.totalorder %s28, 1
    %p133 = por %p131, %p132
    %p135 = scmp.ne.s32.totalorder %s118, %s134
    %p136 = scmp.eq.s32.totalorder %s28, 0
    %p137 = por %p135, %p136
    %s139 = sadd.s32 %s138, 1
    %p142 = scmp.eq.s32.totalorder %s22, 1
    %p143 = scmp.ne.s32.totalorder %s138, %s140
    %p144 = scmp.eq.s32.totalorder %s22, 0
    %p145 = por %p143, %p144
    %p146 = scmp.ne.s32.totalorder %s138, %s140
    %p147 = scmp.eq.s32.totalorder %s27, 1
    %p148 = por %p146, %p147
    %p149 = scmp.ne.s32.totalorder %s140, %s141
    %p150 = scmp.eq.s32.totalorder %s27, 0
    %p151 = por %p149, %p150
    %p152 = scmp.ne.s32.totalorder %s140, %s141
    %p153 = scmp.eq.s32.totalorder %s28, 1
    %p154 = por %p152, %p153
    %p156 = scmp.ne.s32.totalorder %s141, %s155
    %p157 = scmp.eq.s32.totalorder %s28, 0
    %p158 = por %p156, %p157
    %s160 = sadd.s32 %s159, 1
    %p163 = scmp.eq.s32.totalorder %s22, 1
    %p164 = scmp.ne.s32.totalorder %s159, %s161
    %p165 = scmp.eq.s32.totalorder %s22, 0
    %p166 = por %p164, %p165
    %p167 = scmp.ne.s32.totalorder %s159, %s161
    %p168 = scmp.eq.s32.totalorder %s27, 1
    %p169 = por %p167, %p168
    %p170 = scmp.ne.s32.totalorder %s161, %s162
    %p171 = scmp.eq.s32.totalorder %s27, 0
    %p172 = por %p170, %p171
    %p173 = scmp.ne.s32.totalorder %s161, %s162
    %p174 = scmp.eq.s32.totalorder %s28, 1
    %p175 = por %p173, %p174
    %p177 = scmp.ne.s32.totalorder %s162, %s176
    %p178 = scmp.eq.s32.totalorder %s28, 0
    %p179 = por %p177, %p178
    %s181 = sadd.s32 %s180, 1
    %p184 = scmp.eq.s32.totalorder %s22, 1
    %p185 = scmp.ne.s32.totalorder %s180, %s182
    %p186 = scmp.eq.s32.totalorder %s22, 0
    %p187 = por %p185, %p186
    %p188 = scmp.ne.s32.totalorder %s180, %s182
    %p189 = scmp.eq.s32.totalorder %s27, 1
    %p190 = por %p188, %p189
    %p191 = scmp.ne.s32.totalorder %s182, %s183
    %p192 = scmp.eq.s32.totalorder %s27, 0
    %p193 = por %p191, %p192
    %p194 = scmp.ne.s32.totalorder %s182, %s183
    %p195 = scmp.eq.s32.totalorder %s28, 1
    %p196 = por %p194, %p195
    %p198 = scmp.ne.s32.totalorder %s183, %s197
    %p199 = scmp.eq.s32.totalorder %s28, 0
    %p200 = por %p198, %p199
    %s202 = sadd.s32 %s201, 1
    %p205 = scmp.eq.s32.totalorder %s22, 1
    %p206 = scmp.ne.s32.totalorder %s201, %s203
    %p207 = scmp.eq.s32.totalorder %s22, 0
    %p208 = por %p206, %p207
    %p209 = scmp.ne.s32.totalorder %s201, %s203
    %p210 = scmp.eq.s32.totalorder %s27, 1
    %p211 = por %p209, %p210
    %p212 = scmp.ne.s32.totalorder %s203, %s204
    %p213 = scmp.eq.s32.totalorder %s27, 0
    %p214 = por %p212, %p213
    %p215 = scmp.ne.s32.totalorder %s203, %s204
    %p216 = scmp.eq.s32.totalorder %s28, 1
    %p217 = por %p215, %p216
    %p219 = scmp.ne.s32.totalorder %s204, %s218
    %p220 = scmp.eq.s32.totalorder %s28, 0
    %p221 = por %p219, %p220
    %s223 = sadd.s32 %s222, 1
    %p226 = scmp.eq.s32.totalorder %s22, 1
    %p227 = scmp.ne.s32.totalorder %s222, %s224
    %p228 = scmp.eq.s32.totalorder %s22, 0
    %p229 = por %p227, %p228
    %p230 = scmp.ne.s32.totalorder %s222, %s224
    %p231 = scmp.eq.s32.totalorder %s27, 1
    %p232 = por %p230, %p231
    %p233 = scmp.ne.s32.totalorder %s224, %s225
    %p234 = scmp.eq.s32.totalorder %s27, 0
    %p235 = por %p233, %p234
    %p236 = scmp.ne.s32.totalorder %s224, %s225
    %p237 = scmp.eq.s32.totalorder %s28, 1
    %p238 = por %p236, %p237
    %p240 = scmp.ne.s32.totalorder %s225, %s239
    %p241 = scmp.eq.s32.totalorder %s28, 0
    %p242 = por %p240, %p241
    %s244 = sadd.s32 %s243, 1
    %p247 = scmp.eq.s32.totalorder %s22, 1
    %p248 = scmp.ne.s32.totalorder %s243, %s245
    %p249 = scmp.eq.s32.totalorder %s22, 0
    %p250 = por %p248, %p249
    %p251 = scmp.ne.s32.totalorder %s243, %s245
    %p252 = scmp.eq.s32.totalorder %s27, 1
    %p253 = por %p251, %p252
    %p254 = scmp.ne.s32.totalorder %s245, %s246
    %p255 = scmp.eq.s32.totalorder %s27, 0
    %p256 = por %p254, %p255
    %p257 = scmp.ne.s32.totalorder %s245, %s246
    %p258 = scmp.eq.s32.totalorder %s28, 1
    %p259 = por %p257, %p258
    %p261 = scmp.ne.s32.totalorder %s246, %s260
    %p262 = scmp.eq.s32.totalorder %s28, 0
    %p263 = por %p261, %p262
    %s265 = sadd.s32 %s264, 1
    %p268 = scmp.eq.s32.totalorder %s22, 1
    %p269 = scmp.ne.s32.totalorder %s264, %s266
    %p270 = scmp.eq.s32.totalorder %s22, 0
    %p271 = por %p269, %p270
    %p272 = scmp.ne.s32.totalorder %s264, %s266
    %p273 = scmp.eq.s32.totalorder %s27, 1
    %p274 = por %p272, %p273
    %p275 = scmp.ne.s32.totalorder %s266, %s267
    %p276 = scmp.eq.s32.totalorder %s27, 0
    %p277 = por %p275, %p276
    %p278 = scmp.ne.s32.totalorder %s266, %s267
    %p279 = scmp.eq.s32.totalorder %s28, 1
    %p280 = por %p278, %p279
    %p282 = scmp.ne.s32.totalorder %s267, %s281
    %p283 = scmp.eq.s32.totalorder %s28, 0
    %p284 = por %p282, %p283
    %s286 = sadd.s32 %s285, 1
    %p289 = scmp.eq.s32.totalorder %s22, 1
    %p290 = scmp.ne.s32.totalorder %s285, %s287
    %p291 = scmp.eq.s32.totalorder %s22, 0
    %p292 = por %p290, %p291
    %p293 = scmp.ne.s32.totalorder %s285, %s287
    %p294 = scmp.eq.s32.totalorder %s27, 1
    %p295 = por %p293, %p294
    %p296 = scmp.ne.s32.totalorder %s287, %s288
    %p297 = scmp.eq.s32.totalorder %s27, 0
    %p298 = por %p296, %p297
    %p299 = scmp.ne.s32.totalorder %s287, %s288
    %p300 = scmp.eq.s32.totalorder %s28, 1
    %p301 = por %p299, %p300
    %p303 = scmp.ne.s32.totalorder %s288, %s302
    %p304 = scmp.eq.s32.totalorder %s28, 0
    %p305 = por %p303, %p304
    %s307 = sadd.s32 %s306, 1
    %p310 = scmp.eq.s32.totalorder %s22, 1
    %p311 = scmp.ne.s32.totalorder %s306, %s308
    %p312 = scmp.eq.s32.totalorder %s22, 0
    %p313 = por %p311, %p312
    %p314 = scmp.ne.s32.totalorder %s306, %s308
    %p315 = scmp.eq.s32.totalorder %s27, 1
    %p316 = por %p314, %p315
    %p317 = scmp.ne.s32.totalorder %s308, %s309
    %p318 = scmp.eq.s32.totalorder %s27, 0
    %p319 = por %p317, %p318
    %p320 = scmp.ne.s32.totalorder %s308, %s309
    %p321 = scmp.eq.s32.totalorder %s28, 1
    %p322 = por %p320, %p321
    %p324 = scmp.ne.s32.totalorder %s309, %s323
    %p325 = scmp.eq.s32.totalorder %s28, 0
    %p326 = por %p324, %p325
    %s327 = ssub.s32 %s22, %s29
    %p328 = scmp.eq.s32.totalorder %s327, 0
    %s330 = sadd.s32 %s329, 1
    %s331 = scalar_select %p328, %s329, %s330
    %p334 = pneg %p328
    %p335 = scmp.eq.s32.totalorder %s22, 1
    %p336 = por %p334, %p335
    %p337 = scmp.ne.s32.totalorder %s329, %s332
    %p338 = scmp.eq.s32.totalorder %s22, 0
    %p339 = por %p337, %p338
    %p340 = scmp.ne.s32.totalorder %s329, %s332
    %p341 = scmp.eq.s32.totalorder %s27, 1
    %p342 = por %p340, %p341
    %p343 = scmp.ne.s32.totalorder %s332, %s333
    %p344 = scmp.eq.s32.totalorder %s27, 0
    %p345 = por %p343, %p344
    %p346 = scmp.ne.s32.totalorder %s332, %s333
    %p347 = scmp.eq.s32.totalorder %s28, 1
    %p348 = por %p346, %p347
    %p350 = scmp.ne.s32.totalorder %s333, %s349
    %p351 = scmp.eq.s32.totalorder %s28, 0
    %p352 = por %p350, %p351
    %s353 = ssub.s32 1, %s22
    %s354 = ssub.s32 1, %s29
    %s355 = ssub.s32 %s353, %s354
    %p356 = scmp.eq.s32.totalorder %s355, 0
    %s358 = sadd.s32 %s357, 1
    %s359 = scalar_select %p356, %s357, %s358
    %p362 = pneg %p356
    %p363 = scmp.eq.s32.totalorder %s22, 1
    %p364 = por %p362, %p363
    %p365 = scmp.ne.s32.totalorder %s357, %s360
    %p366 = scmp.eq.s32.totalorder %s22, 0
    %p367 = por %p365, %p366
    %p368 = scmp.ne.s32.totalorder %s357, %s360
    %p369 = scmp.eq.s32.totalorder %s27, 1
    %p370 = por %p368, %p369
    %p371 = scmp.ne.s32.totalorder %s360, %s361
    %p372 = scmp.eq.s32.totalorder %s27, 0
    %p373 = por %p371, %p372
    %p374 = scmp.ne.s32.totalorder %s360, %s361
    %p375 = scmp.eq.s32.totalorder %s28, 1
    %p376 = por %p374, %p375
    %p378 = scmp.ne.s32.totalorder %s361, %s377
    %p379 = scmp.eq.s32.totalorder %s28, 0
    %p380 = por %p378, %p379
    %s382 = sadd.s32 %s381, 1
    %p385 = scmp.eq.s32.totalorder %s22, 1
    %p386 = scmp.ne.s32.totalorder %s381, %s383
    %p387 = scmp.eq.s32.totalorder %s22, 0
    %p388 = por %p386, %p387
    %p389 = scmp.ne.s32.totalorder %s381, %s383
    %p390 = scmp.eq.s32.totalorder %s27, 1
    %p391 = por %p389, %p390
    %p392 = scmp.ne.s32.totalorder %s383, %s384
    %p393 = scmp.eq.s32.totalorder %s27, 0
    %p394 = por %p392, %p393
    %p395 = scmp.ne.s32.totalorder %s383, %s384
    %p396 = scmp.eq.s32.totalorder %s28, 1
    %p397 = por %p395, %p396
    %p399 = scmp.ne.s32.totalorder %s384, %s398
    %p400 = scmp.eq.s32.totalorder %s28, 0
    %p401 = por %p399, %p400
    %p402 = scmp.le.s32.totalorder 1, %s22
    %p403 = scmp.lt.s32.totalorder %s22, 3
    %p404 = pnand %p402, %p403
    %p405 = pneg %p404
    // Predicated region
    $region9: #{_lambda_.4} parent=5 // pred_check
      _
    $region10: #{_lambda_.4} parent=5 // pred_check_branch
      %407 = sbr.rel (%p404) target = $region12
    $region11: #{_lambda_.4} parent=5 // pred_region
      %s408 = ssub.s32 %s22, 1
      // Predicated region
      $region13: #{_lambda_.4} parent=11 // pred_check
        %p409 = pneg %p151
      $region14: #{_lambda_.4} parent=11 // pred_check_branch
        %411 = sbr.rel (%p409) target = $region16
      $region15: #{_lambda_.4} parent=11 // pred_region
        _
      $region16: #{_lambda_.4} parent=11 // pred_fallthru
        _
      // Predicated region
      $region17: #{_lambda_.4} parent=11 // pred_check
        %p412 = pneg %p172
      $region18: #{_lambda_.4} parent=11 // pred_check_branch
        %414 = sbr.rel (%p412) target = $region20
      $region19: #{_lambda_.4} parent=11 // pred_region
        _
      $region20: #{_lambda_.4} parent=11 // pred_fallthru
        _
      // Predicated region
      $region21: #{_lambda_.4} parent=11 // pred_check
        %p415 = pneg %p193
      $region22: #{_lambda_.4} parent=11 // pred_check_branch
        %417 = sbr.rel (%p415) target = $region24
      $region23: #{_lambda_.4} parent=11 // pred_region
        _
      $region24: #{_lambda_.4} parent=11 // pred_fallthru
        _
      // Predicated region
      $region25: #{_lambda_.4} parent=11 // pred_check
        %p418 = pneg %p214
      $region26: #{_lambda_.4} parent=11 // pred_check_branch
        %420 = sbr.rel (%p418) target = $region28
      $region27: #{_lambda_.4} parent=11 // pred_region
        _
      $region28: #{_lambda_.4} parent=11 // pred_fallthru
        _
      // Predicated region
      $region29: #{_lambda_.4} parent=11 // pred_check
        %p421 = pneg %p235
      $region30: #{_lambda_.4} parent=11 // pred_check_branch
        %423 = sbr.rel (%p421) target = $region32
      $region31: #{_lambda_.4} parent=11 // pred_region
        _
      $region32: #{_lambda_.4} parent=11 // pred_fallthru
        _
      // Predicated region
      $region33: #{_lambda_.4} parent=11 // pred_check
        %p424 = pneg %p256
      $region34: #{_lambda_.4} parent=11 // pred_check_branch
        %426 = sbr.rel (%p424) target = $region36
      $region35: #{_lambda_.4} parent=11 // pred_region
        _
      $region36: #{_lambda_.4} parent=11 // pred_fallthru
        _
      // Predicated region
      $region37: #{_lambda_.4} parent=11 // pred_check
        %p427 = pneg %p277
      $region38: #{_lambda_.4} parent=11 // pred_check_branch
        %429 = sbr.rel (%p427) target = $region40
      $region39: #{_lambda_.4} parent=11 // pred_region
        _
      $region40: #{_lambda_.4} parent=11 // pred_fallthru
        _
      // Predicated region
      $region41: #{_lambda_.4} parent=11 // pred_check
        %p430 = pneg %p298
      $region42: #{_lambda_.4} parent=11 // pred_check_branch
        %432 = sbr.rel (%p430) target = $region44
      $region43: #{_lambda_.4} parent=11 // pred_region
        _
      $region44: #{_lambda_.4} parent=11 // pred_fallthru
        _
      // Predicated region
      $region45: #{_lambda_.4} parent=11 // pred_check
        %p433 = pneg %p319
      $region46: #{_lambda_.4} parent=11 // pred_check_branch
        %435 = sbr.rel (%p433) target = $region48
      $region47: #{_lambda_.4} parent=11 // pred_region
        _
      $region48: #{_lambda_.4} parent=11 // pred_fallthru
        _
    $region12: #{_lambda_.4} parent=5 // pred_fallthru
      _
    %p436 = scmp.lt.s32.totalorder %s22, 2
    // Predicated region
    $region49: #{_lambda_.4} parent=5 // pred_check
      %p437 = pneg %p436
    $region50: #{_lambda_.4} parent=5 // pred_check_branch
      %439 = sbr.rel (%p437) target = $region52
    $region51: #{_lambda_.4} parent=5 // pred_region
      // Predicated region
      $region53: #{_lambda_.4} parent=51 // pred_check
        %p440 = pneg %p42
      $region54: #{_lambda_.4} parent=51 // pred_check_branch
        %442 = sbr.rel (%p440) target = $region56
      $region55: #{_lambda_.4} parent=51 // pred_region
        %s443 = smul.u32 4, %s22
        %p444 = scmp.lt.s32.totalorder %s443, 7
        %s445 = scalar_select %p444, %s443, 7
        %s446 = smul.addr %s445, 4
        %s447 = scalar_lea.vmem %s0, %s446
        %s448 = smul.u32 4, %s22
      $region56: #{_lambda_.4} parent=51 // pred_fallthru
        _
      // Predicated region
      $region57: #{_lambda_.4} parent=51 // pred_check
        %p449 = pneg %p68
      $region58: #{_lambda_.4} parent=51 // pred_check_branch
        %451 = sbr.rel (%p449) target = $region60
      $region59: #{_lambda_.4} parent=51 // pred_region
        %s452 = smul.u32 4, %s22
        %p453 = scmp.lt.s32.totalorder %s452, 7
        %s454 = scalar_select %p453, %s452, 7
        %s455 = smul.addr %s454, 4
        %s456 = scalar_lea.vmem %s1, %s455
        %s457 = smul.u32 4, %s22
      $region60: #{_lambda_.4} parent=51 // pred_fallthru
        _
      // Predicated region
      $region61: #{_lambda_.4} parent=51 // pred_check
        %p458 = pneg %p96
      $region62: #{_lambda_.4} parent=51 // pred_check_branch
        %460 = sbr.rel (%p458) target = $region64
      $region63: #{_lambda_.4} parent=51 // pred_region
        %s461 = ssub.s32 1, %s22
        %s462 = smul.u32 4, %s461
        %p463 = scmp.lt.s32.totalorder %s462, 7
        %s464 = scalar_select %p463, %s462, 7
        %s465 = smul.addr %s464, 4
        %s466 = scalar_lea.vmem %s2, %s465
        %s467 = ssub.s32 1, %s22
        %s468 = smul.u32 4, %s467
      $region64: #{_lambda_.4} parent=51 // pred_fallthru
        _
      // Predicated region
      $region65: #{_lambda_.4} parent=51 // pred_check
        %p469 = pneg %p124
      $region66: #{_lambda_.4} parent=51 // pred_check_branch
        %471 = sbr.rel (%p469) target = $region68
      $region67: #{_lambda_.4} parent=51 // pred_region
        %s472 = ssub.s32 1, %s22
        %s473 = smul.u32 4, %s472
        %p474 = scmp.lt.s32.totalorder %s473, 7
        %s475 = scalar_select %p474, %s473, 7
        %s476 = smul.addr %s475, 4
        %s477 = scalar_lea.vmem %s3, %s476
        %s478 = ssub.s32 1, %s22
        %s479 = smul.u32 4, %s478
      $region68: #{_lambda_.4} parent=51 // pred_fallthru
        _
    $region52: #{_lambda_.4} parent=5 // pred_fallthru
      _
    %p480 = scmp.le.s32.totalorder 1, %s22
    %p481 = scmp.lt.s32.totalorder %s22, 3
    %p482 = pnand %p480, %p481
    %p483 = pneg %p482
    // Predicated region
    $region69: #{_lambda_.4} parent=5 // pred_check
      _
    $region70: #{_lambda_.4} parent=5 // pred_check_branch
      %485 = sbr.rel (%p482) target = $region72
    $region71: #{_lambda_.4} parent=5 // pred_region
      %s486 = ssub.s32 %s22, 1
      %s487 = smul.u32 4, %s27
      %p488 = scmp.lt.s32.totalorder %s487, 7
      %s489 = scalar_select %p488, %s487, 7
      %s490 = smul.addr %s489, 4
      %s491 = scalar_lea.vmem %s0, %s490
      %p492 = pneg %p48
      %p493 = pneg %p45
      %s494 = smul.u32 4, %s27
      %p495 = scmp.lt.s32.totalorder %s494, 7
      %s496 = scalar_select %p495, %s494, 7
      %s497 = smul.addr %s496, 4
      %s498 = scalar_lea.vmem %s1, %s497
      %p499 = pneg %p74
      %p500 = pneg %p71
      %s501 = ssub.s32 1, %s27
      %s502 = smul.u32 4, %s501
      %p503 = scmp.lt.s32.totalorder %s502, 7
      %s504 = scalar_select %p503, %s502, 7
      %s505 = smul.addr %s504, 4
      %s506 = scalar_lea.vmem %s2, %s505
      %p507 = pneg %p102
      %p508 = pneg %p99
      %s509 = ssub.s32 1, %s27
      %s510 = smul.u32 4, %s509
      %p511 = scmp.lt.s32.totalorder %s510, 7
      %s512 = scalar_select %p511, %s510, 7
      %s513 = smul.addr %s512, 4
      %s514 = scalar_lea.vmem %s3, %s513
      %p515 = pneg %p130
      %p516 = pneg %p127
      %p517 = pneg %p151
      %p518 = pneg %p148
      %p519 = pneg %p172
      %p520 = pneg %p169
      %p521 = pneg %p193
      %p522 = pneg %p190
      %p523 = pneg %p214
      %p524 = pneg %p211
      %p525 = pneg %p235
      %p526 = pneg %p232
      %p527 = pneg %p256
      %p528 = pneg %p253
      %p529 = pneg %p277
      %p530 = pneg %p274
      %p531 = pneg %p298
      %p532 = pneg %p295
      %p533 = pneg %p319
      %p534 = pneg %p316
      %p535 = pneg %p345
      %p536 = pneg %p342
      %s537 = smul.u32 4, %s27
      %p538 = scmp.lt.s32.totalorder %s537, 7
      %s539 = scalar_select %p538, %s537, 7
      %s540 = smul.addr %s539, 4
      %s541 = scalar_lea.vmem %s13, %s540
      %p542 = pneg %p373
      %p543 = pneg %p370
      %s544 = ssub.s32 1, %s27
      %s545 = smul.u32 4, %s544
      %p546 = scmp.lt.s32.totalorder %s545, 7
      %s547 = scalar_select %p546, %s545, 7
      %s548 = smul.addr %s547, 4
      %s549 = scalar_lea.vmem %s14, %s548
      %p550 = pneg %p394
      %p551 = pneg %p391
      %s552 = smul.u32 4, %s27
      %p553 = scmp.lt.s32.totalorder %s552, 7
      %s554 = scalar_select %p553, %s552, 7
      %s555 = smul.addr %s554, 4
      %s556 = scalar_lea.vmem %s0, %s555
      %s557 = smul.u32 4, %s27
      %s558 = smul.u32 4, %s27
      %p559 = scmp.lt.s32.totalorder %s558, 7
      %s560 = scalar_select %p559, %s558, 7
      %s561 = smul.addr %s560, 4
      %s562 = scalar_lea.vmem %s1, %s561
      %s563 = smul.u32 4, %s27
      %s564 = ssub.s32 1, %s27
      %s565 = smul.u32 4, %s564
      %p566 = scmp.lt.s32.totalorder %s565, 7
      %s567 = scalar_select %p566, %s565, 7
      %s568 = smul.addr %s567, 4
      %s569 = scalar_lea.vmem %s2, %s568
      %s570 = ssub.s32 1, %s27
      %s571 = smul.u32 4, %s570
      %s572 = ssub.s32 1, %s27
      %s573 = smul.u32 4, %s572
      %p574 = scmp.lt.s32.totalorder %s573, 7
      %s575 = scalar_select %p574, %s573, 7
      %s576 = smul.addr %s575, 4
      %s577 = scalar_lea.vmem %s3, %s576
      %s578 = ssub.s32 1, %s27
      %s579 = smul.u32 4, %s578
      %s580 = smul.u32 4, %s27
      %p581 = scmp.lt.s32.totalorder %s580, 7
      %s582 = scalar_select %p581, %s580, 7
      %s583 = smul.addr %s582, 4
      %s584 = scalar_lea.vmem %s13, %s583
      %s585 = smul.u32 4, %s27
      %s586 = ssub.s32 1, %s27
      %s587 = smul.u32 4, %s586
      %p588 = scmp.lt.s32.totalorder %s587, 7
      %s589 = scalar_select %p588, %s587, 7
      %s590 = smul.addr %s589, 4
      %s591 = scalar_lea.vmem %s14, %s590
      %s592 = ssub.s32 1, %s27
      %s593 = smul.u32 4, %s592
      %p594 = scmp.eq.s32.totalorder %s27, 0
      // Predicated region
      $region73: #{_lambda_.4} parent=71 // pred_check
        %p595 = pneg %p594
      $region74: #{_lambda_.4} parent=71 // pred_check_branch
        %597 = sbr.rel (%p595) target = $region76
      $region75: #{_lambda_.4} parent=71 // pred_region
        %598 = vst [vmem:[#allocation2] sm:$0xff] 0.0
        %599 = vst [vmem:[#allocation3] sm:$0xff] 0.0
      $region76: #{_lambda_.4} parent=71 // pred_fallthru
        _
      %v600 = vld [vmem:[%s556] sm:$0xf]
      %v601 = vld [vmem:[%s556 + $0x4] sm:$0xf]
      %v602 = vld [vmem:[%s556 + $0x8] sm:$0xf]
      %v603 = vld [vmem:[%s556 + $0xc] sm:$0xf]
      %v604 = vld [vmem:[%s4] sm:$0xf]
      %v605 = vld [vmem:[%s4 + $0x4] sm:$0xf]
      %v606 = vld [vmem:[%s4 + $0x8] sm:$0xf]
      %v607 = vld [vmem:[%s4 + $0xc] sm:$0xf]
      %v608 = vld [vmem:[%s4 + $0x10] sm:$0xf]
      %v609 = vld [vmem:[%s4 + $0x14] sm:$0xf]
      %v610 = vld [vmem:[%s4 + $0x18] sm:$0xf]
      %v611 = vld [vmem:[%s4 + $0x1c] sm:$0xf]
      %v612 = vld [vmem:[%s4 + $0x20] sm:$0xf]
      %v613 = vld [vmem:[%s4 + $0x24] sm:$0xf]
      %v614 = vld [vmem:[%s4 + $0x28] sm:$0xf]
      %v615 = vld [vmem:[%s4 + $0x2c] sm:$0xf]
      %v616 = vld [vmem:[%s4 + $0x30] sm:$0xf]
      %v617 = vld [vmem:[%s4 + $0x34] sm:$0xf]
      %v618 = vld [vmem:[%s4 + $0x38] sm:$0xf]
      %v619 = vld [vmem:[%s4 + $0x3c] sm:$0xf]
      %v620 = vld [vmem:[%s562] sm:$0xf]
      %v621 = vld [vmem:[%s562 + $0x4] sm:$0xf]
      %v622 = vld [vmem:[%s562 + $0x8] sm:$0xf]
      %v623 = vld [vmem:[%s562 + $0xc] sm:$0xf]
      %v624 = vld [vmem:[%s5] sm:$0xf]
      %v625 = vld [vmem:[%s5 + $0x4] sm:$0xf]
      %v626 = vld [vmem:[%s5 + $0x8] sm:$0xf]
      %v627 = vld [vmem:[%s5 + $0xc] sm:$0xf]
      %v628 = vld [vmem:[%s5 + $0x10] sm:$0xf]
      %v629 = vld [vmem:[%s5 + $0x14] sm:$0xf]
      %v630 = vld [vmem:[%s5 + $0x18] sm:$0xf]
      %v631 = vld [vmem:[%s5 + $0x1c] sm:$0xf]
      %v632 = vld [vmem:[%s5 + $0x20] sm:$0xf]
      %v633 = vld [vmem:[%s5 + $0x24] sm:$0xf]
      %v634 = vld [vmem:[%s5 + $0x28] sm:$0xf]
      %v635 = vld [vmem:[%s5 + $0x2c] sm:$0xf]
      %v636 = vld [vmem:[%s5 + $0x30] sm:$0xf]
      %v637 = vld [vmem:[%s5 + $0x34] sm:$0xf]
      %v638 = vld [vmem:[%s5 + $0x38] sm:$0xf]
      %v639 = vld [vmem:[%s5 + $0x3c] sm:$0xf]
      %v644 = vunpack.c.l.b16 %v620
      %v645 = vunpack.c.l.b16 %v621
      %v646 = vunpack.c.l.b16 %v622
      %v647 = vunpack.c.l.b16 %v623
      %v648 = vpack.c.b16 %v645, %v644
      %v649 = vpack.c.b16 %v647, %v646
      %v668 = vunpack.c.l.b16 %v624
      %v669 = vunpack.c.l.b16 %v625
      %v670 = vunpack.c.l.b16 %v626
      %v671 = vunpack.c.l.b16 %v627
      %v672 = vunpack.c.l.b16 %v628
      %v673 = vunpack.c.l.b16 %v629
      %v674 = vunpack.c.l.b16 %v630
      %v675 = vunpack.c.l.b16 %v631
      %v676 = vunpack.c.l.b16 %v632
      %v677 = vunpack.c.l.b16 %v633
      %v678 = vunpack.c.l.b16 %v634
      %v679 = vunpack.c.l.b16 %v635
      %v680 = vunpack.c.l.b16 %v636
      %v681 = vunpack.c.l.b16 %v637
      %v682 = vunpack.c.l.b16 %v638
      %v683 = vunpack.c.l.b16 %v639
      %v684 = vpack.c.b16 %v669, %v668
      %v685 = vpack.c.b16 %v671, %v670
      %v686 = vpack.c.b16 %v673, %v672
      %v687 = vpack.c.b16 %v675, %v674
      %v688 = vpack.c.b16 %v677, %v676
      %v689 = vpack.c.b16 %v679, %v678
      %v690 = vpack.c.b16 %v681, %v680
      %v691 = vpack.c.b16 %v683, %v682
      %700 = vmatpush.bf16.msra.mxu0 %v691
      %701 = vmatpush.bf16.msra.mxu0 %v690
      %702 = vmatpush.bf16.msra.mxu0 %v689
      %703 = vmatpush.bf16.msra.mxu0 %v688
      %704 = vmatpush.bf16.msra.mxu0 %v687
      %705 = vmatpush.bf16.msra.mxu0 %v686
      %706 = vmatpush.bf16.msra.mxu0 %v685
      %707 = vmatpush.bf16.msra.mxu0 %v684
      %708 = vmatmul.bf16.gmra.mxu0 %v648
      %v709 = vpop.f32.mrf.mxu0
      %v710 = vadd.f32 0.0, %v709
      %v711 = vpop.f32.mrf.mxu0
      %v712 = vadd.f32 0.0, %v711
      %713 = vmatmul.bf16.gmra.mxu0 %v649
      %v714 = vpop.f32.mrf.mxu0
      %v715 = vadd.f32 0.0, %v714
      %v716 = vpop.f32.mrf.mxu0
      %v717 = vadd.f32 0.0, %v716
      %718 = vdwg.mxu0
      %v723 = vunpack.c.l.b16 %v600
      %v724 = vunpack.c.l.b16 %v601
      %v725 = vunpack.c.l.b16 %v602
      %v726 = vunpack.c.l.b16 %v603
      %v727 = vpack.c.b16 %v724, %v723
      %v728 = vpack.c.b16 %v726, %v725
      %v747 = vunpack.c.l.b16 %v604
      %v748 = vunpack.c.l.b16 %v605
      %v749 = vunpack.c.l.b16 %v606
      %v750 = vunpack.c.l.b16 %v607
      %v751 = vunpack.c.l.b16 %v608
      %v752 = vunpack.c.l.b16 %v609
      %v753 = vunpack.c.l.b16 %v610
      %v754 = vunpack.c.l.b16 %v611
      %v755 = vunpack.c.l.b16 %v612
      %v756 = vunpack.c.l.b16 %v613
      %v757 = vunpack.c.l.b16 %v614
      %v758 = vunpack.c.l.b16 %v615
      %v759 = vunpack.c.l.b16 %v616
      %v760 = vunpack.c.l.b16 %v617
      %v761 = vunpack.c.l.b16 %v618
      %v762 = vunpack.c.l.b16 %v619
      %v763 = vpack.c.b16 %v748, %v747
      %v764 = vpack.c.b16 %v750, %v749
      %v765 = vpack.c.b16 %v752, %v751
      %v766 = vpack.c.b16 %v754, %v753
      %v767 = vpack.c.b16 %v756, %v755
      %v768 = vpack.c.b16 %v758, %v757
      %v769 = vpack.c.b16 %v760, %v759
      %v770 = vpack.c.b16 %v762, %v761
      %779 = vmatpush.bf16.msra.mxu0 %v770
      %780 = vmatpush.bf16.msra.mxu0 %v769
      %781 = vmatpush.bf16.msra.mxu0 %v768
      %782 = vmatpush.bf16.msra.mxu0 %v767
      %783 = vmatpush.bf16.msra.mxu0 %v766
      %784 = vmatpush.bf16.msra.mxu0 %v765
      %785 = vmatpush.bf16.msra.mxu0 %v764
      %786 = vmatpush.bf16.msra.mxu0 %v763
      %787 = vmatmul.bf16.gmra.mxu0 %v727
      %v788 = vpop.f32.mrf.mxu0
      %v789 = vadd.f32 %v710, %v788
      %v790 = vpop.f32.mrf.mxu0
      %v791 = vadd.f32 %v712, %v790
      %792 = vmatmul.bf16.gmra.mxu0 %v728
      %v793 = vpop.f32.mrf.mxu0
      %v794 = vadd.f32 %v715, %v793
      %v795 = vpop.f32.mrf.mxu0
      %v796 = vadd.f32 %v717, %v795
      %797 = vdwg.mxu0
      %v798 = vld [vmem:[%s10] sm:$0x1]
      %v800 = vperm.slane %v798, 0
      %v802 = vadd.f32 %v789, %v800
      %v803 = vadd.f32 %v791, %v800
      %v804 = vadd.f32 %v794, %v800
      %v805 = vadd.f32 %v796, %v800
      %806 = vst [vmem:[#allocation4] sm:$0xff] %v802
      %807 = vst [vmem:[#allocation4 + $0x8] sm:$0xff] %v803
      %808 = vst [vmem:[#allocation4 + $0x10] sm:$0xff] %v804
      %809 = vst [vmem:[#allocation4 + $0x18] sm:$0xff] %v805
      %v810 = vld [vmem:[%s569] sm:$0xf]
      %v811 = vld [vmem:[%s569 + $0x4] sm:$0xf]
      %v812 = vld [vmem:[%s569 + $0x8] sm:$0xf]
      %v813 = vld [vmem:[%s569 + $0xc] sm:$0xf]
      %v814 = vld [vmem:[%s6] sm:$0xf]
      %v815 = vld [vmem:[%s6 + $0x4] sm:$0xf]
      %v816 = vld [vmem:[%s6 + $0x8] sm:$0xf]
      %v817 = vld [vmem:[%s6 + $0xc] sm:$0xf]
      %v818 = vld [vmem:[%s6 + $0x10] sm:$0xf]
      %v819 = vld [vmem:[%s6 + $0x14] sm:$0xf]
      %v820 = vld [vmem:[%s6 + $0x18] sm:$0xf]
      %v821 = vld [vmem:[%s6 + $0x1c] sm:$0xf]
      %v822 = vld [vmem:[%s6 + $0x20] sm:$0xf]
      %v823 = vld [vmem:[%s6 + $0x24] sm:$0xf]
      %v824 = vld [vmem:[%s6 + $0x28] sm:$0xf]
      %v825 = vld [vmem:[%s6 + $0x2c] sm:$0xf]
      %v826 = vld [vmem:[%s6 + $0x30] sm:$0xf]
      %v827 = vld [vmem:[%s6 + $0x34] sm:$0xf]
      %v828 = vld [vmem:[%s6 + $0x38] sm:$0xf]
      %v829 = vld [vmem:[%s6 + $0x3c] sm:$0xf]
      %v830 = vld [vmem:[%s577] sm:$0xf]
      %v831 = vld [vmem:[%s577 + $0x4] sm:$0xf]
      %v832 = vld [vmem:[%s577 + $0x8] sm:$0xf]
      %v833 = vld [vmem:[%s577 + $0xc] sm:$0xf]
      %v834 = vld [vmem:[%s7] sm:$0xf]
      %v835 = vld [vmem:[%s7 + $0x4] sm:$0xf]
      %v836 = vld [vmem:[%s7 + $0x8] sm:$0xf]
      %v837 = vld [vmem:[%s7 + $0xc] sm:$0xf]
      %v838 = vld [vmem:[%s7 + $0x10] sm:$0xf]
      %v839 = vld [vmem:[%s7 + $0x14] sm:$0xf]
      %v840 = vld [vmem:[%s7 + $0x18] sm:$0xf]
      %v841 = vld [vmem:[%s7 + $0x1c] sm:$0xf]
      %v842 = vld [vmem:[%s7 + $0x20] sm:$0xf]
      %v843 = vld [vmem:[%s7 + $0x24] sm:$0xf]
      %v844 = vld [vmem:[%s7 + $0x28] sm:$0xf]
      %v845 = vld [vmem:[%s7 + $0x2c] sm:$0xf]
      %v846 = vld [vmem:[%s7 + $0x30] sm:$0xf]
      %v847 = vld [vmem:[%s7 + $0x34] sm:$0xf]
      %v848 = vld [vmem:[%s7 + $0x38] sm:$0xf]
      %v849 = vld [vmem:[%s7 + $0x3c] sm:$0xf]
      %v854 = vunpack.c.l.b16 %v830
      %v855 = vunpack.c.l.b16 %v831
      %v856 = vunpack.c.l.b16 %v832
      %v857 = vunpack.c.l.b16 %v833
      %v858 = vpack.c.b16 %v855, %v854
      %v859 = vpack.c.b16 %v857, %v856
      %v878 = vunpack.c.l.b16 %v834
      %v879 = vunpack.c.l.b16 %v835
      %v880 = vunpack.c.l.b16 %v836
      %v881 = vunpack.c.l.b16 %v837
      %v882 = vunpack.c.l.b16 %v838
      %v883 = vunpack.c.l.b16 %v839
      %v884 = vunpack.c.l.b16 %v840
      %v885 = vunpack.c.l.b16 %v841
      %v886 = vunpack.c.l.b16 %v842
      %v887 = vunpack.c.l.b16 %v843
      %v888 = vunpack.c.l.b16 %v844
      %v889 = vunpack.c.l.b16 %v845
      %v890 = vunpack.c.l.b16 %v846
      %v891 = vunpack.c.l.b16 %v847
      %v892 = vunpack.c.l.b16 %v848
      %v893 = vunpack.c.l.b16 %v849
      %v894 = vpack.c.b16 %v879, %v878
      %v895 = vpack.c.b16 %v881, %v880
      %v896 = vpack.c.b16 %v883, %v882
      %v897 = vpack.c.b16 %v885, %v884
      %v898 = vpack.c.b16 %v887, %v886
      %v899 = vpack.c.b16 %v889, %v888
      %v900 = vpack.c.b16 %v891, %v890
      %v901 = vpack.c.b16 %v893, %v892
      %910 = vmatpush.bf16.msra.mxu0 %v901
      %911 = vmatpush.bf16.msra.mxu0 %v900
      %912 = vmatpush.bf16.msra.mxu0 %v899
      %913 = vmatpush.bf16.msra.mxu0 %v898
      %914 = vmatpush.bf16.msra.mxu0 %v897
      %915 = vmatpush.bf16.msra.mxu0 %v896
      %916 = vmatpush.bf16.msra.mxu0 %v895
      %917 = vmatpush.bf16.msra.mxu0 %v894
      %918 = vmatmul.bf16.gmra.mxu0 %v858
      %v919 = vpop.f32.mrf.mxu0
      %v920 = vadd.f32 0.0, %v919
      %v921 = vpop.f32.mrf.mxu0
      %v922 = vadd.f32 0.0, %v921
      %923 = vmatmul.bf16.gmra.mxu0 %v859
      %v924 = vpop.f32.mrf.mxu0
      %v925 = vadd.f32 0.0, %v924
      %v926 = vpop.f32.mrf.mxu0
      %v927 = vadd.f32 0.0, %v926
      %928 = vdwg.mxu0
      %v933 = vunpack.c.l.b16 %v810
      %v934 = vunpack.c.l.b16 %v811
      %v935 = vunpack.c.l.b16 %v812
      %v936 = vunpack.c.l.b16 %v813
      %v937 = vpack.c.b16 %v934, %v933
      %v938 = vpack.c.b16 %v936, %v935
      %v957 = vunpack.c.l.b16 %v814
      %v958 = vunpack.c.l.b16 %v815
      %v959 = vunpack.c.l.b16 %v816
      %v960 = vunpack.c.l.b16 %v817
      %v961 = vunpack.c.l.b16 %v818
      %v962 = vunpack.c.l.b16 %v819
      %v963 = vunpack.c.l.b16 %v820
      %v964 = vunpack.c.l.b16 %v821
      %v965 = vunpack.c.l.b16 %v822
      %v966 = vunpack.c.l.b16 %v823
      %v967 = vunpack.c.l.b16 %v824
      %v968 = vunpack.c.l.b16 %v825
      %v969 = vunpack.c.l.b16 %v826
      %v970 = vunpack.c.l.b16 %v827
      %v971 = vunpack.c.l.b16 %v828
      %v972 = vunpack.c.l.b16 %v829
      %v973 = vpack.c.b16 %v958, %v957
      %v974 = vpack.c.b16 %v960, %v959
      %v975 = vpack.c.b16 %v962, %v961
      %v976 = vpack.c.b16 %v964, %v963
      %v977 = vpack.c.b16 %v966, %v965
      %v978 = vpack.c.b16 %v968, %v967
      %v979 = vpack.c.b16 %v970, %v969
      %v980 = vpack.c.b16 %v972, %v971
      %989 = vmatpush.bf16.msra.mxu0 %v980
      %990 = vmatpush.bf16.msra.mxu0 %v979
      %991 = vmatpush.bf16.msra.mxu0 %v978
      %992 = vmatpush.bf16.msra.mxu0 %v977
      %993 = vmatpush.bf16.msra.mxu0 %v976
      %994 = vmatpush.bf16.msra.mxu0 %v975
      %995 = vmatpush.bf16.msra.mxu0 %v974
      %996 = vmatpush.bf16.msra.mxu0 %v973
      %997 = vmatmul.bf16.gmra.mxu0 %v937
      %v998 = vpop.f32.mrf.mxu0
      %v999 = vadd.f32 %v920, %v998
      %v1000 = vpop.f32.mrf.mxu0
      %v1001 = vadd.f32 %v922, %v1000
      %1002 = vmatmul.bf16.gmra.mxu0 %v938
      %v1003 = vpop.f32.mrf.mxu0
      %v1004 = vadd.f32 %v925, %v1003
      %v1005 = vpop.f32.mrf.mxu0
      %v1006 = vadd.f32 %v927, %v1005
      %1007 = vdwg.mxu0
      %v1008 = vld [vmem:[%s11] sm:$0x1]
      %v1010 = vperm.slane %v1008, 0
      %v1012 = vadd.f32 %v999, %v1010
      %v1013 = vadd.f32 %v1001, %v1010
      %v1014 = vadd.f32 %v1004, %v1010
      %v1015 = vadd.f32 %v1006, %v1010
      %1016 = vst [vmem:[#allocation5] sm:$0xff] %v1012
      %1017 = vst [vmem:[#allocation5 + $0x8] sm:$0xff] %v1013
      %1018 = vst [vmem:[#allocation5 + $0x10] sm:$0xff] %v1014
      %1019 = vst [vmem:[#allocation5 + $0x18] sm:$0xff] %v1015
      %v1020 = vld [vmem:[%s8] sm:$0xf]
      %v1021 = vld [vmem:[%s8 + $0x4] sm:$0xf]
      %v1022 = vld [vmem:[%s8 + $0x8] sm:$0xf]
      %v1023 = vld [vmem:[%s8 + $0xc] sm:$0xf]
      %v1024 = vld [vmem:[%s8 + $0x10] sm:$0xf]
      %v1025 = vld [vmem:[%s8 + $0x14] sm:$0xf]
      %v1026 = vld [vmem:[%s8 + $0x18] sm:$0xf]
      %v1027 = vld [vmem:[%s8 + $0x1c] sm:$0xf]
      %v1028 = vld [vmem:[%s8 + $0x20] sm:$0xf]
      %v1029 = vld [vmem:[%s8 + $0x24] sm:$0xf]
      %v1030 = vld [vmem:[%s8 + $0x28] sm:$0xf]
      %v1031 = vld [vmem:[%s8 + $0x2c] sm:$0xf]
      %v1032 = vld [vmem:[%s8 + $0x30] sm:$0xf]
      %v1033 = vld [vmem:[%s8 + $0x34] sm:$0xf]
      %v1034 = vld [vmem:[%s8 + $0x38] sm:$0xf]
      %v1035 = vld [vmem:[%s8 + $0x3c] sm:$0xf]
      %v1036 = vld [vmem:[%s9] sm:$0xf]
      %v1037 = vld [vmem:[%s9 + $0x4] sm:$0xf]
      %v1038 = vld [vmem:[%s9 + $0x8] sm:$0xf]
      %v1039 = vld [vmem:[%s9 + $0xc] sm:$0xf]
      %v1040 = vld [vmem:[%s9 + $0x10] sm:$0xf]
      %v1041 = vld [vmem:[%s9 + $0x14] sm:$0xf]
      %v1042 = vld [vmem:[%s9 + $0x18] sm:$0xf]
      %v1043 = vld [vmem:[%s9 + $0x1c] sm:$0xf]
      %v1044 = vld [vmem:[%s9 + $0x20] sm:$0xf]
      %v1045 = vld [vmem:[%s9 + $0x24] sm:$0xf]
      %v1046 = vld [vmem:[%s9 + $0x28] sm:$0xf]
      %v1047 = vld [vmem:[%s9 + $0x2c] sm:$0xf]
      %v1048 = vld [vmem:[%s9 + $0x30] sm:$0xf]
      %v1049 = vld [vmem:[%s9 + $0x34] sm:$0xf]
      %v1050 = vld [vmem:[%s9 + $0x38] sm:$0xf]
      %v1051 = vld [vmem:[%s9 + $0x3c] sm:$0xf]
      %v1052 = vld [vmem:[#allocation2] sm:$0xff]
      %v1053 = vld [vmem:[#allocation3] sm:$0xff]
      %v1054 = vld [vmem:[#allocation4] sm:$0xff]
      %v1055 = vpack.c.bf16 %v1052, %v1052
      %v1072 = vunpack.c.l.b16 %v1020
      %v1073 = vunpack.c.l.b16 %v1021
      %v1074 = vunpack.c.l.b16 %v1022
      %v1075 = vunpack.c.l.b16 %v1023
      %v1076 = vunpack.c.l.b16 %v1024
      %v1077 = vunpack.c.l.b16 %v1025
      %v1078 = vunpack.c.l.b16 %v1026
      %v1079 = vunpack.c.l.b16 %v1027
      %v1080 = vunpack.c.l.b16 %v1028
      %v1081 = vunpack.c.l.b16 %v1029
      %v1082 = vunpack.c.l.b16 %v1030
      %v1083 = vunpack.c.l.b16 %v1031
      %v1084 = vunpack.c.l.b16 %v1032
      %v1085 = vunpack.c.l.b16 %v1033
      %v1086 = vunpack.c.l.b16 %v1034
      %v1087 = vunpack.c.l.b16 %v1035
      %v1088 = vpack.c.b16 %v1073, %v1072
      %v1089 = vpack.c.b16 %v1075, %v1074
      %v1090 = vpack.c.b16 %v1077, %v1076
      %v1091 = vpack.c.b16 %v1079, %v1078
      %v1092 = vpack.c.b16 %v1081, %v1080
      %v1093 = vpack.c.b16 %v1083, %v1082
      %v1094 = vpack.c.b16 %v1085, %v1084
      %v1095 = vpack.c.b16 %v1087, %v1086
      %1104 = vmatpush.bf16.msra.mxu0 %v1095
      %1105 = vmatpush.bf16.msra.mxu0 %v1094
      %1106 = vmatpush.bf16.msra.mxu0 %v1093
      %1107 = vmatpush.bf16.msra.mxu0 %v1092
      %1108 = vmatpush.bf16.msra.mxu0 %v1091
      %1109 = vmatpush.bf16.msra.mxu0 %v1090
      %1110 = vmatpush.bf16.msra.mxu0 %v1089
      %1111 = vmatpush.bf16.msra.mxu0 %v1088
      %1112 = vmatmul.bf16.gmra.mxu0 %v1055
      %v1113 = vpop.f32.mrf.mxu0
      %v1114 = vadd.f32 0.0, %v1113
      %v1115 = vpop.f32.mrf.mxu0
      %1116 = vdwg.mxu0
      %v1117 = vadd.f32 %v1054, %v1114
      %v1118 = vtanh.pop %v1117
      %s1119 = scalar_lea.vmem [#allocation5], 24
      %v1120 = vld [vmem:[%s1119] sm:$0xff]
      %v1121 = vpack.c.bf16 %v1053, %v1053
      %v1138 = vunpack.c.l.b16 %v1036
      %v1139 = vunpack.c.l.b16 %v1037
      %v1140 = vunpack.c.l.b16 %v1038
      %v1141 = vunpack.c.l.b16 %v1039
      %v1142 = vunpack.c.l.b16 %v1040
      %v1143 = vunpack.c.l.b16 %v1041
      %v1144 = vunpack.c.l.b16 %v1042
      %v1145 = vunpack.c.l.b16 %v1043
      %v1146 = vunpack.c.l.b16 %v1044
      %v1147 = vunpack.c.l.b16 %v1045
      %v1148 = vunpack.c.l.b16 %v1046
      %v1149 = vunpack.c.l.b16 %v1047
      %v1150 = vunpack.c.l.b16 %v1048
      %v1151 = vunpack.c.l.b16 %v1049
      %v1152 = vunpack.c.l.b16 %v1050
      %v1153 = vunpack.c.l.b16 %v1051
      %v1154 = vpack.c.b16 %v1139, %v1138
      %v1155 = vpack.c.b16 %v1141, %v1140
      %v1156 = vpack.c.b16 %v1143, %v1142
      %v1157 = vpack.c.b16 %v1145, %v1144
      %v1158 = vpack.c.b16 %v1147, %v1146
      %v1159 = vpack.c.b16 %v1149, %v1148
      %v1160 = vpack.c.b16 %v1151, %v1150
      %v1161 = vpack.c.b16 %v1153, %v1152
      %1170 = vmatpush.bf16.msra.mxu0 %v1161
      %1171 = vmatpush.bf16.msra.mxu0 %v1160
      %1172 = vmatpush.bf16.msra.mxu0 %v1159
      %1173 = vmatpush.bf16.msra.mxu0 %v1158
      %1174 = vmatpush.bf16.msra.mxu0 %v1157
      %1175 = vmatpush.bf16.msra.mxu0 %v1156
      %1176 = vmatpush.bf16.msra.mxu0 %v1155
      %1177 = vmatpush.bf16.msra.mxu0 %v1154
      %1178 = vmatmul.bf16.gmra.mxu0 %v1121
      %v1179 = vpop.f32.mrf.mxu0
      %v1180 = vadd.f32 0.0, %v1179
      %v1181 = vpop.f32.mrf.mxu0
      %1182 = vdwg.mxu0
      %v1183 = vadd.f32 %v1120, %v1180
      %v1184 = vtanh.pop %v1183
      %1185 = vst [vmem:[#allocation4] sm:$0xff] %v1118
      %1186 = vst [vmem:[%s1119] sm:$0xff] %v1184
      %s1187 = scalar_lea.vmem [#allocation4], 8
      %v1188 = vld [vmem:[%s1187] sm:$0xff]
      %v1189 = vpack.c.bf16 %v1118, %v1118
      %1190 = vmatpush.bf16.msra.mxu0 %v1095
      %1191 = vmatpush.bf16.msra.mxu0 %v1094
      %1192 = vmatpush.bf16.msra.mxu0 %v1093
      %1193 = vmatpush.bf16.msra.mxu0 %v1092
      %1194 = vmatpush.bf16.msra.mxu0 %v1091
      %1195 = vmatpush.bf16.msra.mxu0 %v1090
      %1196 = vmatpush.bf16.msra.mxu0 %v1089
      %1197 = vmatpush.bf16.msra.mxu0 %v1088
      %1198 = vmatmul.bf16.gmra.mxu0 %v1189
      %v1199 = vpop.f32.mrf.mxu0
      %v1200 = vadd.f32 0.0, %v1199
      %v1201 = vpop.f32.mrf.mxu0
      %1202 = vdwg.mxu0
      %v1203 = vadd.f32 %v1188, %v1200
      %v1204 = vtanh.pop %v1203
      %s1205 = scalar_lea.vmem [#allocation5], 16
      %v1206 = vld [vmem:[%s1205] sm:$0xff]
      %v1207 = vpack.c.bf16 %v1184, %v1184
      %1208 = vmatpush.bf16.msra.mxu0 %v1161
      %1209 = vmatpush.bf16.msra.mxu0 %v1160
      %1210 = vmatpush.bf16.msra.mxu0 %v1159
      %1211 = vmatpush.bf16.msra.mxu0 %v1158
      %1212 = vmatpush.bf16.msra.mxu0 %v1157
      %1213 = vmatpush.bf16.msra.mxu0 %v1156
      %1214 = vmatpush.bf16.msra.mxu0 %v1155
      %1215 = vmatpush.bf16.msra.mxu0 %v1154
      %1216 = vmatmul.bf16.gmra.mxu0 %v1207
      %v1217 = vpop.f32.mrf.mxu0
      %v1218 = vadd.f32 0.0, %v1217
      %v1219 = vpop.f32.mrf.mxu0
      %1220 = vdwg.mxu0
      %v1221 = vadd.f32 %v1206, %v1218
      %v1222 = vtanh.pop %v1221
      %1223 = vst [vmem:[%s1187] sm:$0xff] %v1204
      %1224 = vst [vmem:[%s1205] sm:$0xff] %v1222
      %s1225 = scalar_lea.vmem [#allocation4], 16
      %v1226 = vld [vmem:[%s1225] sm:$0xff]
      %v1227 = vpack.c.bf16 %v1204, %v1204
      %1228 = vmatpush.bf16.msra.mxu0 %v1095
      %1229 = vmatpush.bf16.msra.mxu0 %v1094
      %1230 = vmatpush.bf16.msra.mxu0 %v1093
      %1231 = vmatpush.bf16.msra.mxu0 %v1092
      %1232 = vmatpush.bf16.msra.mxu0 %v1091
      %1233 = vmatpush.bf16.msra.mxu0 %v1090
      %1234 = vmatpush.bf16.msra.mxu0 %v1089
      %1235 = vmatpush.bf16.msra.mxu0 %v1088
      %1236 = vmatmul.bf16.gmra.mxu0 %v1227
      %v1237 = vpop.f32.mrf.mxu0
      %v1238 = vadd.f32 0.0, %v1237
      %v1239 = vpop.f32.mrf.mxu0
      %1240 = vdwg.mxu0
      %v1241 = vadd.f32 %v1226, %v1238
      %v1242 = vtanh.pop %v1241
      %s1243 = scalar_lea.vmem [#allocation5], 8
      %v1244 = vld [vmem:[%s1243] sm:$0xff]
      %v1245 = vpack.c.bf16 %v1222, %v1222
      %1246 = vmatpush.bf16.msra.mxu0 %v1161
      %1247 = vmatpush.bf16.msra.mxu0 %v1160
      %1248 = vmatpush.bf16.msra.mxu0 %v1159
      %1249 = vmatpush.bf16.msra.mxu0 %v1158
      %1250 = vmatpush.bf16.msra.mxu0 %v1157
      %1251 = vmatpush.bf16.msra.mxu0 %v1156
      %1252 = vmatpush.bf16.msra.mxu0 %v1155
      %1253 = vmatpush.bf16.msra.mxu0 %v1154
      %1254 = vmatmul.bf16.gmra.mxu0 %v1245
      %v1255 = vpop.f32.mrf.mxu0
      %v1256 = vadd.f32 0.0, %v1255
      %v1257 = vpop.f32.mrf.mxu0
      %1258 = vdwg.mxu0
      %v1259 = vadd.f32 %v1244, %v1256
      %v1260 = vtanh.pop %v1259
      %1261 = vst [vmem:[%s1225] sm:$0xff] %v1242
      %1262 = vst [vmem:[%s1243] sm:$0xff] %v1260
      %s1263 = scalar_lea.vmem [#allocation4], 24
      %v1264 = vld [vmem:[%s1263] sm:$0xff]
      %v1265 = vpack.c.bf16 %v1242, %v1242
      %1266 = vmatpush.bf16.msra.mxu0 %v1095
      %1267 = vmatpush.bf16.msra.mxu0 %v1094
      %1268 = vmatpush.bf16.msra.mxu0 %v1093
      %1269 = vmatpush.bf16.msra.mxu0 %v1092
      %1270 = vmatpush.bf16.msra.mxu0 %v1091
      %1271 = vmatpush.bf16.msra.mxu0 %v1090
      %1272 = vmatpush.bf16.msra.mxu0 %v1089
      %1273 = vmatpush.bf16.msra.mxu0 %v1088
      %1274 = vmatmul.bf16.gmra.mxu0 %v1265
      %v1275 = vpop.f32.mrf.mxu0
      %v1276 = vadd.f32 0.0, %v1275
      %v1277 = vpop.f32.mrf.mxu0
      %1278 = vdwg.mxu0
      %v1279 = vadd.f32 %v1264, %v1276
      %v1280 = vtanh.pop %v1279
      %v1281 = vld [vmem:[#allocation5] sm:$0xff]
      %v1282 = vpack.c.bf16 %v1260, %v1260
      %1283 = vmatpush.bf16.msra.mxu0 %v1161
      %1284 = vmatpush.bf16.msra.mxu0 %v1160
      %1285 = vmatpush.bf16.msra.mxu0 %v1159
      %1286 = vmatpush.bf16.msra.mxu0 %v1158
      %1287 = vmatpush.bf16.msra.mxu0 %v1157
      %1288 = vmatpush.bf16.msra.mxu0 %v1156
      %1289 = vmatpush.bf16.msra.mxu0 %v1155
      %1290 = vmatpush.bf16.msra.mxu0 %v1154
      %1291 = vmatmul.bf16.gmra.mxu0 %v1282
      %v1292 = vpop.f32.mrf.mxu0
      %v1293 = vadd.f32 0.0, %v1292
      %v1294 = vpop.f32.mrf.mxu0
      %1295 = vdwg.mxu0
      %v1296 = vadd.f32 %v1281, %v1293
      %v1297 = vtanh.pop %v1296
      %1298 = vst [vmem:[%s1263] sm:$0xff] %v1280
      %1299 = vst [vmem:[#allocation5] sm:$0xff] %v1297
      %1300 = vst [vmem:[#allocation2] sm:$0xff] %v1280
      %1301 = vst [vmem:[#allocation3] sm:$0xff] %v1297
      %v1302 = vld [vmem:[#allocation4] sm:$0xff]
      %v1303 = vld [vmem:[#allocation4 + $0x8] sm:$0xff]
      %v1304 = vld [vmem:[#allocation4 + $0x10] sm:$0xff]
      %v1305 = vld [vmem:[#allocation4 + $0x18] sm:$0xff]
      %v1306 = vpack.c.bf16 %v1302, %v1302
      %v1307 = vpack.c.bf16 %v1303, %v1303
      %v1308 = vpack.c.bf16 %v1304, %v1304
      %v1309 = vpack.c.bf16 %v1305, %v1305
      %1310 = vst [vmem:[%s584] sm:$0xf] %v1306
      %1311 = vst [vmem:[%s584 + $0x4] sm:$0xf] %v1307
      %1312 = vst [vmem:[%s584 + $0x8] sm:$0xf] %v1308
      %1313 = vst [vmem:[%s584 + $0xc] sm:$0xf] %v1309
      %v1314 = vld [vmem:[#allocation5] sm:$0xff]
      %v1315 = vld [vmem:[#allocation5 + $0x8] sm:$0xff]
      %v1316 = vld [vmem:[#allocation5 + $0x10] sm:$0xff]
      %v1317 = vld [vmem:[#allocation5 + $0x18] sm:$0xff]
      %v1318 = vpack.c.bf16 %v1314, %v1314
      %v1319 = vpack.c.bf16 %v1315, %v1315
      %v1320 = vpack.c.bf16 %v1316, %v1316
      %v1321 = vpack.c.bf16 %v1317, %v1317
      %1322 = vst [vmem:[%s591] sm:$0xf] %v1318
      %1323 = vst [vmem:[%s591 + $0x4] sm:$0xf] %v1319
      %1324 = vst [vmem:[%s591 + $0x8] sm:$0xf] %v1320
      %1325 = vst [vmem:[%s591 + $0xc] sm:$0xf] %v1321
      %p1326 = scmp.eq.s32.totalorder %s27, 1
      // Predicated region
      $region77: #{_lambda_.4} parent=71 // pred_check
        %p1327 = pneg %p1326
      $region78: #{_lambda_.4} parent=71 // pred_check_branch
        %1329 = sbr.rel (%p1327) target = $region80
      $region79: #{_lambda_.4} parent=71 // pred_region
        %v1330 = vadd.f32 %v1280, %v1297
        %v1331 = vld [vmem:[%s12] sm:$0xff]
        %v1332 = vadd.f32 %v1330, %v1331
        %1333 = vst [vmem:[%s15] sm:$0xff] %v1332
      $region80: #{_lambda_.4} parent=71 // pred_fallthru
        _
      %s1334 = smul.u32 4, %s27
      %p1335 = scmp.lt.s32.totalorder %s1334, 7
      %s1336 = scalar_select %p1335, %s1334, 7
      %s1337 = smul.addr %s1336, 4
      %s1338 = scalar_lea.vmem %s13, %s1337
      %s1339 = ssub.s32 1, %s27
      %s1340 = smul.u32 4, %s1339
      %p1341 = scmp.lt.s32.totalorder %s1340, 7
      %s1342 = scalar_select %p1341, %s1340, 7
      %s1343 = smul.addr %s1342, 4
      %s1344 = scalar_lea.vmem %s14, %s1343
      // Predicated region
      $region81: #{_lambda_.4} parent=71 // pred_check
        %p1345 = pneg %p342
      $region82: #{_lambda_.4} parent=71 // pred_check_branch
        %1347 = sbr.rel (%p1345) target = $region84
      $region83: #{_lambda_.4} parent=71 // pred_region
        %s1348 = smul.u32 4, %s27
      $region84: #{_lambda_.4} parent=71 // pred_fallthru
        _
      // Predicated region
      $region85: #{_lambda_.4} parent=71 // pred_check
        %p1349 = pneg %p370
      $region86: #{_lambda_.4} parent=71 // pred_check_branch
        %1351 = sbr.rel (%p1349) target = $region88
      $region87: #{_lambda_.4} parent=71 // pred_region
        %s1352 = ssub.s32 1, %s27
        %s1353 = smul.u32 4, %s1352
      $region88: #{_lambda_.4} parent=71 // pred_fallthru
        _
      // Predicated region
      $region89: #{_lambda_.4} parent=71 // pred_check
        %p1354 = pneg %p391
      $region90: #{_lambda_.4} parent=71 // pred_check_branch
        %1356 = sbr.rel (%p1354) target = $region92
      $region91: #{_lambda_.4} parent=71 // pred_region
        _
      $region92: #{_lambda_.4} parent=71 // pred_fallthru
        _
      // Predicated region
      $region93: #{_lambda_.4} parent=71 // pred_check
        %p1357 = pneg %p391
      $region94: #{_lambda_.4} parent=71 // pred_check_branch
        %1359 = sbr.rel (%p1357) target = $region96
      $region95: #{_lambda_.4} parent=71 // pred_region
        _
      $region96: #{_lambda_.4} parent=71 // pred_fallthru
        _
    $region72: #{_lambda_.4} parent=5 // pred_fallthru
      _
    %p1360 = scmp.le.s32.totalorder 2, %s22
    // Predicated region
    $region97: #{_lambda_.4} parent=5 // pred_check
      %p1361 = pneg %p1360
    $region98: #{_lambda_.4} parent=5 // pred_check_branch
      %1363 = sbr.rel (%p1361) target = $region100
    $region99: #{_lambda_.4} parent=5 // pred_region
      %s1364 = ssub.s32 %s22, 2
      // Predicated region
      $region101: #{_lambda_.4} parent=99 // pred_check
        %p1365 = pneg %p348
      $region102: #{_lambda_.4} parent=99 // pred_check_branch
        %1367 = sbr.rel (%p1365) target = $region104
      $region103: #{_lambda_.4} parent=99 // pred_region
        %s1368 = smul.u32 4, %s28
        %p1369 = scmp.lt.s32.totalorder %s1368, 7
        %s1370 = scalar_select %p1369, %s1368, 7
        %s1371 = smul.addr %s1370, 4
        %s1372 = scalar_lea.vmem %s13, %s1371
      $region104: #{_lambda_.4} parent=99 // pred_fallthru
        _
      // Predicated region
      $region105: #{_lambda_.4} parent=99 // pred_check
        %p1373 = pneg %p376
      $region106: #{_lambda_.4} parent=99 // pred_check_branch
        %1375 = sbr.rel (%p1373) target = $region108
      $region107: #{_lambda_.4} parent=99 // pred_region
        %s1376 = ssub.s32 1, %s28
        %s1377 = smul.u32 4, %s1376
        %p1378 = scmp.lt.s32.totalorder %s1377, 7
        %s1379 = scalar_select %p1378, %s1377, 7
        %s1380 = smul.addr %s1379, 4
        %s1381 = scalar_lea.vmem %s14, %s1380
      $region108: #{_lambda_.4} parent=99 // pred_fallthru
        _
    $region100: #{_lambda_.4} parent=5 // pred_fallthru
      _
  $region6: #{_lambda_.4} parent=0 // loop_footer
    %s26 = sadd.s32 1, %s22
  $region7: #{_lambda_.4} parent=0 // loop_footer_branch
    %21 = sbr.rel target = $region3
  $region8: #{_lambda_.4} parent=0 // loop_exit
    _

// kernel: _lambda_.5
$region0: #{_lambda_.5}
  #allocation0 [shape = 'u32[]', space=smem, size = 0x4, offset = 0x4, fixed_abs, tag = 'smem constant byte address 0x4 - core index']
  #allocation1 [shape = 'u32[72,128]{1,0:T(1,128)}', space=vmem, size = 0x9000, scoped, tag = 'internal scratch']
  #allocation2 [shape = 'f32[8,128]{1,0:T(8,128)}', space=vmem, size = 0x1000, scoped, tag = 'scratch operand']
  #allocation3 [shape = 'f32[8,128]{1,0:T(8,128)}', space=vmem, size = 0x1000, scoped, tag = 'scratch operand']
  #allocation4 [shape = 'f32[4,8,128]{2,1,0:T(8,128)}', space=vmem, size = 0x4000, scoped, tag = 'scratch operand']
  #allocation5 [shape = 'f32[4,8,128]{2,1,0:T(8,128)}', space=vmem, size = 0x4000, scoped, tag = 'scratch operand']
  %s0 = inlined_call_operand.vmem [shape: bf16[8,8,128], index: 0, kind: input, shape index: {}, may-alias: {0,2}]
  %s1 = inlined_call_operand.vmem [shape: bf16[8,8,128], index: 1, kind: input, shape index: {}, may-alias: {1,3}]
  %s2 = inlined_call_operand.vmem [shape: bf16[8,8,128], index: 2, kind: input, shape index: {}, may-alias: {0,2}]
  %s3 = inlined_call_operand.vmem [shape: bf16[8,8,128], index: 3, kind: input, shape index: {}, may-alias: {1,3}]
  %s4 = inlined_call_operand.vmem [shape: bf16[128,128], index: 4, kind: input, shape index: {}]
  %s5 = inlined_call_operand.vmem [shape: bf16[128,128], index: 5, kind: input, shape index: {}]
  %s6 = inlined_call_operand.vmem [shape: bf16[128,128], index: 6, kind: input, shape index: {}]
  %s7 = inlined_call_operand.vmem [shape: bf16[128,128], index: 7, kind: input, shape index: {}]
  %s8 = inlined_call_operand.vmem [shape: bf16[128,128], index: 8, kind: input, shape index: {}]
  %s9 = inlined_call_operand.vmem [shape: bf16[128,128], index: 9, kind: input, shape index: {}]
  %s10 = inlined_call_operand.vmem [shape: f32[1,128], index: 10, kind: input, shape index: {}]
  %s11 = inlined_call_operand.vmem [shape: f32[1,128], index: 11, kind: input, shape index: {}]
  %s12 = inlined_call_operand.vmem [shape: f32[8,128], index: 12, kind: input, shape index: {}]
  %s13 = inlined_call_operand.vmem [shape: f32[128,128], index: 13, kind: input, shape index: {}]
  %s14 = inlined_call_operand.vmem [shape: f32[1,128], index: 14, kind: input, shape index: {}]
  %s15 = inlined_call_operand.vmem [shape: f32[8,128], index: 15, kind: output, shape index: {}]
  %s16 = sld [smem:[#allocation0]]
  $region101: #{_lambda_.5} parent=0
    _
  %s18 = ssub.s32 1, %s16
  %s19 = scalar_select 0, %s18, %s16
  loop: start=0, step=1, limit=4
  $region2: #{_lambda_.5} parent=0 // loop_pre_header
    _
  $region3: #{_lambda_.5} parent=0 // loop_header
    %s21 = sphi 0, %s25
    %p22 = scmp.ge.s32.totalorder %s21, 4
    %s31 = sphi 0, %s33
    %s34 = sphi 0, %s31
    %s35 = sphi 0, %s34
    %s51 = sphi 0, %s35
    %s57 = sphi 0, %s59
    %s60 = sphi 0, %s57
    %s61 = sphi 0, %s60
    %s77 = sphi 0, %s61
    %s85 = sphi 0, %s87
    %s88 = sphi 0, %s85
    %s89 = sphi 0, %s88
    %s105 = sphi 0, %s89
    %s113 = sphi 0, %s115
    %s116 = sphi 0, %s113
    %s117 = sphi 0, %s116
    %s133 = sphi 0, %s117
    %s137 = sphi 0, %s137
    %s139 = sphi 0, %s137
    %s140 = sphi 0, %s139
    %s154 = sphi 0, %s140
    %s158 = sphi 0, %s158
    %s160 = sphi 0, %s158
    %s161 = sphi 0, %s160
    %s175 = sphi 0, %s161
    %s179 = sphi 0, %s179
    %s181 = sphi 0, %s179
    %s182 = sphi 0, %s181
    %s196 = sphi 0, %s182
    %s200 = sphi 0, %s200
    %s202 = sphi 0, %s200
    %s203 = sphi 0, %s202
    %s217 = sphi 0, %s203
    %s221 = sphi 0, %s221
    %s223 = sphi 0, %s221
    %s224 = sphi 0, %s223
    %s238 = sphi 0, %s224
    %s242 = sphi 0, %s242
    %s244 = sphi 0, %s242
    %s245 = sphi 0, %s244
    %s259 = sphi 0, %s245
    %s263 = sphi 0, %s263
    %s265 = sphi 0, %s263
    %s266 = sphi 0, %s265
    %s280 = sphi 0, %s266
    %s284 = sphi 0, %s284
    %s286 = sphi 0, %s284
    %s287 = sphi 0, %s286
    %s301 = sphi 0, %s287
    %s305 = sphi 0, %s305
    %s307 = sphi 0, %s305
    %s308 = sphi 0, %s307
    %s322 = sphi 0, %s308
    %s326 = sphi 0, %s326
    %s328 = sphi 0, %s326
    %s329 = sphi 0, %s328
    %s343 = sphi 0, %s329
    %s347 = sphi 0, %s347
    %s349 = sphi 0, %s347
    %s350 = sphi 0, %s349
    %s364 = sphi 0, %s350
    %s368 = sphi 0, %s368
    %s370 = sphi 0, %s368
    %s371 = sphi 0, %s370
    %s385 = sphi 0, %s371
  $region4: #{_lambda_.5} parent=0 // loop_header_branch
    %24 = sbr.rel (%p22) target = $region8
  $region5: #{_lambda_.5} parent=0 // loop_body
    %s26 = ssub.s32 %s21, 1
    %s27 = ssub.s32 %s21, 2
    %s28 = sadd.s32 %s21, 1
    %s29 = ssub.s32 %s21, %s28
    %p30 = scmp.eq.s32.totalorder %s29, 0
    %s32 = sadd.s32 %s31, 1
    %s33 = scalar_select %p30, %s31, %s32
    %p36 = pneg %p30
    %p37 = scmp.eq.s32.totalorder %s21, 1
    %p38 = por %p36, %p37
    %p39 = scmp.ne.s32.totalorder %s31, %s34
    %p40 = scmp.eq.s32.totalorder %s21, 0
    %p41 = por %p39, %p40
    %p42 = scmp.ne.s32.totalorder %s31, %s34
    %p43 = scmp.eq.s32.totalorder %s26, 1
    %p44 = por %p42, %p43
    %p45 = scmp.ne.s32.totalorder %s34, %s35
    %p46 = scmp.eq.s32.totalorder %s26, 0
    %p47 = por %p45, %p46
    %p48 = scmp.ne.s32.totalorder %s34, %s35
    %p49 = scmp.eq.s32.totalorder %s27, 1
    %p50 = por %p48, %p49
    %p52 = scmp.ne.s32.totalorder %s35, %s51
    %p53 = scmp.eq.s32.totalorder %s27, 0
    %p54 = por %p52, %p53
    %s55 = ssub.s32 %s21, %s28
    %p56 = scmp.eq.s32.totalorder %s55, 0
    %s58 = sadd.s32 %s57, 1
    %s59 = scalar_select %p56, %s57, %s58
    %p62 = pneg %p56
    %p63 = scmp.eq.s32.totalorder %s21, 1
    %p64 = por %p62, %p63
    %p65 = scmp.ne.s32.totalorder %s57, %s60
    %p66 = scmp.eq.s32.totalorder %s21, 0
    %p67 = por %p65, %p66
    %p68 = scmp.ne.s32.totalorder %s57, %s60
    %p69 = scmp.eq.s32.totalorder %s26, 1
    %p70 = por %p68, %p69
    %p71 = scmp.ne.s32.totalorder %s60, %s61
    %p72 = scmp.eq.s32.totalorder %s26, 0
    %p73 = por %p71, %p72
    %p74 = scmp.ne.s32.totalorder %s60, %s61
    %p75 = scmp.eq.s32.totalorder %s27, 1
    %p76 = por %p74, %p75
    %p78 = scmp.ne.s32.totalorder %s61, %s77
    %p79 = scmp.eq.s32.totalorder %s27, 0
    %p80 = por %p78, %p79
    %s81 = ssub.s32 1, %s21
    %s82 = ssub.s32 1, %s28
    %s83 = ssub.s32 %s81, %s82
    %p84 = scmp.eq.s32.totalorder %s83, 0
    %s86 = sadd.s32 %s85, 1
    %s87 = scalar_select %p84, %s85, %s86
    %p90 = pneg %p84
    %p91 = scmp.eq.s32.totalorder %s21, 1
    %p92 = por %p90, %p91
    %p93 = scmp.ne.s32.totalorder %s85, %s88
    %p94 = scmp.eq.s32.totalorder %s21, 0
    %p95 = por %p93, %p94
    %p96 = scmp.ne.s32.totalorder %s85, %s88
    %p97 = scmp.eq.s32.totalorder %s26, 1
    %p98 = por %p96, %p97
    %p99 = scmp.ne.s32.totalorder %s88, %s89
    %p100 = scmp.eq.s32.totalorder %s26, 0
    %p101 = por %p99, %p100
    %p102 = scmp.ne.s32.totalorder %s88, %s89
    %p103 = scmp.eq.s32.totalorder %s27, 1
    %p104 = por %p102, %p103
    %p106 = scmp.ne.s32.totalorder %s89, %s105
    %p107 = scmp.eq.s32.totalorder %s27, 0
    %p108 = por %p106, %p107
    %s109 = ssub.s32 1, %s21
    %s110 = ssub.s32 1, %s28
    %s111 = ssub.s32 %s109, %s110
    %p112 = scmp.eq.s32.totalorder %s111, 0
    %s114 = sadd.s32 %s113, 1
    %s115 = scalar_select %p112, %s113, %s114
    %p118 = pneg %p112
    %p119 = scmp.eq.s32.totalorder %s21, 1
    %p120 = por %p118, %p119
    %p121 = scmp.ne.s32.totalorder %s113, %s116
    %p122 = scmp.eq.s32.totalorder %s21, 0
    %p123 = por %p121, %p122
    %p124 = scmp.ne.s32.totalorder %s113, %s116
    %p125 = scmp.eq.s32.totalorder %s26, 1
    %p126 = por %p124, %p125
    %p127 = scmp.ne.s32.totalorder %s116, %s117
    %p128 = scmp.eq.s32.totalorder %s26, 0
    %p129 = por %p127, %p128
    %p130 = scmp.ne.s32.totalorder %s116, %s117
    %p131 = scmp.eq.s32.totalorder %s27, 1
    %p132 = por %p130, %p131
    %p134 = scmp.ne.s32.totalorder %s117, %s133
    %p135 = scmp.eq.s32.totalorder %s27, 0
    %p136 = por %p134, %p135
    %s138 = sadd.s32 %s137, 1
    %p141 = scmp.eq.s32.totalorder %s21, 1
    %p142 = scmp.ne.s32.totalorder %s137, %s139
    %p143 = scmp.eq.s32.totalorder %s21, 0
    %p144 = por %p142, %p143
    %p145 = scmp.ne.s32.totalorder %s137, %s139
    %p146 = scmp.eq.s32.totalorder %s26, 1
    %p147 = por %p145, %p146
    %p148 = scmp.ne.s32.totalorder %s139, %s140
    %p149 = scmp.eq.s32.totalorder %s26, 0
    %p150 = por %p148, %p149
    %p151 = scmp.ne.s32.totalorder %s139, %s140
    %p152 = scmp.eq.s32.totalorder %s27, 1
    %p153 = por %p151, %p152
    %p155 = scmp.ne.s32.totalorder %s140, %s154
    %p156 = scmp.eq.s32.totalorder %s27, 0
    %p157 = por %p155, %p156
    %s159 = sadd.s32 %s158, 1
    %p162 = scmp.eq.s32.totalorder %s21, 1
    %p163 = scmp.ne.s32.totalorder %s158, %s160
    %p164 = scmp.eq.s32.totalorder %s21, 0
    %p165 = por %p163, %p164
    %p166 = scmp.ne.s32.totalorder %s158, %s160
    %p167 = scmp.eq.s32.totalorder %s26, 1
    %p168 = por %p166, %p167
    %p169 = scmp.ne.s32.totalorder %s160, %s161
    %p170 = scmp.eq.s32.totalorder %s26, 0
    %p171 = por %p169, %p170
    %p172 = scmp.ne.s32.totalorder %s160, %s161
    %p173 = scmp.eq.s32.totalorder %s27, 1
    %p174 = por %p172, %p173
    %p176 = scmp.ne.s32.totalorder %s161, %s175
    %p177 = scmp.eq.s32.totalorder %s27, 0
    %p178 = por %p176, %p177
    %s180 = sadd.s32 %s179, 1
    %p183 = scmp.eq.s32.totalorder %s21, 1
    %p184 = scmp.ne.s32.totalorder %s179, %s181
    %p185 = scmp.eq.s32.totalorder %s21, 0
    %p186 = por %p184, %p185
    %p187 = scmp.ne.s32.totalorder %s179, %s181
    %p188 = scmp.eq.s32.totalorder %s26, 1
    %p189 = por %p187, %p188
    %p190 = scmp.ne.s32.totalorder %s181, %s182
    %p191 = scmp.eq.s32.totalorder %s26, 0
    %p192 = por %p190, %p191
    %p193 = scmp.ne.s32.totalorder %s181, %s182
    %p194 = scmp.eq.s32.totalorder %s27, 1
    %p195 = por %p193, %p194
    %p197 = scmp.ne.s32.totalorder %s182, %s196
    %p198 = scmp.eq.s32.totalorder %s27, 0
    %p199 = por %p197, %p198
    %s201 = sadd.s32 %s200, 1
    %p204 = scmp.eq.s32.totalorder %s21, 1
    %p205 = scmp.ne.s32.totalorder %s200, %s202
    %p206 = scmp.eq.s32.totalorder %s21, 0
    %p207 = por %p205, %p206
    %p208 = scmp.ne.s32.totalorder %s200, %s202
    %p209 = scmp.eq.s32.totalorder %s26, 1
    %p210 = por %p208, %p209
    %p211 = scmp.ne.s32.totalorder %s202, %s203
    %p212 = scmp.eq.s32.totalorder %s26, 0
    %p213 = por %p211, %p212
    %p214 = scmp.ne.s32.totalorder %s202, %s203
    %p215 = scmp.eq.s32.totalorder %s27, 1
    %p216 = por %p214, %p215
    %p218 = scmp.ne.s32.totalorder %s203, %s217
    %p219 = scmp.eq.s32.totalorder %s27, 0
    %p220 = por %p218, %p219
    %s222 = sadd.s32 %s221, 1
    %p225 = scmp.eq.s32.totalorder %s21, 1
    %p226 = scmp.ne.s32.totalorder %s221, %s223
    %p227 = scmp.eq.s32.totalorder %s21, 0
    %p228 = por %p226, %p227
    %p229 = scmp.ne.s32.totalorder %s221, %s223
    %p230 = scmp.eq.s32.totalorder %s26, 1
    %p231 = por %p229, %p230
    %p232 = scmp.ne.s32.totalorder %s223, %s224
    %p233 = scmp.eq.s32.totalorder %s26, 0
    %p234 = por %p232, %p233
    %p235 = scmp.ne.s32.totalorder %s223, %s224
    %p236 = scmp.eq.s32.totalorder %s27, 1
    %p237 = por %p235, %p236
    %p239 = scmp.ne.s32.totalorder %s224, %s238
    %p240 = scmp.eq.s32.totalorder %s27, 0
    %p241 = por %p239, %p240
    %s243 = sadd.s32 %s242, 1
    %p246 = scmp.eq.s32.totalorder %s21, 1
    %p247 = scmp.ne.s32.totalorder %s242, %s244
    %p248 = scmp.eq.s32.totalorder %s21, 0
    %p249 = por %p247, %p248
    %p250 = scmp.ne.s32.totalorder %s242, %s244
    %p251 = scmp.eq.s32.totalorder %s26, 1
    %p252 = por %p250, %p251
    %p253 = scmp.ne.s32.totalorder %s244, %s245
    %p254 = scmp.eq.s32.totalorder %s26, 0
    %p255 = por %p253, %p254
    %p256 = scmp.ne.s32.totalorder %s244, %s245
    %p257 = scmp.eq.s32.totalorder %s27, 1
    %p258 = por %p256, %p257
    %p260 = scmp.ne.s32.totalorder %s245, %s259
    %p261 = scmp.eq.s32.totalorder %s27, 0
    %p262 = por %p260, %p261
    %s264 = sadd.s32 %s263, 1
    %p267 = scmp.eq.s32.totalorder %s21, 1
    %p268 = scmp.ne.s32.totalorder %s263, %s265
    %p269 = scmp.eq.s32.totalorder %s21, 0
    %p270 = por %p268, %p269
    %p271 = scmp.ne.s32.totalorder %s263, %s265
    %p272 = scmp.eq.s32.totalorder %s26, 1
    %p273 = por %p271, %p272
    %p274 = scmp.ne.s32.totalorder %s265, %s266
    %p275 = scmp.eq.s32.totalorder %s26, 0
    %p276 = por %p274, %p275
    %p277 = scmp.ne.s32.totalorder %s265, %s266
    %p278 = scmp.eq.s32.totalorder %s27, 1
    %p279 = por %p277, %p278
    %p281 = scmp.ne.s32.totalorder %s266, %s280
    %p282 = scmp.eq.s32.totalorder %s27, 0
    %p283 = por %p281, %p282
    %s285 = sadd.s32 %s284, 1
    %p288 = scmp.eq.s32.totalorder %s21, 1
    %p289 = scmp.ne.s32.totalorder %s284, %s286
    %p290 = scmp.eq.s32.totalorder %s21, 0
    %p291 = por %p289, %p290
    %p292 = scmp.ne.s32.totalorder %s284, %s286
    %p293 = scmp.eq.s32.totalorder %s26, 1
    %p294 = por %p292, %p293
    %p295 = scmp.ne.s32.totalorder %s286, %s287
    %p296 = scmp.eq.s32.totalorder %s26, 0
    %p297 = por %p295, %p296
    %p298 = scmp.ne.s32.totalorder %s286, %s287
    %p299 = scmp.eq.s32.totalorder %s27, 1
    %p300 = por %p298, %p299
    %p302 = scmp.ne.s32.totalorder %s287, %s301
    %p303 = scmp.eq.s32.totalorder %s27, 0
    %p304 = por %p302, %p303
    %s306 = sadd.s32 %s305, 1
    %p309 = scmp.eq.s32.totalorder %s21, 1
    %p310 = scmp.ne.s32.totalorder %s305, %s307
    %p311 = scmp.eq.s32.totalorder %s21, 0
    %p312 = por %p310, %p311
    %p313 = scmp.ne.s32.totalorder %s305, %s307
    %p314 = scmp.eq.s32.totalorder %s26, 1
    %p315 = por %p313, %p314
    %p316 = scmp.ne.s32.totalorder %s307, %s308
    %p317 = scmp.eq.s32.totalorder %s26, 0
    %p318 = por %p316, %p317
    %p319 = scmp.ne.s32.totalorder %s307, %s308
    %p320 = scmp.eq.s32.totalorder %s27, 1
    %p321 = por %p319, %p320
    %p323 = scmp.ne.s32.totalorder %s308, %s322
    %p324 = scmp.eq.s32.totalorder %s27, 0
    %p325 = por %p323, %p324
    %s327 = sadd.s32 %s326, 1
    %p330 = scmp.eq.s32.totalorder %s21, 1
    %p331 = scmp.ne.s32.totalorder %s326, %s328
    %p332 = scmp.eq.s32.totalorder %s21, 0
    %p333 = por %p331, %p332
    %p334 = scmp.ne.s32.totalorder %s326, %s328
    %p335 = scmp.eq.s32.totalorder %s26, 1
    %p336 = por %p334, %p335
    %p337 = scmp.ne.s32.totalorder %s328, %s329
    %p338 = scmp.eq.s32.totalorder %s26, 0
    %p339 = por %p337, %p338
    %p340 = scmp.ne.s32.totalorder %s328, %s329
    %p341 = scmp.eq.s32.totalorder %s27, 1
    %p342 = por %p340, %p341
    %p344 = scmp.ne.s32.totalorder %s329, %s343
    %p345 = scmp.eq.s32.totalorder %s27, 0
    %p346 = por %p344, %p345
    %s348 = sadd.s32 %s347, 1
    %p351 = scmp.eq.s32.totalorder %s21, 1
    %p352 = scmp.ne.s32.totalorder %s347, %s349
    %p353 = scmp.eq.s32.totalorder %s21, 0
    %p354 = por %p352, %p353
    %p355 = scmp.ne.s32.totalorder %s347, %s349
    %p356 = scmp.eq.s32.totalorder %s26, 1
    %p357 = por %p355, %p356
    %p358 = scmp.ne.s32.totalorder %s349, %s350
    %p359 = scmp.eq.s32.totalorder %s26, 0
    %p360 = por %p358, %p359
    %p361 = scmp.ne.s32.totalorder %s349, %s350
    %p362 = scmp.eq.s32.totalorder %s27, 1
    %p363 = por %p361, %p362
    %p365 = scmp.ne.s32.totalorder %s350, %s364
    %p366 = scmp.eq.s32.totalorder %s27, 0
    %p367 = por %p365, %p366
    %s369 = sadd.s32 %s368, 1
    %p372 = scmp.eq.s32.totalorder %s21, 1
    %p373 = scmp.ne.s32.totalorder %s368, %s370
    %p374 = scmp.eq.s32.totalorder %s21, 0
    %p375 = por %p373, %p374
    %p376 = scmp.ne.s32.totalorder %s368, %s370
    %p377 = scmp.eq.s32.totalorder %s26, 1
    %p378 = por %p376, %p377
    %p379 = scmp.ne.s32.totalorder %s370, %s371
    %p380 = scmp.eq.s32.totalorder %s26, 0
    %p381 = por %p379, %p380
    %p382 = scmp.ne.s32.totalorder %s370, %s371
    %p383 = scmp.eq.s32.totalorder %s27, 1
    %p384 = por %p382, %p383
    %p386 = scmp.ne.s32.totalorder %s371, %s385
    %p387 = scmp.eq.s32.totalorder %s27, 0
    %p388 = por %p386, %p387
    %p389 = scmp.le.s32.totalorder 1, %s21
    %p390 = scmp.lt.s32.totalorder %s21, 3
    %p391 = pnand %p389, %p390
    %p392 = pneg %p391
    // Predicated region
    $region9: #{_lambda_.5} parent=5 // pred_check
      _
    $region10: #{_lambda_.5} parent=5 // pred_check_branch
      %394 = sbr.rel (%p391) target = $region12
    $region11: #{_lambda_.5} parent=5 // pred_region
      %s395 = ssub.s32 %s21, 1
      // Predicated region
      $region13: #{_lambda_.5} parent=11 // pred_check
        %p396 = pneg %p150
      $region14: #{_lambda_.5} parent=11 // pred_check_branch
        %398 = sbr.rel (%p396) target = $region16
      $region15: #{_lambda_.5} parent=11 // pred_region
        _
      $region16: #{_lambda_.5} parent=11 // pred_fallthru
        _
      // Predicated region
      $region17: #{_lambda_.5} parent=11 // pred_check
        %p399 = pneg %p171
      $region18: #{_lambda_.5} parent=11 // pred_check_branch
        %401 = sbr.rel (%p399) target = $region20
      $region19: #{_lambda_.5} parent=11 // pred_region
        _
      $region20: #{_lambda_.5} parent=11 // pred_fallthru
        _
      // Predicated region
      $region21: #{_lambda_.5} parent=11 // pred_check
        %p402 = pneg %p192
      $region22: #{_lambda_.5} parent=11 // pred_check_branch
        %404 = sbr.rel (%p402) target = $region24
      $region23: #{_lambda_.5} parent=11 // pred_region
        _
      $region24: #{_lambda_.5} parent=11 // pred_fallthru
        _
      // Predicated region
      $region25: #{_lambda_.5} parent=11 // pred_check
        %p405 = pneg %p213
      $region26: #{_lambda_.5} parent=11 // pred_check_branch
        %407 = sbr.rel (%p405) target = $region28
      $region27: #{_lambda_.5} parent=11 // pred_region
        _
      $region28: #{_lambda_.5} parent=11 // pred_fallthru
        _
      // Predicated region
      $region29: #{_lambda_.5} parent=11 // pred_check
        %p408 = pneg %p234
      $region30: #{_lambda_.5} parent=11 // pred_check_branch
        %410 = sbr.rel (%p408) target = $region32
      $region31: #{_lambda_.5} parent=11 // pred_region
        _
      $region32: #{_lambda_.5} parent=11 // pred_fallthru
        _
      // Predicated region
      $region33: #{_lambda_.5} parent=11 // pred_check
        %p411 = pneg %p255
      $region34: #{_lambda_.5} parent=11 // pred_check_branch
        %413 = sbr.rel (%p411) target = $region36
      $region35: #{_lambda_.5} parent=11 // pred_region
        _
      $region36: #{_lambda_.5} parent=11 // pred_fallthru
        _
      // Predicated region
      $region37: #{_lambda_.5} parent=11 // pred_check
        %p414 = pneg %p276
      $region38: #{_lambda_.5} parent=11 // pred_check_branch
        %416 = sbr.rel (%p414) target = $region40
      $region39: #{_lambda_.5} parent=11 // pred_region
        _
      $region40: #{_lambda_.5} parent=11 // pred_fallthru
        _
      // Predicated region
      $region41: #{_lambda_.5} parent=11 // pred_check
        %p417 = pneg %p297
      $region42: #{_lambda_.5} parent=11 // pred_check_branch
        %419 = sbr.rel (%p417) target = $region44
      $region43: #{_lambda_.5} parent=11 // pred_region
        _
      $region44: #{_lambda_.5} parent=11 // pred_fallthru
        _
      // Predicated region
      $region45: #{_lambda_.5} parent=11 // pred_check
        %p420 = pneg %p318
      $region46: #{_lambda_.5} parent=11 // pred_check_branch
        %422 = sbr.rel (%p420) target = $region48
      $region47: #{_lambda_.5} parent=11 // pred_region
        _
      $region48: #{_lambda_.5} parent=11 // pred_fallthru
        _
      // Predicated region
      $region49: #{_lambda_.5} parent=11 // pred_check
        %p423 = pneg %p339
      $region50: #{_lambda_.5} parent=11 // pred_check_branch
        %425 = sbr.rel (%p423) target = $region52
      $region51: #{_lambda_.5} parent=11 // pred_region
        _
      $region52: #{_lambda_.5} parent=11 // pred_fallthru
        _
      // Predicated region
      $region53: #{_lambda_.5} parent=11 // pred_check
        %p426 = pneg %p360
      $region54: #{_lambda_.5} parent=11 // pred_check_branch
        %428 = sbr.rel (%p426) target = $region56
      $region55: #{_lambda_.5} parent=11 // pred_region
        _
      $region56: #{_lambda_.5} parent=11 // pred_fallthru
        _
    $region12: #{_lambda_.5} parent=5 // pred_fallthru
      _
    %p429 = scmp.lt.s32.totalorder %s21, 2
    // Predicated region
    $region57: #{_lambda_.5} parent=5 // pred_check
      %p430 = pneg %p429
    $region58: #{_lambda_.5} parent=5 // pred_check_branch
      %432 = sbr.rel (%p430) target = $region60
    $region59: #{_lambda_.5} parent=5 // pred_region
      // Predicated region
      $region61: #{_lambda_.5} parent=59 // pred_check
        %p433 = pneg %p41
      $region62: #{_lambda_.5} parent=59 // pred_check_branch
        %435 = sbr.rel (%p433) target = $region64
      $region63: #{_lambda_.5} parent=59 // pred_region
        %s436 = smul.u32 4, %s21
        %p437 = scmp.lt.s32.totalorder %s436, 7
        %s438 = scalar_select %p437, %s436, 7
        %s439 = smul.addr %s438, 4
        %s440 = scalar_lea.vmem %s0, %s439
        %s441 = smul.u32 4, %s21
      $region64: #{_lambda_.5} parent=59 // pred_fallthru
        _
      // Predicated region
      $region65: #{_lambda_.5} parent=59 // pred_check
        %p442 = pneg %p67
      $region66: #{_lambda_.5} parent=59 // pred_check_branch
        %444 = sbr.rel (%p442) target = $region68
      $region67: #{_lambda_.5} parent=59 // pred_region
        %s445 = smul.u32 4, %s21
        %p446 = scmp.lt.s32.totalorder %s445, 7
        %s447 = scalar_select %p446, %s445, 7
        %s448 = smul.addr %s447, 4
        %s449 = scalar_lea.vmem %s1, %s448
        %s450 = smul.u32 4, %s21
      $region68: #{_lambda_.5} parent=59 // pred_fallthru
        _
      // Predicated region
      $region69: #{_lambda_.5} parent=59 // pred_check
        %p451 = pneg %p95
      $region70: #{_lambda_.5} parent=59 // pred_check_branch
        %453 = sbr.rel (%p451) target = $region72
      $region71: #{_lambda_.5} parent=59 // pred_region
        %s454 = ssub.s32 1, %s21
        %s455 = smul.u32 4, %s454
        %p456 = scmp.lt.s32.totalorder %s455, 7
        %s457 = scalar_select %p456, %s455, 7
        %s458 = smul.addr %s457, 4
        %s459 = scalar_lea.vmem %s2, %s458
        %s460 = ssub.s32 1, %s21
        %s461 = smul.u32 4, %s460
      $region72: #{_lambda_.5} parent=59 // pred_fallthru
        _
      // Predicated region
      $region73: #{_lambda_.5} parent=59 // pred_check
        %p462 = pneg %p123
      $region74: #{_lambda_.5} parent=59 // pred_check_branch
        %464 = sbr.rel (%p462) target = $region76
      $region75: #{_lambda_.5} parent=59 // pred_region
        %s465 = ssub.s32 1, %s21
        %s466 = smul.u32 4, %s465
        %p467 = scmp.lt.s32.totalorder %s466, 7
        %s468 = scalar_select %p467, %s466, 7
        %s469 = smul.addr %s468, 4
        %s470 = scalar_lea.vmem %s3, %s469
        %s471 = ssub.s32 1, %s21
        %s472 = smul.u32 4, %s471
      $region76: #{_lambda_.5} parent=59 // pred_fallthru
        _
    $region60: #{_lambda_.5} parent=5 // pred_fallthru
      _
    %p473 = scmp.le.s32.totalorder 1, %s21
    %p474 = scmp.lt.s32.totalorder %s21, 3
    %p475 = pnand %p473, %p474
    %p476 = pneg %p475
    // Predicated region
    $region77: #{_lambda_.5} parent=5 // pred_check
      _
    $region78: #{_lambda_.5} parent=5 // pred_check_branch
      %478 = sbr.rel (%p475) target = $region80
    $region79: #{_lambda_.5} parent=5 // pred_region
      %s479 = ssub.s32 %s21, 1
      %s480 = smul.u32 4, %s26
      %p481 = scmp.lt.s32.totalorder %s480, 7
      %s482 = scalar_select %p481, %s480, 7
      %s483 = smul.addr %s482, 4
      %s484 = scalar_lea.vmem %s0, %s483
      %p485 = pneg %p47
      %p486 = pneg %p44
      %s487 = smul.u32 4, %s26
      %p488 = scmp.lt.s32.totalorder %s487, 7
      %s489 = scalar_select %p488, %s487, 7
      %s490 = smul.addr %s489, 4
      %s491 = scalar_lea.vmem %s1, %s490
      %p492 = pneg %p73
      %p493 = pneg %p70
      %s494 = ssub.s32 1, %s26
      %s495 = smul.u32 4, %s494
      %p496 = scmp.lt.s32.totalorder %s495, 7
      %s497 = scalar_select %p496, %s495, 7
      %s498 = smul.addr %s497, 4
      %s499 = scalar_lea.vmem %s2, %s498
      %p500 = pneg %p101
      %p501 = pneg %p98
      %s502 = ssub.s32 1, %s26
      %s503 = smul.u32 4, %s502
      %p504 = scmp.lt.s32.totalorder %s503, 7
      %s505 = scalar_select %p504, %s503, 7
      %s506 = smul.addr %s505, 4
      %s507 = scalar_lea.vmem %s3, %s506
      %p508 = pneg %p129
      %p509 = pneg %p126
      %p510 = pneg %p150
      %p511 = pneg %p147
      %p512 = pneg %p171
      %p513 = pneg %p168
      %p514 = pneg %p192
      %p515 = pneg %p189
      %p516 = pneg %p213
      %p517 = pneg %p210
      %p518 = pneg %p234
      %p519 = pneg %p231
      %p520 = pneg %p255
      %p521 = pneg %p252
      %p522 = pneg %p276
      %p523 = pneg %p273
      %p524 = pneg %p297
      %p525 = pneg %p294
      %p526 = pneg %p318
      %p527 = pneg %p315
      %p528 = pneg %p339
      %p529 = pneg %p336
      %p530 = pneg %p360
      %p531 = pneg %p357
      %p532 = pneg %p381
      %p533 = pneg %p378
      %s534 = smul.u32 4, %s26
      %p535 = scmp.lt.s32.totalorder %s534, 7
      %s536 = scalar_select %p535, %s534, 7
      %s537 = smul.addr %s536, 4
      %s538 = scalar_lea.vmem %s0, %s537
      %s539 = smul.u32 4, %s26
      %s540 = smul.u32 4, %s26
      %p541 = scmp.lt.s32.totalorder %s540, 7
      %s542 = scalar_select %p541, %s540, 7
      %s543 = smul.addr %s542, 4
      %s544 = scalar_lea.vmem %s1, %s543
      %s545 = smul.u32 4, %s26
      %s546 = ssub.s32 1, %s26
      %s547 = smul.u32 4, %s546
      %p548 = scmp.lt.s32.totalorder %s547, 7
      %s549 = scalar_select %p548, %s547, 7
      %s550 = smul.addr %s549, 4
      %s551 = scalar_lea.vmem %s2, %s550
      %s552 = ssub.s32 1, %s26
      %s553 = smul.u32 4, %s552
      %s554 = ssub.s32 1, %s26
      %s555 = smul.u32 4, %s554
      %p556 = scmp.lt.s32.totalorder %s555, 7
      %s557 = scalar_select %p556, %s555, 7
      %s558 = smul.addr %s557, 4
      %s559 = scalar_lea.vmem %s3, %s558
      %s560 = ssub.s32 1, %s26
      %s561 = smul.u32 4, %s560
      %p562 = scmp.eq.s32.totalorder %s26, 0
      // Predicated region
      $region81: #{_lambda_.5} parent=79 // pred_check
        %p563 = pneg %p562
      $region82: #{_lambda_.5} parent=79 // pred_check_branch
        %565 = sbr.rel (%p563) target = $region84
      $region83: #{_lambda_.5} parent=79 // pred_region
        %566 = vst [vmem:[#allocation2] sm:$0xff] 0.0
        %567 = vst [vmem:[#allocation3] sm:$0xff] 0.0
      $region84: #{_lambda_.5} parent=79 // pred_fallthru
        _
      %v568 = vld [vmem:[%s538] sm:$0xf]
      %v569 = vld [vmem:[%s538 + $0x4] sm:$0xf]
      %v570 = vld [vmem:[%s538 + $0x8] sm:$0xf]
      %v571 = vld [vmem:[%s538 + $0xc] sm:$0xf]
      %v572 = vld [vmem:[%s4] sm:$0xf]
      %v573 = vld [vmem:[%s4 + $0x4] sm:$0xf]
      %v574 = vld [vmem:[%s4 + $0x8] sm:$0xf]
      %v575 = vld [vmem:[%s4 + $0xc] sm:$0xf]
      %v576 = vld [vmem:[%s4 + $0x10] sm:$0xf]
      %v577 = vld [vmem:[%s4 + $0x14] sm:$0xf]
      %v578 = vld [vmem:[%s4 + $0x18] sm:$0xf]
      %v579 = vld [vmem:[%s4 + $0x1c] sm:$0xf]
      %v580 = vld [vmem:[%s4 + $0x20] sm:$0xf]
      %v581 = vld [vmem:[%s4 + $0x24] sm:$0xf]
      %v582 = vld [vmem:[%s4 + $0x28] sm:$0xf]
      %v583 = vld [vmem:[%s4 + $0x2c] sm:$0xf]
      %v584 = vld [vmem:[%s4 + $0x30] sm:$0xf]
      %v585 = vld [vmem:[%s4 + $0x34] sm:$0xf]
      %v586 = vld [vmem:[%s4 + $0x38] sm:$0xf]
      %v587 = vld [vmem:[%s4 + $0x3c] sm:$0xf]
      %v588 = vld [vmem:[%s544] sm:$0xf]
      %v589 = vld [vmem:[%s544 + $0x4] sm:$0xf]
      %v590 = vld [vmem:[%s544 + $0x8] sm:$0xf]
      %v591 = vld [vmem:[%s544 + $0xc] sm:$0xf]
      %v592 = vld [vmem:[%s5] sm:$0xf]
      %v593 = vld [vmem:[%s5 + $0x4] sm:$0xf]
      %v594 = vld [vmem:[%s5 + $0x8] sm:$0xf]
      %v595 = vld [vmem:[%s5 + $0xc] sm:$0xf]
      %v596 = vld [vmem:[%s5 + $0x10] sm:$0xf]
      %v597 = vld [vmem:[%s5 + $0x14] sm:$0xf]
      %v598 = vld [vmem:[%s5 + $0x18] sm:$0xf]
      %v599 = vld [vmem:[%s5 + $0x1c] sm:$0xf]
      %v600 = vld [vmem:[%s5 + $0x20] sm:$0xf]
      %v601 = vld [vmem:[%s5 + $0x24] sm:$0xf]
      %v602 = vld [vmem:[%s5 + $0x28] sm:$0xf]
      %v603 = vld [vmem:[%s5 + $0x2c] sm:$0xf]
      %v604 = vld [vmem:[%s5 + $0x30] sm:$0xf]
      %v605 = vld [vmem:[%s5 + $0x34] sm:$0xf]
      %v606 = vld [vmem:[%s5 + $0x38] sm:$0xf]
      %v607 = vld [vmem:[%s5 + $0x3c] sm:$0xf]
      %v612 = vunpack.c.l.b16 %v588
      %v613 = vunpack.c.l.b16 %v589
      %v614 = vunpack.c.l.b16 %v590
      %v615 = vunpack.c.l.b16 %v591
      %v616 = vpack.c.b16 %v613, %v612
      %v617 = vpack.c.b16 %v615, %v614
      %v636 = vunpack.c.l.b16 %v592
      %v637 = vunpack.c.l.b16 %v593
      %v638 = vunpack.c.l.b16 %v594
      %v639 = vunpack.c.l.b16 %v595
      %v640 = vunpack.c.l.b16 %v596
      %v641 = vunpack.c.l.b16 %v597
      %v642 = vunpack.c.l.b16 %v598
      %v643 = vunpack.c.l.b16 %v599
      %v644 = vunpack.c.l.b16 %v600
      %v645 = vunpack.c.l.b16 %v601
      %v646 = vunpack.c.l.b16 %v602
      %v647 = vunpack.c.l.b16 %v603
      %v648 = vunpack.c.l.b16 %v604
      %v649 = vunpack.c.l.b16 %v605
      %v650 = vunpack.c.l.b16 %v606
      %v651 = vunpack.c.l.b16 %v607
      %v652 = vpack.c.b16 %v637, %v636
      %v653 = vpack.c.b16 %v639, %v638
      %v654 = vpack.c.b16 %v641, %v640
      %v655 = vpack.c.b16 %v643, %v642
      %v656 = vpack.c.b16 %v645, %v644
      %v657 = vpack.c.b16 %v647, %v646
      %v658 = vpack.c.b16 %v649, %v648
      %v659 = vpack.c.b16 %v651, %v650
      %668 = vmatpush.bf16.msra.mxu0 %v659
      %669 = vmatpush.bf16.msra.mxu0 %v658
      %670 = vmatpush.bf16.msra.mxu0 %v657
      %671 = vmatpush.bf16.msra.mxu0 %v656
      %672 = vmatpush.bf16.msra.mxu0 %v655
      %673 = vmatpush.bf16.msra.mxu0 %v654
      %674 = vmatpush.bf16.msra.mxu0 %v653
      %675 = vmatpush.bf16.msra.mxu0 %v652
      %676 = vmatmul.bf16.gmra.mxu0 %v616
      %v677 = vpop.f32.mrf.mxu0
      %v678 = vadd.f32 0.0, %v677
      %v679 = vpop.f32.mrf.mxu0
      %v680 = vadd.f32 0.0, %v679
      %681 = vmatmul.bf16.gmra.mxu0 %v617
      %v682 = vpop.f32.mrf.mxu0
      %v683 = vadd.f32 0.0, %v682
      %v684 = vpop.f32.mrf.mxu0
      %v685 = vadd.f32 0.0, %v684
      %686 = vdwg.mxu0
      %v691 = vunpack.c.l.b16 %v568
      %v692 = vunpack.c.l.b16 %v569
      %v693 = vunpack.c.l.b16 %v570
      %v694 = vunpack.c.l.b16 %v571
      %v695 = vpack.c.b16 %v692, %v691
      %v696 = vpack.c.b16 %v694, %v693
      %v715 = vunpack.c.l.b16 %v572
      %v716 = vunpack.c.l.b16 %v573
      %v717 = vunpack.c.l.b16 %v574
      %v718 = vunpack.c.l.b16 %v575
      %v719 = vunpack.c.l.b16 %v576
      %v720 = vunpack.c.l.b16 %v577
      %v721 = vunpack.c.l.b16 %v578
      %v722 = vunpack.c.l.b16 %v579
      %v723 = vunpack.c.l.b16 %v580
      %v724 = vunpack.c.l.b16 %v581
      %v725 = vunpack.c.l.b16 %v582
      %v726 = vunpack.c.l.b16 %v583
      %v727 = vunpack.c.l.b16 %v584
      %v728 = vunpack.c.l.b16 %v585
      %v729 = vunpack.c.l.b16 %v586
      %v730 = vunpack.c.l.b16 %v587
      %v731 = vpack.c.b16 %v716, %v715
      %v732 = vpack.c.b16 %v718, %v717
      %v733 = vpack.c.b16 %v720, %v719
      %v734 = vpack.c.b16 %v722, %v721
      %v735 = vpack.c.b16 %v724, %v723
      %v736 = vpack.c.b16 %v726, %v725
      %v737 = vpack.c.b16 %v728, %v727
      %v738 = vpack.c.b16 %v730, %v729
      %747 = vmatpush.bf16.msra.mxu0 %v738
      %748 = vmatpush.bf16.msra.mxu0 %v737
      %749 = vmatpush.bf16.msra.mxu0 %v736
      %750 = vmatpush.bf16.msra.mxu0 %v735
      %751 = vmatpush.bf16.msra.mxu0 %v734
      %752 = vmatpush.bf16.msra.mxu0 %v733
      %753 = vmatpush.bf16.msra.mxu0 %v732
      %754 = vmatpush.bf16.msra.mxu0 %v731
      %755 = vmatmul.bf16.gmra.mxu0 %v695
      %v756 = vpop.f32.mrf.mxu0
      %v757 = vadd.f32 %v678, %v756
      %v758 = vpop.f32.mrf.mxu0
      %v759 = vadd.f32 %v680, %v758
      %760 = vmatmul.bf16.gmra.mxu0 %v696
      %v761 = vpop.f32.mrf.mxu0
      %v762 = vadd.f32 %v683, %v761
      %v763 = vpop.f32.mrf.mxu0
      %v764 = vadd.f32 %v685, %v763
      %765 = vdwg.mxu0
      %v766 = vld [vmem:[%s10] sm:$0x1]
      %v768 = vperm.slane %v766, 0
      %v770 = vadd.f32 %v757, %v768
      %v771 = vadd.f32 %v759, %v768
      %v772 = vadd.f32 %v762, %v768
      %v773 = vadd.f32 %v764, %v768
      %774 = vst [vmem:[#allocation4] sm:$0xff] %v770
      %775 = vst [vmem:[#allocation4 + $0x8] sm:$0xff] %v771
      %776 = vst [vmem:[#allocation4 + $0x10] sm:$0xff] %v772
      %777 = vst [vmem:[#allocation4 + $0x18] sm:$0xff] %v773
      %v778 = vld [vmem:[%s551] sm:$0xf]
      %v779 = vld [vmem:[%s551 + $0x4] sm:$0xf]
      %v780 = vld [vmem:[%s551 + $0x8] sm:$0xf]
      %v781 = vld [vmem:[%s551 + $0xc] sm:$0xf]
      %v782 = vld [vmem:[%s6] sm:$0xf]
      %v783 = vld [vmem:[%s6 + $0x4] sm:$0xf]
      %v784 = vld [vmem:[%s6 + $0x8] sm:$0xf]
      %v785 = vld [vmem:[%s6 + $0xc] sm:$0xf]
      %v786 = vld [vmem:[%s6 + $0x10] sm:$0xf]
      %v787 = vld [vmem:[%s6 + $0x14] sm:$0xf]
      %v788 = vld [vmem:[%s6 + $0x18] sm:$0xf]
      %v789 = vld [vmem:[%s6 + $0x1c] sm:$0xf]
      %v790 = vld [vmem:[%s6 + $0x20] sm:$0xf]
      %v791 = vld [vmem:[%s6 + $0x24] sm:$0xf]
      %v792 = vld [vmem:[%s6 + $0x28] sm:$0xf]
      %v793 = vld [vmem:[%s6 + $0x2c] sm:$0xf]
      %v794 = vld [vmem:[%s6 + $0x30] sm:$0xf]
      %v795 = vld [vmem:[%s6 + $0x34] sm:$0xf]
      %v796 = vld [vmem:[%s6 + $0x38] sm:$0xf]
      %v797 = vld [vmem:[%s6 + $0x3c] sm:$0xf]
      %v798 = vld [vmem:[%s559] sm:$0xf]
      %v799 = vld [vmem:[%s559 + $0x4] sm:$0xf]
      %v800 = vld [vmem:[%s559 + $0x8] sm:$0xf]
      %v801 = vld [vmem:[%s559 + $0xc] sm:$0xf]
      %v802 = vld [vmem:[%s7] sm:$0xf]
      %v803 = vld [vmem:[%s7 + $0x4] sm:$0xf]
      %v804 = vld [vmem:[%s7 + $0x8] sm:$0xf]
      %v805 = vld [vmem:[%s7 + $0xc] sm:$0xf]
      %v806 = vld [vmem:[%s7 + $0x10] sm:$0xf]
      %v807 = vld [vmem:[%s7 + $0x14] sm:$0xf]
      %v808 = vld [vmem:[%s7 + $0x18] sm:$0xf]
      %v809 = vld [vmem:[%s7 + $0x1c] sm:$0xf]
      %v810 = vld [vmem:[%s7 + $0x20] sm:$0xf]
      %v811 = vld [vmem:[%s7 + $0x24] sm:$0xf]
      %v812 = vld [vmem:[%s7 + $0x28] sm:$0xf]
      %v813 = vld [vmem:[%s7 + $0x2c] sm:$0xf]
      %v814 = vld [vmem:[%s7 + $0x30] sm:$0xf]
      %v815 = vld [vmem:[%s7 + $0x34] sm:$0xf]
      %v816 = vld [vmem:[%s7 + $0x38] sm:$0xf]
      %v817 = vld [vmem:[%s7 + $0x3c] sm:$0xf]
      %v822 = vunpack.c.l.b16 %v798
      %v823 = vunpack.c.l.b16 %v799
      %v824 = vunpack.c.l.b16 %v800
      %v825 = vunpack.c.l.b16 %v801
      %v826 = vpack.c.b16 %v823, %v822
      %v827 = vpack.c.b16 %v825, %v824
      %v846 = vunpack.c.l.b16 %v802
      %v847 = vunpack.c.l.b16 %v803
      %v848 = vunpack.c.l.b16 %v804
      %v849 = vunpack.c.l.b16 %v805
      %v850 = vunpack.c.l.b16 %v806
      %v851 = vunpack.c.l.b16 %v807
      %v852 = vunpack.c.l.b16 %v808
      %v853 = vunpack.c.l.b16 %v809
      %v854 = vunpack.c.l.b16 %v810
      %v855 = vunpack.c.l.b16 %v811
      %v856 = vunpack.c.l.b16 %v812
      %v857 = vunpack.c.l.b16 %v813
      %v858 = vunpack.c.l.b16 %v814
      %v859 = vunpack.c.l.b16 %v815
      %v860 = vunpack.c.l.b16 %v816
      %v861 = vunpack.c.l.b16 %v817
      %v862 = vpack.c.b16 %v847, %v846
      %v863 = vpack.c.b16 %v849, %v848
      %v864 = vpack.c.b16 %v851, %v850
      %v865 = vpack.c.b16 %v853, %v852
      %v866 = vpack.c.b16 %v855, %v854
      %v867 = vpack.c.b16 %v857, %v856
      %v868 = vpack.c.b16 %v859, %v858
      %v869 = vpack.c.b16 %v861, %v860
      %878 = vmatpush.bf16.msra.mxu0 %v869
      %879 = vmatpush.bf16.msra.mxu0 %v868
      %880 = vmatpush.bf16.msra.mxu0 %v867
      %881 = vmatpush.bf16.msra.mxu0 %v866
      %882 = vmatpush.bf16.msra.mxu0 %v865
      %883 = vmatpush.bf16.msra.mxu0 %v864
      %884 = vmatpush.bf16.msra.mxu0 %v863
      %885 = vmatpush.bf16.msra.mxu0 %v862
      %886 = vmatmul.bf16.gmra.mxu0 %v826
      %v887 = vpop.f32.mrf.mxu0
      %v888 = vadd.f32 0.0, %v887
      %v889 = vpop.f32.mrf.mxu0
      %v890 = vadd.f32 0.0, %v889
      %891 = vmatmul.bf16.gmra.mxu0 %v827
      %v892 = vpop.f32.mrf.mxu0
      %v893 = vadd.f32 0.0, %v892
      %v894 = vpop.f32.mrf.mxu0
      %v895 = vadd.f32 0.0, %v894
      %896 = vdwg.mxu0
      %v901 = vunpack.c.l.b16 %v778
      %v902 = vunpack.c.l.b16 %v779
      %v903 = vunpack.c.l.b16 %v780
      %v904 = vunpack.c.l.b16 %v781
      %v905 = vpack.c.b16 %v902, %v901
      %v906 = vpack.c.b16 %v904, %v903
      %v925 = vunpack.c.l.b16 %v782
      %v926 = vunpack.c.l.b16 %v783
      %v927 = vunpack.c.l.b16 %v784
      %v928 = vunpack.c.l.b16 %v785
      %v929 = vunpack.c.l.b16 %v786
      %v930 = vunpack.c.l.b16 %v787
      %v931 = vunpack.c.l.b16 %v788
      %v932 = vunpack.c.l.b16 %v789
      %v933 = vunpack.c.l.b16 %v790
      %v934 = vunpack.c.l.b16 %v791
      %v935 = vunpack.c.l.b16 %v792
      %v936 = vunpack.c.l.b16 %v793
      %v937 = vunpack.c.l.b16 %v794
      %v938 = vunpack.c.l.b16 %v795
      %v939 = vunpack.c.l.b16 %v796
      %v940 = vunpack.c.l.b16 %v797
      %v941 = vpack.c.b16 %v926, %v925
      %v942 = vpack.c.b16 %v928, %v927
      %v943 = vpack.c.b16 %v930, %v929
      %v944 = vpack.c.b16 %v932, %v931
      %v945 = vpack.c.b16 %v934, %v933
      %v946 = vpack.c.b16 %v936, %v935
      %v947 = vpack.c.b16 %v938, %v937
      %v948 = vpack.c.b16 %v940, %v939
      %957 = vmatpush.bf16.msra.mxu0 %v948
      %958 = vmatpush.bf16.msra.mxu0 %v947
      %959 = vmatpush.bf16.msra.mxu0 %v946
      %960 = vmatpush.bf16.msra.mxu0 %v945
      %961 = vmatpush.bf16.msra.mxu0 %v944
      %962 = vmatpush.bf16.msra.mxu0 %v943
      %963 = vmatpush.bf16.msra.mxu0 %v942
      %964 = vmatpush.bf16.msra.mxu0 %v941
      %965 = vmatmul.bf16.gmra.mxu0 %v905
      %v966 = vpop.f32.mrf.mxu0
      %v967 = vadd.f32 %v888, %v966
      %v968 = vpop.f32.mrf.mxu0
      %v969 = vadd.f32 %v890, %v968
      %970 = vmatmul.bf16.gmra.mxu0 %v906
      %v971 = vpop.f32.mrf.mxu0
      %v972 = vadd.f32 %v893, %v971
      %v973 = vpop.f32.mrf.mxu0
      %v974 = vadd.f32 %v895, %v973
      %975 = vdwg.mxu0
      %v976 = vld [vmem:[%s11] sm:$0x1]
      %v978 = vperm.slane %v976, 0
      %v980 = vadd.f32 %v967, %v978
      %v981 = vadd.f32 %v969, %v978
      %v982 = vadd.f32 %v972, %v978
      %v983 = vadd.f32 %v974, %v978
      %984 = vst [vmem:[#allocation5] sm:$0xff] %v980
      %985 = vst [vmem:[#allocation5 + $0x8] sm:$0xff] %v981
      %986 = vst [vmem:[#allocation5 + $0x10] sm:$0xff] %v982
      %987 = vst [vmem:[#allocation5 + $0x18] sm:$0xff] %v983
      %v988 = vld [vmem:[%s8] sm:$0xf]
      %v989 = vld [vmem:[%s8 + $0x4] sm:$0xf]
      %v990 = vld [vmem:[%s8 + $0x8] sm:$0xf]
      %v991 = vld [vmem:[%s8 + $0xc] sm:$0xf]
      %v992 = vld [vmem:[%s8 + $0x10] sm:$0xf]
      %v993 = vld [vmem:[%s8 + $0x14] sm:$0xf]
      %v994 = vld [vmem:[%s8 + $0x18] sm:$0xf]
      %v995 = vld [vmem:[%s8 + $0x1c] sm:$0xf]
      %v996 = vld [vmem:[%s8 + $0x20] sm:$0xf]
      %v997 = vld [vmem:[%s8 + $0x24] sm:$0xf]
      %v998 = vld [vmem:[%s8 + $0x28] sm:$0xf]
      %v999 = vld [vmem:[%s8 + $0x2c] sm:$0xf]
      %v1000 = vld [vmem:[%s8 + $0x30] sm:$0xf]
      %v1001 = vld [vmem:[%s8 + $0x34] sm:$0xf]
      %v1002 = vld [vmem:[%s8 + $0x38] sm:$0xf]
      %v1003 = vld [vmem:[%s8 + $0x3c] sm:$0xf]
      %v1004 = vld [vmem:[%s9] sm:$0xf]
      %v1005 = vld [vmem:[%s9 + $0x4] sm:$0xf]
      %v1006 = vld [vmem:[%s9 + $0x8] sm:$0xf]
      %v1007 = vld [vmem:[%s9 + $0xc] sm:$0xf]
      %v1008 = vld [vmem:[%s9 + $0x10] sm:$0xf]
      %v1009 = vld [vmem:[%s9 + $0x14] sm:$0xf]
      %v1010 = vld [vmem:[%s9 + $0x18] sm:$0xf]
      %v1011 = vld [vmem:[%s9 + $0x1c] sm:$0xf]
      %v1012 = vld [vmem:[%s9 + $0x20] sm:$0xf]
      %v1013 = vld [vmem:[%s9 + $0x24] sm:$0xf]
      %v1014 = vld [vmem:[%s9 + $0x28] sm:$0xf]
      %v1015 = vld [vmem:[%s9 + $0x2c] sm:$0xf]
      %v1016 = vld [vmem:[%s9 + $0x30] sm:$0xf]
      %v1017 = vld [vmem:[%s9 + $0x34] sm:$0xf]
      %v1018 = vld [vmem:[%s9 + $0x38] sm:$0xf]
      %v1019 = vld [vmem:[%s9 + $0x3c] sm:$0xf]
      %v1020 = vld [vmem:[#allocation2] sm:$0xff]
      %v1021 = vld [vmem:[#allocation3] sm:$0xff]
      %v1022 = vld [vmem:[#allocation4] sm:$0xff]
      %v1023 = vpack.c.bf16 %v1020, %v1020
      %v1040 = vunpack.c.l.b16 %v988
      %v1041 = vunpack.c.l.b16 %v989
      %v1042 = vunpack.c.l.b16 %v990
      %v1043 = vunpack.c.l.b16 %v991
      %v1044 = vunpack.c.l.b16 %v992
      %v1045 = vunpack.c.l.b16 %v993
      %v1046 = vunpack.c.l.b16 %v994
      %v1047 = vunpack.c.l.b16 %v995
      %v1048 = vunpack.c.l.b16 %v996
      %v1049 = vunpack.c.l.b16 %v997
      %v1050 = vunpack.c.l.b16 %v998
      %v1051 = vunpack.c.l.b16 %v999
      %v1052 = vunpack.c.l.b16 %v1000
      %v1053 = vunpack.c.l.b16 %v1001
      %v1054 = vunpack.c.l.b16 %v1002
      %v1055 = vunpack.c.l.b16 %v1003
      %v1056 = vpack.c.b16 %v1041, %v1040
      %v1057 = vpack.c.b16 %v1043, %v1042
      %v1058 = vpack.c.b16 %v1045, %v1044
      %v1059 = vpack.c.b16 %v1047, %v1046
      %v1060 = vpack.c.b16 %v1049, %v1048
      %v1061 = vpack.c.b16 %v1051, %v1050
      %v1062 = vpack.c.b16 %v1053, %v1052
      %v1063 = vpack.c.b16 %v1055, %v1054
      %1072 = vmatpush.bf16.msra.mxu0 %v1063
      %1073 = vmatpush.bf16.msra.mxu0 %v1062
      %1074 = vmatpush.bf16.msra.mxu0 %v1061
      %1075 = vmatpush.bf16.msra.mxu0 %v1060
      %1076 = vmatpush.bf16.msra.mxu0 %v1059
      %1077 = vmatpush.bf16.msra.mxu0 %v1058
      %1078 = vmatpush.bf16.msra.mxu0 %v1057
      %1079 = vmatpush.bf16.msra.mxu0 %v1056
      %1080 = vmatmul.bf16.gmra.mxu0 %v1023
      %v1081 = vpop.f32.mrf.mxu0
      %v1082 = vadd.f32 0.0, %v1081
      %v1083 = vpop.f32.mrf.mxu0
      %1084 = vdwg.mxu0
      %v1085 = vadd.f32 %v1022, %v1082
      %v1086 = vtanh.pop %v1085
      %s1087 = scalar_lea.vmem [#allocation5], 24
      %v1088 = vld [vmem:[%s1087] sm:$0xff]
      %v1089 = vpack.c.bf16 %v1021, %v1021
      %v1106 = vunpack.c.l.b16 %v1004
      %v1107 = vunpack.c.l.b16 %v1005
      %v1108 = vunpack.c.l.b16 %v1006
      %v1109 = vunpack.c.l.b16 %v1007
      %v1110 = vunpack.c.l.b16 %v1008
      %v1111 = vunpack.c.l.b16 %v1009
      %v1112 = vunpack.c.l.b16 %v1010
      %v1113 = vunpack.c.l.b16 %v1011
      %v1114 = vunpack.c.l.b16 %v1012
      %v1115 = vunpack.c.l.b16 %v1013
      %v1116 = vunpack.c.l.b16 %v1014
      %v1117 = vunpack.c.l.b16 %v1015
      %v1118 = vunpack.c.l.b16 %v1016
      %v1119 = vunpack.c.l.b16 %v1017
      %v1120 = vunpack.c.l.b16 %v1018
      %v1121 = vunpack.c.l.b16 %v1019
      %v1122 = vpack.c.b16 %v1107, %v1106
      %v1123 = vpack.c.b16 %v1109, %v1108
      %v1124 = vpack.c.b16 %v1111, %v1110
      %v1125 = vpack.c.b16 %v1113, %v1112
      %v1126 = vpack.c.b16 %v1115, %v1114
      %v1127 = vpack.c.b16 %v1117, %v1116
      %v1128 = vpack.c.b16 %v1119, %v1118
      %v1129 = vpack.c.b16 %v1121, %v1120
      %1138 = vmatpush.bf16.msra.mxu0 %v1129
      %1139 = vmatpush.bf16.msra.mxu0 %v1128
      %1140 = vmatpush.bf16.msra.mxu0 %v1127
      %1141 = vmatpush.bf16.msra.mxu0 %v1126
      %1142 = vmatpush.bf16.msra.mxu0 %v1125
      %1143 = vmatpush.bf16.msra.mxu0 %v1124
      %1144 = vmatpush.bf16.msra.mxu0 %v1123
      %1145 = vmatpush.bf16.msra.mxu0 %v1122
      %1146 = vmatmul.bf16.gmra.mxu0 %v1089
      %v1147 = vpop.f32.mrf.mxu0
      %v1148 = vadd.f32 0.0, %v1147
      %v1149 = vpop.f32.mrf.mxu0
      %1150 = vdwg.mxu0
      %v1151 = vadd.f32 %v1088, %v1148
      %v1152 = vtanh.pop %v1151
      %s1153 = scalar_lea.vmem [#allocation4], 8
      %v1154 = vld [vmem:[%s1153] sm:$0xff]
      %v1155 = vpack.c.bf16 %v1086, %v1086
      %1156 = vmatpush.bf16.msra.mxu0 %v1063
      %1157 = vmatpush.bf16.msra.mxu0 %v1062
      %1158 = vmatpush.bf16.msra.mxu0 %v1061
      %1159 = vmatpush.bf16.msra.mxu0 %v1060
      %1160 = vmatpush.bf16.msra.mxu0 %v1059
      %1161 = vmatpush.bf16.msra.mxu0 %v1058
      %1162 = vmatpush.bf16.msra.mxu0 %v1057
      %1163 = vmatpush.bf16.msra.mxu0 %v1056
      %1164 = vmatmul.bf16.gmra.mxu0 %v1155
      %v1165 = vpop.f32.mrf.mxu0
      %v1166 = vadd.f32 0.0, %v1165
      %v1167 = vpop.f32.mrf.mxu0
      %1168 = vdwg.mxu0
      %v1169 = vadd.f32 %v1154, %v1166
      %v1170 = vtanh.pop %v1169
      %s1171 = scalar_lea.vmem [#allocation5], 16
      %v1172 = vld [vmem:[%s1171] sm:$0xff]
      %v1173 = vpack.c.bf16 %v1152, %v1152
      %1174 = vmatpush.bf16.msra.mxu0 %v1129
      %1175 = vmatpush.bf16.msra.mxu0 %v1128
      %1176 = vmatpush.bf16.msra.mxu0 %v1127
      %1177 = vmatpush.bf16.msra.mxu0 %v1126
      %1178 = vmatpush.bf16.msra.mxu0 %v1125
      %1179 = vmatpush.bf16.msra.mxu0 %v1124
      %1180 = vmatpush.bf16.msra.mxu0 %v1123
      %1181 = vmatpush.bf16.msra.mxu0 %v1122
      %1182 = vmatmul.bf16.gmra.mxu0 %v1173
      %v1183 = vpop.f32.mrf.mxu0
      %v1184 = vadd.f32 0.0, %v1183
      %v1185 = vpop.f32.mrf.mxu0
      %1186 = vdwg.mxu0
      %v1187 = vadd.f32 %v1172, %v1184
      %v1188 = vtanh.pop %v1187
      %s1189 = scalar_lea.vmem [#allocation4], 16
      %v1190 = vld [vmem:[%s1189] sm:$0xff]
      %v1191 = vpack.c.bf16 %v1170, %v1170
      %1192 = vmatpush.bf16.msra.mxu0 %v1063
      %1193 = vmatpush.bf16.msra.mxu0 %v1062
      %1194 = vmatpush.bf16.msra.mxu0 %v1061
      %1195 = vmatpush.bf16.msra.mxu0 %v1060
      %1196 = vmatpush.bf16.msra.mxu0 %v1059
      %1197 = vmatpush.bf16.msra.mxu0 %v1058
      %1198 = vmatpush.bf16.msra.mxu0 %v1057
      %1199 = vmatpush.bf16.msra.mxu0 %v1056
      %1200 = vmatmul.bf16.gmra.mxu0 %v1191
      %v1201 = vpop.f32.mrf.mxu0
      %v1202 = vadd.f32 0.0, %v1201
      %v1203 = vpop.f32.mrf.mxu0
      %1204 = vdwg.mxu0
      %v1205 = vadd.f32 %v1190, %v1202
      %v1206 = vtanh.pop %v1205
      %s1207 = scalar_lea.vmem [#allocation5], 8
      %v1208 = vld [vmem:[%s1207] sm:$0xff]
      %v1209 = vpack.c.bf16 %v1188, %v1188
      %1210 = vmatpush.bf16.msra.mxu0 %v1129
      %1211 = vmatpush.bf16.msra.mxu0 %v1128
      %1212 = vmatpush.bf16.msra.mxu0 %v1127
      %1213 = vmatpush.bf16.msra.mxu0 %v1126
      %1214 = vmatpush.bf16.msra.mxu0 %v1125
      %1215 = vmatpush.bf16.msra.mxu0 %v1124
      %1216 = vmatpush.bf16.msra.mxu0 %v1123
      %1217 = vmatpush.bf16.msra.mxu0 %v1122
      %1218 = vmatmul.bf16.gmra.mxu0 %v1209
      %v1219 = vpop.f32.mrf.mxu0
      %v1220 = vadd.f32 0.0, %v1219
      %v1221 = vpop.f32.mrf.mxu0
      %1222 = vdwg.mxu0
      %v1223 = vadd.f32 %v1208, %v1220
      %v1224 = vtanh.pop %v1223
      %s1225 = scalar_lea.vmem [#allocation4], 24
      %v1226 = vld [vmem:[%s1225] sm:$0xff]
      %v1227 = vpack.c.bf16 %v1206, %v1206
      %1228 = vmatpush.bf16.msra.mxu0 %v1063
      %1229 = vmatpush.bf16.msra.mxu0 %v1062
      %1230 = vmatpush.bf16.msra.mxu0 %v1061
      %1231 = vmatpush.bf16.msra.mxu0 %v1060
      %1232 = vmatpush.bf16.msra.mxu0 %v1059
      %1233 = vmatpush.bf16.msra.mxu0 %v1058
      %1234 = vmatpush.bf16.msra.mxu0 %v1057
      %1235 = vmatpush.bf16.msra.mxu0 %v1056
      %1236 = vmatmul.bf16.gmra.mxu0 %v1227
      %v1237 = vpop.f32.mrf.mxu0
      %v1238 = vadd.f32 0.0, %v1237
      %v1239 = vpop.f32.mrf.mxu0
      %1240 = vdwg.mxu0
      %v1241 = vadd.f32 %v1226, %v1238
      %v1242 = vtanh.pop %v1241
      %v1243 = vld [vmem:[#allocation5] sm:$0xff]
      %v1244 = vpack.c.bf16 %v1224, %v1224
      %1245 = vmatpush.bf16.msra.mxu0 %v1129
      %1246 = vmatpush.bf16.msra.mxu0 %v1128
      %1247 = vmatpush.bf16.msra.mxu0 %v1127
      %1248 = vmatpush.bf16.msra.mxu0 %v1126
      %1249 = vmatpush.bf16.msra.mxu0 %v1125
      %1250 = vmatpush.bf16.msra.mxu0 %v1124
      %1251 = vmatpush.bf16.msra.mxu0 %v1123
      %1252 = vmatpush.bf16.msra.mxu0 %v1122
      %1253 = vmatmul.bf16.gmra.mxu0 %v1244
      %v1254 = vpop.f32.mrf.mxu0
      %v1255 = vadd.f32 0.0, %v1254
      %v1256 = vpop.f32.mrf.mxu0
      %1257 = vdwg.mxu0
      %v1258 = vadd.f32 %v1243, %v1255
      %v1259 = vtanh.pop %v1258
      %1260 = vst [vmem:[#allocation2] sm:$0xff] %v1242
      %1261 = vst [vmem:[#allocation3] sm:$0xff] %v1259
      %p1262 = scmp.eq.s32.totalorder %s26, 1
      // Predicated region
      $region85: #{_lambda_.5} parent=79 // pred_check
        %p1263 = pneg %p1262
      $region86: #{_lambda_.5} parent=79 // pred_check_branch
        %1265 = sbr.rel (%p1263) target = $region88
      $region87: #{_lambda_.5} parent=79 // pred_region
        %v1266 = vadd.f32 %v1242, %v1259
        %v1267 = vld [vmem:[%s12] sm:$0xff]
        %v1268 = vadd.f32 %v1266, %v1267
        %v1269 = vld [vmem:[%s13] sm:$0xff]
        %v1270 = vld [vmem:[%s13 + $0x8] sm:$0xff]
        %v1271 = vld [vmem:[%s13 + $0x10] sm:$0xff]
        %v1272 = vld [vmem:[%s13 + $0x18] sm:$0xff]
        %v1273 = vld [vmem:[%s13 + $0x20] sm:$0xff]
        %v1274 = vld [vmem:[%s13 + $0x28] sm:$0xff]
        %v1275 = vld [vmem:[%s13 + $0x30] sm:$0xff]
        %v1276 = vld [vmem:[%s13 + $0x38] sm:$0xff]
        %v1277 = vld [vmem:[%s13 + $0x40] sm:$0xff]
        %v1278 = vld [vmem:[%s13 + $0x48] sm:$0xff]
        %v1279 = vld [vmem:[%s13 + $0x50] sm:$0xff]
        %v1280 = vld [vmem:[%s13 + $0x58] sm:$0xff]
        %v1281 = vld [vmem:[%s13 + $0x60] sm:$0xff]
        %v1282 = vld [vmem:[%s13 + $0x68] sm:$0xff]
        %v1283 = vld [vmem:[%s13 + $0x70] sm:$0xff]
        %v1284 = vld [vmem:[%s13 + $0x78] sm:$0xff]
        %v1285 = vld [vmem:[%s14] sm:$0x1]
        %v1287 = vperm.slane %v1285, 0
        %1289 = vmatpush.msra.mxu0 %v1284
        %1290 = vmatpush.msra.mxu0 %v1283
        %1291 = vmatpush.msra.mxu0 %v1282
        %1292 = vmatpush.msra.mxu0 %v1281
        %1293 = vmatpush.msra.mxu0 %v1280
        %1294 = vmatpush.msra.mxu0 %v1279
        %1295 = vmatpush.msra.mxu0 %v1278
        %1296 = vmatpush.msra.mxu0 %v1277
        %1297 = vmatpush.msra.mxu0 %v1276
        %1298 = vmatpush.msra.mxu0 %v1275
        %1299 = vmatpush.msra.mxu0 %v1274
        %1300 = vmatpush.msra.mxu0 %v1273
        %1301 = vmatpush.msra.mxu0 %v1272
        %1302 = vmatpush.msra.mxu0 %v1271
        %1303 = vmatpush.msra.mxu0 %v1270
        %1304 = vmatpush.msra.mxu0 %v1269
        %1305 = vmatmul.f32.gmra.mxu0 %v1268
        %v1306 = vpop.f32.mrf.mxu0
        %v1307 = vadd.f32 %v1287, %v1306
        %1308 = vdwg.mxu0
        %1309 = vst [vmem:[%s15] sm:$0xff] %v1307
      $region88: #{_lambda_.5} parent=79 // pred_fallthru
        _
      // Predicated region
      $region89: #{_lambda_.5} parent=79 // pred_check
        %p1310 = pneg %p378
      $region90: #{_lambda_.5} parent=79 // pred_check_branch
        %1312 = sbr.rel (%p1310) target = $region92
      $region91: #{_lambda_.5} parent=79 // pred_region
        _
      $region92: #{_lambda_.5} parent=79 // pred_fallthru
        _
      // Predicated region
      $region93: #{_lambda_.5} parent=79 // pred_check
        %p1313 = pneg %p378
      $region94: #{_lambda_.5} parent=79 // pred_check_branch
        %1315 = sbr.rel (%p1313) target = $region96
      $region95: #{_lambda_.5} parent=79 // pred_region
        _
      $region96: #{_lambda_.5} parent=79 // pred_fallthru
        _
    $region80: #{_lambda_.5} parent=5 // pred_fallthru
      _
    %p1316 = scmp.le.s32.totalorder 2, %s21
    // Predicated region
    $region97: #{_lambda_.5} parent=5 // pred_check
      %p1317 = pneg %p1316
    $region98: #{_lambda_.5} parent=5 // pred_check_branch
      %1319 = sbr.rel (%p1317) target = $region100
    $region99: #{_lambda_.5} parent=5 // pred_region
      %s1320 = ssub.s32 %s21, 2
    $region100: #{_lambda_.5} parent=5 // pred_fallthru
      _
  $region6: #{_lambda_.5} parent=0 // loop_footer
    %s25 = sadd.s32 1, %s21
  $region7: #{_lambda_.5} parent=0 // loop_footer_branch
    %20 = sbr.rel target = $region3
  $region8: #{_lambda_.5} parent=0 // loop_exit
    _

</llo_original>
